<compile_context>
chip_gen: v7x
topology: tpu7x:2x2x1
jax: 0.10.0
libtpu: 0.0.40
codegen_flags: <defaults>
</compile_context>

<pallas_src>
import numpy as np
import jax
import jax.numpy as jnp
from jax import lax
from jax.experimental import pallas as pl
from jax.experimental.pallas import tpu as pltpu


# ----------------------------------------------------------------------------
# Kernel A: dense RGCN layer, row-tiled, relation axis accumulates into a
#           (tm, R*Din) concat slab; single wide matmul at the last step.
# ----------------------------------------------------------------------------
def make_rgcn_kernel(R, Din):
    def rgcn_kernel(x_ref, xrow_ref, a_ref, wcat_ref, root_ref, bias_ref,
                    out_ref, agg_ref):
        r = pl.program_id(1)

        # per-relation neighborhood aggregation for this row tile: (tm, N)@(N, Din)
        agg = jnp.dot(a_ref[...], x_ref[...], preferred_element_type=jnp.float32)

        # write into the concat slab at static column offsets (R is small/static,
        # so unroll with pl.when instead of a dynamic lane-dim slice).
        for rr in range(R):
            @pl.when(r == rr)
            def _store(rr=rr):
                agg_ref[:, rr * Din:(rr + 1) * Din] = agg.astype(agg_ref.dtype)

        # last relation: one wide-K matmul over the concat slab + root + bias
        @pl.when(r == R - 1)
        def _finalize():
            out = jnp.dot(xrow_ref[...], root_ref[...],
                          preferred_element_type=jnp.float32)
            out += jnp.dot(agg_ref[...], wcat_ref[...],
                           preferred_element_type=jnp.float32)
            out_ref[...] = out + bias_ref[...]

    return rgcn_kernel


def rgcn_forward(x, adj_norm, rel_w, root_w, bias, *, tm=128):
    N, Din = x.shape
    R = adj_norm.shape[0]
    Dout = root_w.shape[1]
    assert N % tm == 0

    x_bf = x.astype(jnp.bfloat16)
    a_bf = adj_norm.astype(jnp.bfloat16)
    wcat_bf = rel_w.reshape(R * Din, Dout).astype(jnp.bfloat16)   # rows blocked by rel
    root_bf = root_w.astype(jnp.bfloat16)

    return pl.pallas_call(
        make_rgcn_kernel(R, Din),
        out_shape=jax.ShapeDtypeStruct((N, Dout), jnp.float32),
        grid_spec=pltpu.PrefetchScalarGridSpec(
            num_scalar_prefetch=0,
            grid=(N // tm, R),
            in_specs=[
                pl.BlockSpec((N, Din), lambda i, r: (0, 0)),           # x (resident)
                pl.BlockSpec((tm, Din), lambda i, r: (i, 0)),          # x rows (root)
                pl.BlockSpec((None, tm, N), lambda i, r: (r, i, 0)),   # A_r row tile
                pl.BlockSpec((R * Din, Dout), lambda i, r: (0, 0)),    # W_cat
                pl.BlockSpec((Din, Dout), lambda i, r: (0, 0)),        # W_root
                pl.BlockSpec((1, Dout), lambda i, r: (0, 0)),          # bias
            ],
            out_specs=pl.BlockSpec((tm, Dout), lambda i, r: (i, 0)),
            scratch_shapes=[pltpu.VMEM((tm, R * Din), jnp.bfloat16)],  # agg concat
        ),
        compiler_params=pltpu.CompilerParams(
            dimension_semantics=("parallel", "arbitrary"),
            vmem_limit_bytes=48 * 1024 * 1024,   # raise further on v5e/v6e for big tiles
        ),
    )(x_bf, x_bf, a_bf, wcat_bf, root_bf, bias)


# ----------------------------------------------------------------------------
# Kernel B: positional add + LayerNorm + masked self-attention pooling +
#           scoring against an entity tile of kg_emb.  Grid streams kg_emb.
# ----------------------------------------------------------------------------
def make_user_kernel(B, L, D, Da):
    def user_kernel(ent_ref, pos_ref, mask_ref, g_ref, b_ref,
                    wa_ref, wb_ref, kg_ref, rbias_ref, out_ref):
        # TODO(synk): LearnedPositionalEncoder internals not given; assume additive
        # learned positional embeddings indexed by sequence position.
        h = ent_ref[...] + pos_ref[...][None, :, :]                   # (B, L, D) f32

        # LayerNorm over the feature dim (eps = 1e-5, PyTorch default)
        mu = jnp.mean(h, axis=-1, keepdims=True)
        var = jnp.mean((h - mu) ** 2, axis=-1, keepdims=True)
        h = (h - mu) * lax.rsqrt(var + 1e-5)
        h = h * g_ref[...][None, :, :] + b_ref[...][None, :, :]

        # TODO(synk): SelfAttentionModule internals not given; assume the standard
        # additive-attention pooling  a = softmax(w_b^T tanh(W_a h))  with pad mask.
        h2 = h.reshape(B * L, D)                                      # leading dims merged
        e = jnp.tanh(jnp.dot(h2.astype(jnp.bfloat16), wa_ref[...],
                             preferred_element_type=jnp.float32))     # (B*L, Da) via MXU
        e = e.reshape(B, L, Da)
        logits = jnp.sum(e * wb_ref[...][None, :, :], axis=-1)        # (B, L)
        logits = jnp.where(mask_ref[...] > 0.0, logits, -1e30)
        logits = logits - jnp.max(logits, axis=-1, keepdims=True)
        p = jnp.exp(logits)
        attn = p / jnp.sum(p, axis=-1, keepdims=True)                 # (B, L)
        user = jnp.sum(attn[:, :, None] * h, axis=1)                  # (B, D)

        # scores for this entity tile: user @ kg_tile^T + rec_bias_tile
        scores = lax.dot_general(
            user.astype(jnp.bfloat16), kg_ref[...],
            dimension_numbers=(((1,), (1,)), ((), ())),
            preferred_element_type=jnp.float32,
        )                                                             # (B, tn)
        out_ref[...] = scores + rbias_ref[...]

    return user_kernel


def user_scores(ent_rep, pos_emb, mask, ln_g, ln_b, wa, wb_row, kg_emb, rec_bias,
                *, tn=128):
    B, L, D = ent_rep.shape
    N = kg_emb.shape[0]
    Da = wa.shape[1]
    assert N % tn == 0

    # pad batch to a multiple of 8 -> sublane-dense (B, tn) output stores
    B_pad = ((B + 7) // 8) * 8
    if B_pad != B:
        ent_rep = jnp.pad(ent_rep, ((0, B_pad - B), (0, 0), (0, 0)))
        mask = jnp.pad(mask, ((0, B_pad - B), (0, 0)))

    kg_bf = kg_emb.astype(jnp.bfloat16)
    wa_bf = wa.astype(jnp.bfloat16)

    out = pl.pallas_call(
        make_user_kernel(B_pad, L, D, Da),
        out_shape=jax.ShapeDtypeStruct((B_pad, N), jnp.float32),
        grid_spec=pltpu.PrefetchScalarGridSpec(
            num_scalar_prefetch=0,
            grid=(N // tn,),
            in_specs=[
                pl.BlockSpec((B_pad, L, D), lambda j: (0, 0, 0)),  # gathered entity reps
                pl.BlockSpec((L, D), lambda j: (0, 0)),            # positional embeds
                pl.BlockSpec((B_pad, L), lambda j: (0, 0)),        # mask (1 valid / 0 pad)
                pl.BlockSpec((1, D), lambda j: (0, 0)),            # LN gamma
                pl.BlockSpec((1, D), lambda j: (0, 0)),            # LN beta
                pl.BlockSpec((D, Da), lambda j: (0, 0)),           # attention W_a (bf16)
                pl.BlockSpec((1, Da), lambda j: (0, 0)),           # attention w_b
                pl.BlockSpec((tn, D), lambda j: (j, 0)),           # kg embeddings tile
                pl.BlockSpec((1, tn), lambda j: (0, j)),           # rec_b.bias tile
            ],
            out_specs=pl.BlockSpec((B_pad, tn), lambda j: (0, j)),
        ),
        compiler_params=pltpu.CompilerParams(
            dimension_semantics=("parallel",),
            vmem_limit_bytes=48 * 1024 * 1024,
        ),
    )(ent_rep, pos_emb, mask, ln_g, ln_b, wa_bf, wb_row, kg_bf, rec_bias)
    return out[:B]


# ----------------------------------------------------------------------------
# Full forward (use_context=False): scores = F.linear(user_kg_rep, kg_emb, rec_bias)
# ----------------------------------------------------------------------------
def kerl_forward(params, adj_norm, context_entities):
    # RGCN over the KG (Kernel A); basis composition W_r = comp @ basis in plain JAX
    rel_w = jnp.einsum("rb,bio->rio", params["comp"], params["basis"])
    kg_emb = rgcn_forward(
        params["entity_embeds"], adj_norm, rel_w, params["root_w"], params["rgcn_bias"]
    )                                                                    # (N, user_dim) f32

    B, L = context_entities.shape
    ent_rep = jnp.take(kg_emb, context_entities, axis=0)                 # gather (glue)
    mask = (context_entities != 0).astype(jnp.float32)                   # create_mask
    pos = params["pos_emb"][:L]

    return user_scores(
        ent_rep, pos, mask,
        params["ln_g"], params["ln_b"],
        params["attn_wa"], params["attn_wb"],
        kg_emb, params["rec_bias"],
    )


if __name__ == "__main__":
    # Small synthetic configuration (module defaults: kg_embedding_dim=128, user_dim=256)
    n_entity = 256            # multiple of 128 -> lane-dense scoring output
    n_relation = 4
    n_base = 2
    kg_dim = 128
    user_dim = 2 * kg_dim     # 256
    max_position = 30
    B, L = 2, 8
    n_edges = 512

    key = jax.random.PRNGKey(0)
    ks = jax.random.split(key, 16)

    # --- deterministic "edge" -> dense normalized per-relation adjacency -----
    src = np.asarray(jax.random.randint(ks[0], (n_edges,), 0, n_entity))
    dst = np.asarray(jax.random.randint(ks[1], (n_edges,), 0, n_entity))
    etype = np.asarray(jax.random.randint(ks[2], (n_edges,), 0, n_relation))
    A = np.zeros((n_relation, n_entity, n_entity), np.float32)
    for e in range(n_edges):
        A[etype[e], dst[e], src[e]] += 1.0
    deg = A.sum(axis=-1, keepdims=True)
    adj_norm = jnp.asarray(A / np.maximum(deg, 1.0))   # 1/|N_r(i)| mean aggregation

    # --- deterministic parameters --------------------------------------------
    params = {
        "entity_embeds": jax.random.normal(ks[3], (n_entity, kg_dim), jnp.float32) * 0.1,
        "basis": jax.random.normal(ks[4], (n_base, kg_dim, user_dim), jnp.float32) * 0.1,
        "comp": jax.random.normal(ks[5], (n_relation, n_base), jnp.float32),
        "root_w": jax.random.normal(ks[6], (kg_dim, user_dim), jnp.float32) * 0.1,
        "rgcn_bias": jax.random.normal(ks[7], (1, user_dim), jnp.float32) * 0.01,
        "pos_emb": jax.random.normal(ks[8], (max_position, user_dim), jnp.float32) * 0.02,
        "ln_g": jnp.ones((1, user_dim), jnp.float32),
        "ln_b": jnp.zeros((1, user_dim), jnp.float32),
        "attn_wa": jax.random.normal(ks[9], (user_dim, user_dim), jnp.float32) * 0.1,
        "attn_wb": jax.random.normal(ks[10], (1, user_dim), jnp.float32) * 0.1,
        "rec_bias": jax.random.normal(ks[11], (1, n_entity), jnp.float32) * 0.01,
    }

    # --- inputs: context entity id lists (0 = padding) -----------------------
    context_entities = jax.random.randint(ks[12], (B, L), 0, n_entity).astype(jnp.int32)
    context_entities = context_entities.at[0, -2:].set(0)   # some padding
    context_entities = context_entities.at[1, -1:].set(0)

    scores = jax.jit(kerl_forward)(params, adj_norm, context_entities)
    scores = jax.block_until_ready(scores)
    assert scores.shape == (B, n_entity) and scores.dtype == jnp.float32
    assert bool(jnp.all(jnp.isfinite(scores)))
    print("KERNEL_OK")
</pallas_src>

<mosaic_0001>
module attributes {stable_mosaic.version = 11 : i64} {
  func.func @rgcn_kernel(%arg0: i32, %arg1: i32, %arg2: memref<256x128xbf16, #tpu.memory_space<vmem>>, %arg3: memref<128x128xbf16, #tpu.memory_space<vmem>>, %arg4: memref<1x128x256xbf16, #tpu.memory_space<vmem>>, %arg5: memref<512x256xbf16, #tpu.memory_space<vmem>>, %arg6: memref<128x256xbf16, #tpu.memory_space<vmem>>, %arg7: memref<1x256xf32, #tpu.memory_space<vmem>>, %arg8: memref<128x256xf32, #tpu.memory_space<vmem>>, %arg9: memref<128x512xbf16, #tpu.memory_space<vmem>>) attributes {dimension_semantics = [#tpu.dimension_semantics<parallel>, #tpu.dimension_semantics<arbitrary>], iteration_bounds = array<i64: 2, 4>, scalar_prefetch = 0 : i64, scratch_operands = 1 : i64, tpu.core_type = #tpu.core_type<tc>, window_params = [{pipeline_mode = #tpu.pipeline_mode<synchronous>, transform_indices = @transform_0, window_bounds = array<i64: 256, 128>}, {transform_indices = @transform_1, window_bounds = array<i64: 128, 128>}, {transform_indices = @transform_2, window_bounds = array<i64: 1, 128, 256>}, {pipeline_mode = #tpu.pipeline_mode<synchronous>, transform_indices = @transform_3, window_bounds = array<i64: 512, 256>}, {pipeline_mode = #tpu.pipeline_mode<synchronous>, transform_indices = @transform_4, window_bounds = array<i64: 128, 256>}, {pipeline_mode = #tpu.pipeline_mode<synchronous>, transform_indices = @transform_5, window_bounds = array<i64: 1, 256>}, {transform_indices = @transform_6, window_bounds = array<i64: 128, 256>}]} {
    %c0 = arith.constant 0 : index
    %c0_0 = arith.constant 0 : index
    %c0_1 = arith.constant 0 : index
    %0 = vector.load %arg4[%c0, %c0_0, %c0_1] : memref<1x128x256xbf16, #tpu.memory_space<vmem>>, vector<1x128x256xbf16>
    %1 = vector.shape_cast %0 : vector<1x128x256xbf16> to vector<128x256xbf16>
    %c0_2 = arith.constant 0 : index
    %c0_3 = arith.constant 0 : index
    %2 = vector.load %arg2[%c0_2, %c0_3] : memref<256x128xbf16, #tpu.memory_space<vmem>>, vector<256x128xbf16>
    %cst = arith.constant dense<0.000000e+00> : vector<128x128xf32>
    %3 = tpu.matmul %1, %2, %cst {dimension_numbers = #tpu.dot_dimension_numbers<[1], [0], [0], [1], [0, 0, 1, 1], [], []>} : vector<128x256xbf16>, vector<256x128xbf16>, vector<128x128xf32> -> vector<128x128xf32>
    %c0_i32 = arith.constant 0 : i32
    %4 = arith.cmpi eq, %arg1, %c0_i32 : i32
    %5 = arith.extui %4 : i1 to i32
    %c0_i32_4 = arith.constant 0 : i32
    %6 = arith.cmpi ne, %5, %c0_i32_4 : i32
    scf.if %6 {
      %19 = arith.truncf %3 : vector<128x128xf32> to vector<128x128xbf16>
      %c0_10 = arith.constant 0 : index
      %c0_11 = arith.constant 0 : index
      %20 = vector.load %arg9[%c0_10, %c0_11] : memref<128x512xbf16, #tpu.memory_space<vmem>>, vector<128x128xbf16>
      tpu.vector_store %arg9[%c0_10, %c0_11], %19 {strides = array<i32>} : memref<128x512xbf16, #tpu.memory_space<vmem>>, vector<128x128xbf16>,
    } else {
    }
    %c1_i32 = arith.constant 1 : i32
    %7 = arith.cmpi eq, %arg1, %c1_i32 : i32
    %8 = arith.extui %7 : i1 to i32
    %c0_i32_5 = arith.constant 0 : i32
    %9 = arith.cmpi ne, %8, %c0_i32_5 : i32
    scf.if %9 {
      %19 = arith.truncf %3 : vector<128x128xf32> to vector<128x128xbf16>
      %c0_10 = arith.constant 0 : index
      %c128 = arith.constant 128 : index
      %20 = vector.load %arg9[%c0_10, %c128] : memref<128x512xbf16, #tpu.memory_space<vmem>>, vector<128x128xbf16>
      tpu.vector_store %arg9[%c0_10, %c128], %19 {strides = array<i32>} : memref<128x512xbf16, #tpu.memory_space<vmem>>, vector<128x128xbf16>,
    } else {
    }
    %c2_i32 = arith.constant 2 : i32
    %10 = arith.cmpi eq, %arg1, %c2_i32 : i32
    %11 = arith.extui %10 : i1 to i32
    %c0_i32_6 = arith.constant 0 : i32
    %12 = arith.cmpi ne, %11, %c0_i32_6 : i32
    scf.if %12 {
      %19 = arith.truncf %3 : vector<128x128xf32> to vector<128x128xbf16>
      %c0_10 = arith.constant 0 : index
      %c256 = arith.constant 256 : index
      %20 = vector.load %arg9[%c0_10, %c256] : memref<128x512xbf16, #tpu.memory_space<vmem>>, vector<128x128xbf16>
      tpu.vector_store %arg9[%c0_10, %c256], %19 {strides = array<i32>} : memref<128x512xbf16, #tpu.memory_space<vmem>>, vector<128x128xbf16>,
    } else {
    }
    %c3_i32 = arith.constant 3 : i32
    %13 = arith.cmpi eq, %arg1, %c3_i32 : i32
    %14 = arith.extui %13 : i1 to i32
    %c0_i32_7 = arith.constant 0 : i32
    %15 = arith.cmpi ne, %14, %c0_i32_7 : i32
    scf.if %15 {
      %19 = arith.truncf %3 : vector<128x128xf32> to vector<128x128xbf16>
      %c0_10 = arith.constant 0 : index
      %c384 = arith.constant 384 : index
      %20 = vector.load %arg9[%c0_10, %c384] : memref<128x512xbf16, #tpu.memory_space<vmem>>, vector<128x128xbf16>
      tpu.vector_store %arg9[%c0_10, %c384], %19 {strides = array<i32>} : memref<128x512xbf16, #tpu.memory_space<vmem>>, vector<128x128xbf16>,
    } else {
    }
    %c3_i32_8 = arith.constant 3 : i32
    %16 = arith.cmpi eq, %arg1, %c3_i32_8 : i32
    %17 = arith.extui %16 : i1 to i32
    %c0_i32_9 = arith.constant 0 : i32
    %18 = arith.cmpi ne, %17, %c0_i32_9 : i32
    scf.if %18 {
      %c0_10 = arith.constant 0 : index
      %c0_11 = arith.constant 0 : index
      %19 = vector.load %arg3[%c0_10, %c0_11] : memref<128x128xbf16, #tpu.memory_space<vmem>>, vector<128x128xbf16>
      %c0_12 = arith.constant 0 : index
      %c0_13 = arith.constant 0 : index
      %20 = vector.load %arg6[%c0_12, %c0_13] : memref<128x256xbf16, #tpu.memory_space<vmem>>, vector<128x256xbf16>
      %cst_14 = arith.constant dense<0.000000e+00> : vector<128x256xf32>
      %21 = tpu.matmul %19, %20, %cst_14 {dimension_numbers = #tpu.dot_dimension_numbers<[1], [0], [0], [1], [0, 0, 1, 1], [], []>} : vector<128x128xbf16>, vector<128x256xbf16>, vector<128x256xf32> -> vector<128x256xf32>
      %c0_15 = arith.constant 0 : index
      %c0_16 = arith.constant 0 : index
      %22 = vector.load %arg9[%c0_15, %c0_16] : memref<128x512xbf16, #tpu.memory_space<vmem>>, vector<128x512xbf16>
      %c0_17 = arith.constant 0 : index
      %c0_18 = arith.constant 0 : index
      %23 = vector.load %arg5[%c0_17, %c0_18] : memref<512x256xbf16, #tpu.memory_space<vmem>>, vector<512x256xbf16>
      %cst_19 = arith.constant dense<0.000000e+00> : vector<128x256xf32>
      %24 = tpu.matmul %22, %23, %cst_19 {dimension_numbers = #tpu.dot_dimension_numbers<[1], [0], [0], [1], [0, 0, 1, 1], [], []>} : vector<128x512xbf16>, vector<512x256xbf16>, vector<128x256xf32> -> vector<128x256xf32>
      %25 = arith.addf %21, %24 : vector<128x256xf32>
      %c0_20 = arith.constant 0 : index
      %c0_21 = arith.constant 0 : index
      %26 = vector.load %arg7[%c0_20, %c0_21] : memref<1x256xf32, #tpu.memory_space<vmem>>, vector<1x256xf32>
      %27 = vector.broadcast %26 : vector<1x256xf32> to vector<128x256xf32>
      %28 = arith.addf %25, %27 : vector<128x256xf32>
      %c0_22 = arith.constant 0 : index
      %c0_23 = arith.constant 0 : index
      %29 = vector.load %arg8[%c0_22, %c0_23] : memref<128x256xf32, #tpu.memory_space<vmem>>, vector<128x256xf32>
      tpu.vector_store %arg8[%c0_22, %c0_23], %28 {strides = array<i32>} : memref<128x256xf32, #tpu.memory_space<vmem>>, vector<128x256xf32>,
    } else {
    }
    return
  }
  func.func @transform_0(%arg0: i32, %arg1: i32) -> (i32, i32) {
    %c0_i32 = arith.constant 0 : i32
    %c0_i32_0 = arith.constant 0 : i32
    %c0_i32_1 = arith.constant 0 : i32
    return %c0_i32, %c0_i32_0 : i32, i32
  }
  func.func @transform_1(%arg0: i32, %arg1: i32) -> (i32, i32) {
    %c0_i32 = arith.constant 0 : i32
    %c0_i32_0 = arith.constant 0 : i32
    return %arg0, %c0_i32 : i32, i32
  }
  func.func @transform_2(%arg0: i32, %arg1: i32) -> (i32, i32, i32) {
    %c0_i32 = arith.constant 0 : i32
    %c0_i32_0 = arith.constant 0 : i32
    return %arg1, %arg0, %c0_i32 : i32, i32, i32
  }
  func.func @transform_3(%arg0: i32, %arg1: i32) -> (i32, i32) {
    %c0_i32 = arith.constant 0 : i32
    %c0_i32_0 = arith.constant 0 : i32
    %c0_i32_1 = arith.constant 0 : i32
    return %c0_i32, %c0_i32_0 : i32, i32
  }
  func.func @transform_4(%arg0: i32, %arg1: i32) -> (i32, i32) {
    %c0_i32 = arith.constant 0 : i32
    %c0_i32_0 = arith.constant 0 : i32
    %c0_i32_1 = arith.constant 0 : i32
    return %c0_i32, %c0_i32_0 : i32, i32
  }
  func.func @transform_5(%arg0: i32, %arg1: i32) -> (i32, i32) {
    %c0_i32 = arith.constant 0 : i32
    %c0_i32_0 = arith.constant 0 : i32
    %c0_i32_1 = arith.constant 0 : i32
    return %c0_i32, %c0_i32_0 : i32, i32
  }
  func.func @transform_6(%arg0: i32, %arg1: i32) -> (i32, i32) {
    %c0_i32 = arith.constant 0 : i32
    %c0_i32_0 = arith.constant 0 : i32
    return %arg0, %c0_i32 : i32, i32
  }
}

module attributes {stable_mosaic.version = 11 : i64} {
  func.func @user_kernel(%arg0: i32, %arg1: memref<8x8x256xf32, #tpu.memory_space<vmem>>, %arg2: memref<8x256xf32, #tpu.memory_space<vmem>>, %arg3: memref<8x8xf32, #tpu.memory_space<vmem>>, %arg4: memref<1x256xf32, #tpu.memory_space<vmem>>, %arg5: memref<1x256xf32, #tpu.memory_space<vmem>>, %arg6: memref<256x256xbf16, #tpu.memory_space<vmem>>, %arg7: memref<1x256xf32, #tpu.memory_space<vmem>>, %arg8: memref<128x256xbf16, #tpu.memory_space<vmem>>, %arg9: memref<1x128xf32, #tpu.memory_space<vmem>>, %arg10: memref<8x128xf32, #tpu.memory_space<vmem>>) attributes {dimension_semantics = [#tpu.dimension_semantics<parallel>], iteration_bounds = array<i64: 2>, scalar_prefetch = 0 : i64, scratch_operands = 0 : i64, tpu.core_type = #tpu.core_type<tc>, window_params = [{pipeline_mode = #tpu.pipeline_mode<synchronous>, transform_indices = @transform_0, window_bounds = array<i64: 8, 8, 256>}, {pipeline_mode = #tpu.pipeline_mode<synchronous>, transform_indices = @transform_1, window_bounds = array<i64: 8, 256>}, {pipeline_mode = #tpu.pipeline_mode<synchronous>, transform_indices = @transform_2, window_bounds = array<i64: 8, 8>}, {pipeline_mode = #tpu.pipeline_mode<synchronous>, transform_indices = @transform_3, window_bounds = array<i64: 1, 256>}, {pipeline_mode = #tpu.pipeline_mode<synchronous>, transform_indices = @transform_4, window_bounds = array<i64: 1, 256>}, {pipeline_mode = #tpu.pipeline_mode<synchronous>, transform_indices = @transform_5, window_bounds = array<i64: 256, 256>}, {pipeline_mode = #tpu.pipeline_mode<synchronous>, transform_indices = @transform_6, window_bounds = array<i64: 1, 256>}, {transform_indices = @transform_7, window_bounds = array<i64: 128, 256>}, {transform_indices = @transform_8, window_bounds = array<i64: 1, 128>}, {transform_indices = @transform_9, window_bounds = array<i64: 8, 128>}]} {
    %c0 = arith.constant 0 : index
    %c0_0 = arith.constant 0 : index
    %c0_1 = arith.constant 0 : index
    %0 = vector.load %arg1[%c0, %c0_0, %c0_1] : memref<8x8x256xf32, #tpu.memory_space<vmem>>, vector<8x8x256xf32>
    %c0_2 = arith.constant 0 : index
    %c0_3 = arith.constant 0 : index
    %1 = vector.load %arg2[%c0_2, %c0_3] : memref<8x256xf32, #tpu.memory_space<vmem>>, vector<8x256xf32>
    %2 = vector.shape_cast %1 : vector<8x256xf32> to vector<1x8x256xf32>
    %3 = vector.broadcast %2 : vector<1x8x256xf32> to vector<8x8x256xf32>
    %4 = arith.addf %0, %3 : vector<8x8x256xf32>
    %cst = arith.constant dense<0.000000e+00> : vector<8x8xf32>
    %5 = vector.multi_reduction <add>, %4, %cst [2] : vector<8x8x256xf32> to vector<8x8xf32>
    %6 = vector.shape_cast %5 : vector<8x8xf32> to vector<8x8x1xf32>
    %cst_4 = arith.constant 2.560000e+02 : f32
    %7 = vector.broadcast %cst_4 : f32 to vector<8x8x1xf32>
    %8 = arith.divf %6, %7 : vector<8x8x1xf32>
    %9 = vector.broadcast %8 : vector<8x8x1xf32> to vector<8x8x256xf32>
    %10 = arith.subf %4, %9 : vector<8x8x256xf32>
    %11 = arith.mulf %10, %10 : vector<8x8x256xf32>
    %cst_5 = arith.constant dense<0.000000e+00> : vector<8x8xf32>
    %12 = vector.multi_reduction <add>, %11, %cst_5 [2] : vector<8x8x256xf32> to vector<8x8xf32>
    %13 = vector.shape_cast %12 : vector<8x8xf32> to vector<8x8x1xf32>
    %cst_6 = arith.constant 2.560000e+02 : f32
    %14 = vector.broadcast %cst_6 : f32 to vector<8x8x1xf32>
    %15 = arith.divf %13, %14 : vector<8x8x1xf32>
    %16 = vector.broadcast %8 : vector<8x8x1xf32> to vector<8x8x256xf32>
    %17 = arith.subf %4, %16 : vector<8x8x256xf32>
    %cst_7 = arith.constant 9.99999974E-6 : f32
    %18 = vector.broadcast %cst_7 : f32 to vector<8x8x1xf32>
    %19 = arith.addf %15, %18 : vector<8x8x1xf32>
    %20 = math.rsqrt %19 : vector<8x8x1xf32>
    %21 = vector.broadcast %20 : vector<8x8x1xf32> to vector<8x8x256xf32>
    %22 = arith.mulf %17, %21 : vector<8x8x256xf32>
    %c0_8 = arith.constant 0 : index
    %c0_9 = arith.constant 0 : index
    %23 = vector.load %arg4[%c0_8, %c0_9] : memref<1x256xf32, #tpu.memory_space<vmem>>, vector<1x256xf32>
    %24 = vector.shape_cast %23 : vector<1x256xf32> to vector<1x1x256xf32>
    %25 = vector.broadcast %24 : vector<1x1x256xf32> to vector<8x8x256xf32>
    %26 = arith.mulf %22, %25 : vector<8x8x256xf32>
    %c0_10 = arith.constant 0 : index
    %c0_11 = arith.constant 0 : index
    %27 = vector.load %arg5[%c0_10, %c0_11] : memref<1x256xf32, #tpu.memory_space<vmem>>, vector<1x256xf32>
    %28 = vector.shape_cast %27 : vector<1x256xf32> to vector<1x1x256xf32>
    %29 = vector.broadcast %28 : vector<1x1x256xf32> to vector<8x8x256xf32>
    %30 = arith.addf %26, %29 : vector<8x8x256xf32>
    %31 = vector.shape_cast %30 : vector<8x8x256xf32> to vector<64x256xf32>
    %32 = arith.truncf %31 : vector<64x256xf32> to vector<64x256xbf16>
    %c0_12 = arith.constant 0 : index
    %c0_13 = arith.constant 0 : index
    %33 = vector.load %arg6[%c0_12, %c0_13] : memref<256x256xbf16, #tpu.memory_space<vmem>>, vector<256x256xbf16>
    %cst_14 = arith.constant dense<0.000000e+00> : vector<64x256xf32>
    %34 = tpu.matmul %32, %33, %cst_14 {dimension_numbers = #tpu.dot_dimension_numbers<[1], [0], [0], [1], [0, 0, 1, 1], [], []>} : vector<64x256xbf16>, vector<256x256xbf16>, vector<64x256xf32> -> vector<64x256xf32>
    %35 = math.tanh %34 : vector<64x256xf32>
    %36 = vector.shape_cast %35 : vector<64x256xf32> to vector<8x8x256xf32>
    %c0_15 = arith.constant 0 : index
    %c0_16 = arith.constant 0 : index
    %37 = vector.load %arg7[%c0_15, %c0_16] : memref<1x256xf32, #tpu.memory_space<vmem>>, vector<1x256xf32>
    %38 = vector.shape_cast %37 : vector<1x256xf32> to vector<1x1x256xf32>
    %39 = vector.broadcast %38 : vector<1x1x256xf32> to vector<8x8x256xf32>
    %40 = arith.mulf %36, %39 : vector<8x8x256xf32>
    %cst_17 = arith.constant dense<0.000000e+00> : vector<8x8xf32>
    %41 = vector.multi_reduction <add>, %40, %cst_17 [2] : vector<8x8x256xf32> to vector<8x8xf32>
    %c0_18 = arith.constant 0 : index
    %c0_19 = arith.constant 0 : index
    %42 = vector.load %arg3[%c0_18, %c0_19] : memref<8x8xf32, #tpu.memory_space<vmem>>, vector<8x8xf32>
    %cst_20 = arith.constant 0.000000e+00 : f32
    %43 = vector.broadcast %cst_20 : f32 to vector<8x8xf32>
    %44 = arith.cmpf ogt, %42, %43 : vector<8x8xf32>
    %cst_21 = arith.constant -1.000000e+30 : f32
    %45 = vector.broadcast %cst_21 : f32 to vector<8x8xf32>
    %46 = arith.select %44, %41, %45 : vector<8x8xi1>, vector<8x8xf32>
    %cst_22 = arith.constant dense<0xFF800000> : vector<8xf32>
    %47 = vector.multi_reduction <maximumf>, %46, %cst_22 [1] : vector<8x8xf32> to vector<8xf32>
    %48 = vector.shape_cast %47 : vector<8xf32> to vector<8x1xf32>
    %49 = vector.broadcast %48 : vector<8x1xf32> to vector<8x8xf32>
    %50 = arith.subf %46, %49 : vector<8x8xf32>
    %51 = math.exp %50 : vector<8x8xf32>
    %cst_23 = arith.constant dense<0.000000e+00> : vector<8xf32>
    %52 = vector.multi_reduction <add>, %51, %cst_23 [1] : vector<8x8xf32> to vector<8xf32>
    %53 = vector.shape_cast %52 : vector<8xf32> to vector<8x1xf32>
    %54 = vector.broadcast %53 : vector<8x1xf32> to vector<8x8xf32>
    %55 = arith.divf %51, %54 : vector<8x8xf32>
    %56 = vector.shape_cast %55 : vector<8x8xf32> to vector<8x8x1xf32>
    %57 = vector.broadcast %56 : vector<8x8x1xf32> to vector<8x8x256xf32>
    %58 = arith.mulf %57, %30 : vector<8x8x256xf32>
    %cst_24 = arith.constant dense<0.000000e+00> : vector<8x256xf32>
    %59 = vector.multi_reduction <add>, %58, %cst_24 [1] : vector<8x8x256xf32> to vector<8x256xf32>
    %60 = arith.truncf %59 : vector<8x256xf32> to vector<8x256xbf16>
    %c0_25 = arith.constant 0 : index
    %c0_26 = arith.constant 0 : index
    %61 = vector.load %arg8[%c0_25, %c0_26] : memref<128x256xbf16, #tpu.memory_space<vmem>>, vector<128x256xbf16>
    %cst_27 = arith.constant dense<0.000000e+00> : vector<8x128xf32>
    %62 = tpu.matmul %60, %61, %cst_27 {dimension_numbers = #tpu.dot_dimension_numbers<[1], [1], [0], [0], [0, 0, 1, 0], [], []>} : vector<8x256xbf16>, vector<128x256xbf16>, vector<8x128xf32> -> vector<8x128xf32>
    %c0_28 = arith.constant 0 : index
    %c0_29 = arith.constant 0 : index
    %63 = vector.load %arg9[%c0_28, %c0_29] : memref<1x128xf32, #tpu.memory_space<vmem>>, vector<1x128xf32>
    %64 = vector.broadcast %63 : vector<1x128xf32> to vector<8x128xf32>
    %65 = arith.addf %62, %64 : vector<8x128xf32>
    %c0_30 = arith.constant 0 : index
    %c0_31 = arith.constant 0 : index
    %66 = vector.load %arg10[%c0_30, %c0_31] : memref<8x128xf32, #tpu.memory_space<vmem>>, vector<8x128xf32>
    tpu.vector_store %arg10[%c0_30, %c0_31], %65 {strides = array<i32>} : memref<8x128xf32, #tpu.memory_space<vmem>>, vector<8x128xf32>,
    return
  }
  func.func @transform_0(%arg0: i32) -> (i32, i32, i32) {
    %c0_i32 = arith.constant 0 : i32
    %c0_i32_0 = arith.constant 0 : i32
    %c0_i32_1 = arith.constant 0 : i32
    %c0_i32_2 = arith.constant 0 : i32
    return %c0_i32, %c0_i32_0, %c0_i32_1 : i32, i32, i32
  }
  func.func @transform_1(%arg0: i32) -> (i32, i32) {
    %c0_i32 = arith.constant 0 : i32
    %c0_i32_0 = arith.constant 0 : i32
    %c0_i32_1 = arith.constant 0 : i32
    return %c0_i32, %c0_i32_0 : i32, i32
  }
  func.func @transform_2(%arg0: i32) -> (i32, i32) {
    %c0_i32 = arith.constant 0 : i32
    %c0_i32_0 = arith.constant 0 : i32
    %c0_i32_1 = arith.constant 0 : i32
    return %c0_i32, %c0_i32_0 : i32, i32
  }
  func.func @transform_3(%arg0: i32) -> (i32, i32) {
    %c0_i32 = arith.constant 0 : i32
    %c0_i32_0 = arith.constant 0 : i32
    %c0_i32_1 = arith.constant 0 : i32
    return %c0_i32, %c0_i32_0 : i32, i32
  }
  func.func @transform_4(%arg0: i32) -> (i32, i32) {
    %c0_i32 = arith.constant 0 : i32
    %c0_i32_0 = arith.constant 0 : i32
    %c0_i32_1 = arith.constant 0 : i32
    return %c0_i32, %c0_i32_0 : i32, i32
  }
  func.func @transform_5(%arg0: i32) -> (i32, i32) {
    %c0_i32 = arith.constant 0 : i32
    %c0_i32_0 = arith.constant 0 : i32
    %c0_i32_1 = arith.constant 0 : i32
    return %c0_i32, %c0_i32_0 : i32, i32
  }
  func.func @transform_6(%arg0: i32) -> (i32, i32) {
    %c0_i32 = arith.constant 0 : i32
    %c0_i32_0 = arith.constant 0 : i32
    %c0_i32_1 = arith.constant 0 : i32
    return %c0_i32, %c0_i32_0 : i32, i32
  }
  func.func @transform_7(%arg0: i32) -> (i32, i32) {
    %c0_i32 = arith.constant 0 : i32
    %c0_i32_0 = arith.constant 0 : i32
    return %arg0, %c0_i32 : i32, i32
  }
  func.func @transform_8(%arg0: i32) -> (i32, i32) {
    %c0_i32 = arith.constant 0 : i32
    %c0_i32_0 = arith.constant 0 : i32
    return %c0_i32, %arg0 : i32, i32
  }
  func.func @transform_9(%arg0: i32) -> (i32, i32) {
    %c0_i32 = arith.constant 0 : i32
    %c0_i32_0 = arith.constant 0 : i32
    return %c0_i32, %arg0 : i32, i32
  }
}

</mosaic_0001>

<llo_original>
// kernel: kerl_forward.3
$region0: #{kerl_forward.3}
  #allocation0 [shape = 'u32[]', space=smem, size = 0x4, offset = 0x4, fixed_abs, tag = 'smem constant byte address 0x4 - core index']
  #allocation1 [shape = 'u32[144,128]{1,0:T(1,128)}', space=vmem, size = 0x12000, scoped, tag = 'internal scratch']
  %s0 = inlined_call_operand.vmem [shape: f32[8,8,256], index: 0, kind: input, shape index: {}]
  %s1 = inlined_call_operand.vmem [shape: f32[8,256], index: 1, kind: input, shape index: {}]
  %s2 = inlined_call_operand.vmem [shape: f32[8,8], index: 2, kind: input, shape index: {}]
  %s3 = inlined_call_operand.vmem [shape: f32[1,256], index: 3, kind: input, shape index: {}]
  %s4 = inlined_call_operand.vmem [shape: f32[1,256], index: 4, kind: input, shape index: {}]
  %s5 = inlined_call_operand.vmem [shape: bf16[256,256], index: 5, kind: input, shape index: {}]
  %s6 = inlined_call_operand.vmem [shape: f32[1,256], index: 6, kind: input, shape index: {}]
  %s7 = inlined_call_operand.vmem [shape: bf16[256,256], index: 7, kind: input, shape index: {}]
  %s8 = inlined_call_operand.vmem [shape: f32[1,256], index: 8, kind: input, shape index: {}]
  %s9 = inlined_call_operand.vmem [shape: f32[8,256], index: 9, kind: output, shape index: {}]
  %s10 = sld [smem:[#allocation0]]
  $region69: #{kerl_forward.3} parent=0
    _
  %s12 = ssub.s32 1, %s10
  %s13 = scalar_select 0, %s12, %s10
  loop: start=0, step=1, limit=4
  $region2: #{kerl_forward.3} parent=0 // loop_pre_header
    _
  $region3: #{kerl_forward.3} parent=0 // loop_header
    %s15 = sphi 0, %s19
    %p16 = scmp.ge.s32.totalorder %s15, 4
    %s23 = sphi 0, %s23
    %s25 = sphi 0, %s23
    %s26 = sphi 0, %s25
    %s40 = sphi 0, %s26
    %s44 = sphi 0, %s44
    %s46 = sphi 0, %s44
    %s47 = sphi 0, %s46
    %s61 = sphi 0, %s47
    %s65 = sphi 0, %s65
    %s67 = sphi 0, %s65
    %s68 = sphi 0, %s67
    %s82 = sphi 0, %s68
    %s86 = sphi 0, %s86
    %s88 = sphi 0, %s86
    %s89 = sphi 0, %s88
    %s103 = sphi 0, %s89
    %s107 = sphi 0, %s107
    %s109 = sphi 0, %s107
    %s110 = sphi 0, %s109
    %s124 = sphi 0, %s110
    %s128 = sphi 0, %s128
    %s130 = sphi 0, %s128
    %s131 = sphi 0, %s130
    %s145 = sphi 0, %s131
    %s149 = sphi 0, %s149
    %s151 = sphi 0, %s149
    %s152 = sphi 0, %s151
    %s166 = sphi 0, %s152
    %s172 = sphi 0, %s174
    %s175 = sphi 0, %s172
    %s176 = sphi 0, %s175
    %s192 = sphi 0, %s176
    %s198 = sphi 0, %s200
    %s201 = sphi 0, %s198
    %s202 = sphi 0, %s201
    %s218 = sphi 0, %s202
    %s224 = sphi 0, %s226
    %s227 = sphi 0, %s224
    %s228 = sphi 0, %s227
    %s244 = sphi 0, %s228
  $region4: #{kerl_forward.3} parent=0 // loop_header_branch
    %18 = sbr.rel (%p16) target = $region8
  $region5: #{kerl_forward.3} parent=0 // loop_body
    %s20 = ssub.s32 %s15, 1
    %s21 = ssub.s32 %s15, 2
    %s22 = sadd.s32 %s15, 1
    %s24 = sadd.s32 %s23, 1
    %p27 = scmp.eq.s32.totalorder %s15, 1
    %p28 = scmp.ne.s32.totalorder %s23, %s25
    %p29 = scmp.eq.s32.totalorder %s15, 0
    %p30 = por %p28, %p29
    %p31 = scmp.ne.s32.totalorder %s23, %s25
    %p32 = scmp.eq.s32.totalorder %s20, 1
    %p33 = por %p31, %p32
    %p34 = scmp.ne.s32.totalorder %s25, %s26
    %p35 = scmp.eq.s32.totalorder %s20, 0
    %p36 = por %p34, %p35
    %p37 = scmp.ne.s32.totalorder %s25, %s26
    %p38 = scmp.eq.s32.totalorder %s21, 1
    %p39 = por %p37, %p38
    %p41 = scmp.ne.s32.totalorder %s26, %s40
    %p42 = scmp.eq.s32.totalorder %s21, 0
    %p43 = por %p41, %p42
    %s45 = sadd.s32 %s44, 1
    %p48 = scmp.eq.s32.totalorder %s15, 1
    %p49 = scmp.ne.s32.totalorder %s44, %s46
    %p50 = scmp.eq.s32.totalorder %s15, 0
    %p51 = por %p49, %p50
    %p52 = scmp.ne.s32.totalorder %s44, %s46
    %p53 = scmp.eq.s32.totalorder %s20, 1
    %p54 = por %p52, %p53
    %p55 = scmp.ne.s32.totalorder %s46, %s47
    %p56 = scmp.eq.s32.totalorder %s20, 0
    %p57 = por %p55, %p56
    %p58 = scmp.ne.s32.totalorder %s46, %s47
    %p59 = scmp.eq.s32.totalorder %s21, 1
    %p60 = por %p58, %p59
    %p62 = scmp.ne.s32.totalorder %s47, %s61
    %p63 = scmp.eq.s32.totalorder %s21, 0
    %p64 = por %p62, %p63
    %s66 = sadd.s32 %s65, 1
    %p69 = scmp.eq.s32.totalorder %s15, 1
    %p70 = scmp.ne.s32.totalorder %s65, %s67
    %p71 = scmp.eq.s32.totalorder %s15, 0
    %p72 = por %p70, %p71
    %p73 = scmp.ne.s32.totalorder %s65, %s67
    %p74 = scmp.eq.s32.totalorder %s20, 1
    %p75 = por %p73, %p74
    %p76 = scmp.ne.s32.totalorder %s67, %s68
    %p77 = scmp.eq.s32.totalorder %s20, 0
    %p78 = por %p76, %p77
    %p79 = scmp.ne.s32.totalorder %s67, %s68
    %p80 = scmp.eq.s32.totalorder %s21, 1
    %p81 = por %p79, %p80
    %p83 = scmp.ne.s32.totalorder %s68, %s82
    %p84 = scmp.eq.s32.totalorder %s21, 0
    %p85 = por %p83, %p84
    %s87 = sadd.s32 %s86, 1
    %p90 = scmp.eq.s32.totalorder %s15, 1
    %p91 = scmp.ne.s32.totalorder %s86, %s88
    %p92 = scmp.eq.s32.totalorder %s15, 0
    %p93 = por %p91, %p92
    %p94 = scmp.ne.s32.totalorder %s86, %s88
    %p95 = scmp.eq.s32.totalorder %s20, 1
    %p96 = por %p94, %p95
    %p97 = scmp.ne.s32.totalorder %s88, %s89
    %p98 = scmp.eq.s32.totalorder %s20, 0
    %p99 = por %p97, %p98
    %p100 = scmp.ne.s32.totalorder %s88, %s89
    %p101 = scmp.eq.s32.totalorder %s21, 1
    %p102 = por %p100, %p101
    %p104 = scmp.ne.s32.totalorder %s89, %s103
    %p105 = scmp.eq.s32.totalorder %s21, 0
    %p106 = por %p104, %p105
    %s108 = sadd.s32 %s107, 1
    %p111 = scmp.eq.s32.totalorder %s15, 1
    %p112 = scmp.ne.s32.totalorder %s107, %s109
    %p113 = scmp.eq.s32.totalorder %s15, 0
    %p114 = por %p112, %p113
    %p115 = scmp.ne.s32.totalorder %s107, %s109
    %p116 = scmp.eq.s32.totalorder %s20, 1
    %p117 = por %p115, %p116
    %p118 = scmp.ne.s32.totalorder %s109, %s110
    %p119 = scmp.eq.s32.totalorder %s20, 0
    %p120 = por %p118, %p119
    %p121 = scmp.ne.s32.totalorder %s109, %s110
    %p122 = scmp.eq.s32.totalorder %s21, 1
    %p123 = por %p121, %p122
    %p125 = scmp.ne.s32.totalorder %s110, %s124
    %p126 = scmp.eq.s32.totalorder %s21, 0
    %p127 = por %p125, %p126
    %s129 = sadd.s32 %s128, 1
    %p132 = scmp.eq.s32.totalorder %s15, 1
    %p133 = scmp.ne.s32.totalorder %s128, %s130
    %p134 = scmp.eq.s32.totalorder %s15, 0
    %p135 = por %p133, %p134
    %p136 = scmp.ne.s32.totalorder %s128, %s130
    %p137 = scmp.eq.s32.totalorder %s20, 1
    %p138 = por %p136, %p137
    %p139 = scmp.ne.s32.totalorder %s130, %s131
    %p140 = scmp.eq.s32.totalorder %s20, 0
    %p141 = por %p139, %p140
    %p142 = scmp.ne.s32.totalorder %s130, %s131
    %p143 = scmp.eq.s32.totalorder %s21, 1
    %p144 = por %p142, %p143
    %p146 = scmp.ne.s32.totalorder %s131, %s145
    %p147 = scmp.eq.s32.totalorder %s21, 0
    %p148 = por %p146, %p147
    %s150 = sadd.s32 %s149, 1
    %p153 = scmp.eq.s32.totalorder %s15, 1
    %p154 = scmp.ne.s32.totalorder %s149, %s151
    %p155 = scmp.eq.s32.totalorder %s15, 0
    %p156 = por %p154, %p155
    %p157 = scmp.ne.s32.totalorder %s149, %s151
    %p158 = scmp.eq.s32.totalorder %s20, 1
    %p159 = por %p157, %p158
    %p160 = scmp.ne.s32.totalorder %s151, %s152
    %p161 = scmp.eq.s32.totalorder %s20, 0
    %p162 = por %p160, %p161
    %p163 = scmp.ne.s32.totalorder %s151, %s152
    %p164 = scmp.eq.s32.totalorder %s21, 1
    %p165 = por %p163, %p164
    %p167 = scmp.ne.s32.totalorder %s152, %s166
    %p168 = scmp.eq.s32.totalorder %s21, 0
    %p169 = por %p167, %p168
    %s170 = ssub.s32 %s15, %s22
    %p171 = scmp.eq.s32.totalorder %s170, 0
    %s173 = sadd.s32 %s172, 1
    %s174 = scalar_select %p171, %s172, %s173
    %p177 = pneg %p171
    %p178 = scmp.eq.s32.totalorder %s15, 1
    %p179 = por %p177, %p178
    %p180 = scmp.ne.s32.totalorder %s172, %s175
    %p181 = scmp.eq.s32.totalorder %s15, 0
    %p182 = por %p180, %p181
    %p183 = scmp.ne.s32.totalorder %s172, %s175
    %p184 = scmp.eq.s32.totalorder %s20, 1
    %p185 = por %p183, %p184
    %p186 = scmp.ne.s32.totalorder %s175, %s176
    %p187 = scmp.eq.s32.totalorder %s20, 0
    %p188 = por %p186, %p187
    %p189 = scmp.ne.s32.totalorder %s175, %s176
    %p190 = scmp.eq.s32.totalorder %s21, 1
    %p191 = por %p189, %p190
    %p193 = scmp.ne.s32.totalorder %s176, %s192
    %p194 = scmp.eq.s32.totalorder %s21, 0
    %p195 = por %p193, %p194
    %s196 = ssub.s32 %s15, %s22
    %p197 = scmp.eq.s32.totalorder %s196, 0
    %s199 = sadd.s32 %s198, 1
    %s200 = scalar_select %p197, %s198, %s199
    %p203 = pneg %p197
    %p204 = scmp.eq.s32.totalorder %s15, 1
    %p205 = por %p203, %p204
    %p206 = scmp.ne.s32.totalorder %s198, %s201
    %p207 = scmp.eq.s32.totalorder %s15, 0
    %p208 = por %p206, %p207
    %p209 = scmp.ne.s32.totalorder %s198, %s201
    %p210 = scmp.eq.s32.totalorder %s20, 1
    %p211 = por %p209, %p210
    %p212 = scmp.ne.s32.totalorder %s201, %s202
    %p213 = scmp.eq.s32.totalorder %s20, 0
    %p214 = por %p212, %p213
    %p215 = scmp.ne.s32.totalorder %s201, %s202
    %p216 = scmp.eq.s32.totalorder %s21, 1
    %p217 = por %p215, %p216
    %p219 = scmp.ne.s32.totalorder %s202, %s218
    %p220 = scmp.eq.s32.totalorder %s21, 0
    %p221 = por %p219, %p220
    %s222 = ssub.s32 %s15, %s22
    %p223 = scmp.eq.s32.totalorder %s222, 0
    %s225 = sadd.s32 %s224, 1
    %s226 = scalar_select %p223, %s224, %s225
    %p229 = pneg %p223
    %p230 = scmp.eq.s32.totalorder %s15, 1
    %p231 = por %p229, %p230
    %p232 = scmp.ne.s32.totalorder %s224, %s227
    %p233 = scmp.eq.s32.totalorder %s15, 0
    %p234 = por %p232, %p233
    %p235 = scmp.ne.s32.totalorder %s224, %s227
    %p236 = scmp.eq.s32.totalorder %s20, 1
    %p237 = por %p235, %p236
    %p238 = scmp.ne.s32.totalorder %s227, %s228
    %p239 = scmp.eq.s32.totalorder %s20, 0
    %p240 = por %p238, %p239
    %p241 = scmp.ne.s32.totalorder %s227, %s228
    %p242 = scmp.eq.s32.totalorder %s21, 1
    %p243 = por %p241, %p242
    %p245 = scmp.ne.s32.totalorder %s228, %s244
    %p246 = scmp.eq.s32.totalorder %s21, 0
    %p247 = por %p245, %p246
    %p248 = scmp.le.s32.totalorder 1, %s15
    %p249 = scmp.lt.s32.totalorder %s15, 3
    %p250 = pnand %p248, %p249
    %p251 = pneg %p250
    // Predicated region
    $region9: #{kerl_forward.3} parent=5 // pred_check
      _
    $region10: #{kerl_forward.3} parent=5 // pred_check_branch
      %253 = sbr.rel (%p250) target = $region12
    $region11: #{kerl_forward.3} parent=5 // pred_region
      %s254 = ssub.s32 %s15, 1
      // Predicated region
      $region13: #{kerl_forward.3} parent=11 // pred_check
        %p255 = pneg %p36
      $region14: #{kerl_forward.3} parent=11 // pred_check_branch
        %257 = sbr.rel (%p255) target = $region16
      $region15: #{kerl_forward.3} parent=11 // pred_region
        _
      $region16: #{kerl_forward.3} parent=11 // pred_fallthru
        _
      // Predicated region
      $region17: #{kerl_forward.3} parent=11 // pred_check
        %p258 = pneg %p57
      $region18: #{kerl_forward.3} parent=11 // pred_check_branch
        %260 = sbr.rel (%p258) target = $region20
      $region19: #{kerl_forward.3} parent=11 // pred_region
        _
      $region20: #{kerl_forward.3} parent=11 // pred_fallthru
        _
      // Predicated region
      $region21: #{kerl_forward.3} parent=11 // pred_check
        %p261 = pneg %p78
      $region22: #{kerl_forward.3} parent=11 // pred_check_branch
        %263 = sbr.rel (%p261) target = $region24
      $region23: #{kerl_forward.3} parent=11 // pred_region
        _
      $region24: #{kerl_forward.3} parent=11 // pred_fallthru
        _
      // Predicated region
      $region25: #{kerl_forward.3} parent=11 // pred_check
        %p264 = pneg %p99
      $region26: #{kerl_forward.3} parent=11 // pred_check_branch
        %266 = sbr.rel (%p264) target = $region28
      $region27: #{kerl_forward.3} parent=11 // pred_region
        _
      $region28: #{kerl_forward.3} parent=11 // pred_fallthru
        _
      // Predicated region
      $region29: #{kerl_forward.3} parent=11 // pred_check
        %p267 = pneg %p120
      $region30: #{kerl_forward.3} parent=11 // pred_check_branch
        %269 = sbr.rel (%p267) target = $region32
      $region31: #{kerl_forward.3} parent=11 // pred_region
        _
      $region32: #{kerl_forward.3} parent=11 // pred_fallthru
        _
      // Predicated region
      $region33: #{kerl_forward.3} parent=11 // pred_check
        %p270 = pneg %p141
      $region34: #{kerl_forward.3} parent=11 // pred_check_branch
        %272 = sbr.rel (%p270) target = $region36
      $region35: #{kerl_forward.3} parent=11 // pred_region
        _
      $region36: #{kerl_forward.3} parent=11 // pred_fallthru
        _
      // Predicated region
      $region37: #{kerl_forward.3} parent=11 // pred_check
        %p273 = pneg %p162
      $region38: #{kerl_forward.3} parent=11 // pred_check_branch
        %275 = sbr.rel (%p273) target = $region40
      $region39: #{kerl_forward.3} parent=11 // pred_region
        _
      $region40: #{kerl_forward.3} parent=11 // pred_fallthru
        _
    $region12: #{kerl_forward.3} parent=5 // pred_fallthru
      _
    %p276 = scmp.lt.s32.totalorder %s15, 2
    // Predicated region
    $region41: #{kerl_forward.3} parent=5 // pred_check
      %p277 = pneg %p276
    $region42: #{kerl_forward.3} parent=5 // pred_check_branch
      %279 = sbr.rel (%p277) target = $region44
    $region43: #{kerl_forward.3} parent=5 // pred_region
      // Predicated region
      $region45: #{kerl_forward.3} parent=43 // pred_check
        %p280 = pneg %p182
      $region46: #{kerl_forward.3} parent=43 // pred_check_branch
        %282 = sbr.rel (%p280) target = $region48
      $region47: #{kerl_forward.3} parent=43 // pred_region
        %s283 = smul.u32 16, %s15
        %p284 = scmp.lt.s32.totalorder %s283, 31
        %s285 = scalar_select %p284, %s283, 31
        %s286 = smul.addr %s285, 2
        %s287 = smul.addr %s286, 4
        %s288 = scalar_lea.vmem %s7, %s287
        %s289 = smul.u32 16, %s15
      $region48: #{kerl_forward.3} parent=43 // pred_fallthru
        _
      // Predicated region
      $region49: #{kerl_forward.3} parent=43 // pred_check
        %p290 = pneg %p208
      $region50: #{kerl_forward.3} parent=43 // pred_check_branch
        %292 = sbr.rel (%p290) target = $region52
      $region51: #{kerl_forward.3} parent=43 // pred_region
        %p293 = scmp.lt.s32.totalorder %s15, 1
        %s294 = scalar_select %p293, %s15, 1
        %s295 = scalar_lea.vmem %s8, %s294
      $region52: #{kerl_forward.3} parent=43 // pred_fallthru
        _
    $region44: #{kerl_forward.3} parent=5 // pred_fallthru
      _
    %p296 = scmp.le.s32.totalorder 1, %s15
    %p297 = scmp.lt.s32.totalorder %s15, 3
    %p298 = pnand %p296, %p297
    %p299 = pneg %p298
    // Predicated region
    $region53: #{kerl_forward.3} parent=5 // pred_check
      _
    $region54: #{kerl_forward.3} parent=5 // pred_check_branch
      %301 = sbr.rel (%p298) target = $region56
    $region55: #{kerl_forward.3} parent=5 // pred_region
      %s302 = ssub.s32 %s15, 1
      %p303 = pneg %p36
      %p304 = pneg %p33
      %p305 = pneg %p57
      %p306 = pneg %p54
      %p307 = pneg %p78
      %p308 = pneg %p75
      %p309 = pneg %p99
      %p310 = pneg %p96
      %p311 = pneg %p120
      %p312 = pneg %p117
      %p313 = pneg %p141
      %p314 = pneg %p138
      %p315 = pneg %p162
      %p316 = pneg %p159
      %s317 = smul.u32 16, %s20
      %p318 = scmp.lt.s32.totalorder %s317, 31
      %s319 = scalar_select %p318, %s317, 31
      %s320 = smul.addr %s319, 2
      %s321 = smul.addr %s320, 4
      %s322 = scalar_lea.vmem %s7, %s321
      %p323 = pneg %p188
      %p324 = pneg %p185
      %p325 = scmp.lt.s32.totalorder %s20, 1
      %s326 = scalar_select %p325, %s20, 1
      %s327 = scalar_lea.vmem %s8, %s326
      %p328 = pneg %p214
      %p329 = pneg %p211
      %p330 = pneg %p240
      %p331 = pneg %p237
      %p332 = scmp.lt.s32.totalorder %s20, 1
      %s333 = scalar_select %p332, %s20, 1
      %s334 = smul.addr %s333, 8
      %s335 = scalar_lea.vmem %s9, %s334
      %s336 = smul.u32 16, %s20
      %p337 = scmp.lt.s32.totalorder %s336, 31
      %s338 = scalar_select %p337, %s336, 31
      %s339 = smul.addr %s338, 2
      %s340 = smul.addr %s339, 4
      %s341 = scalar_lea.vmem %s7, %s340
      %s342 = smul.u32 16, %s20
      %p343 = scmp.lt.s32.totalorder %s20, 1
      %s344 = scalar_select %p343, %s20, 1
      %s345 = scalar_lea.vmem %s8, %s344
      %p346 = scmp.lt.s32.totalorder %s20, 1
      %s347 = scalar_select %p346, %s20, 1
      %s348 = smul.addr %s347, 8
      %s349 = scalar_lea.vmem %s9, %s348
      %v351 = vld [vmem:[%s0] sm:$0xff]
      %v352 = vld [vmem:[%s0 + $0x8] sm:$0xff]
      %v353 = vld [vmem:[%s0 + $0x10] sm:$0xff]
      %v354 = vld [vmem:[%s0 + $0x18] sm:$0xff]
      %v355 = vld [vmem:[%s0 + $0x20] sm:$0xff]
      %v356 = vld [vmem:[%s0 + $0x28] sm:$0xff]
      %v357 = vld [vmem:[%s0 + $0x30] sm:$0xff]
      %v358 = vld [vmem:[%s0 + $0x38] sm:$0xff]
      %v359 = vld [vmem:[%s0 + $0x40] sm:$0xff]
      %v360 = vld [vmem:[%s0 + $0x48] sm:$0xff]
      %v361 = vld [vmem:[%s0 + $0x50] sm:$0xff]
      %v362 = vld [vmem:[%s0 + $0x58] sm:$0xff]
      %v363 = vld [vmem:[%s0 + $0x60] sm:$0xff]
      %v364 = vld [vmem:[%s0 + $0x68] sm:$0xff]
      %v365 = vld [vmem:[%s0 + $0x70] sm:$0xff]
      %v366 = vld [vmem:[%s0 + $0x78] sm:$0xff]
      %v367 = vld [vmem:[%s1] sm:$0xff]
      %v368 = vld [vmem:[%s1 + $0x8] sm:$0xff]
      %v369 = vadd.f32 %v351, %v367
      %v370 = vadd.f32 %v352, %v368
      %v371 = vadd.f32 %v353, %v367
      %v372 = vadd.f32 %v354, %v368
      %v373 = vadd.f32 %v355, %v367
      %v374 = vadd.f32 %v356, %v368
      %v375 = vadd.f32 %v357, %v367
      %v376 = vadd.f32 %v358, %v368
      %v377 = vadd.f32 %v359, %v367
      %v378 = vadd.f32 %v360, %v368
      %v379 = vadd.f32 %v361, %v367
      %v380 = vadd.f32 %v362, %v368
      %v381 = vadd.f32 %v363, %v367
      %v382 = vadd.f32 %v364, %v368
      %v383 = vadd.f32 %v365, %v367
      %v384 = vadd.f32 %v366, %v368
      %v385 = vadd.f32 %v369, %v370
      %386 = vadd.xlane.f32.xlu0 %v385
      %v387 = vpop.xlane.xlu0 %386
      %v388 = vadd.f32 %v371, %v372
      %389 = vadd.xlane.f32.xlu0 %v388
      %v390 = vpop.xlane.xlu0 %389
      %v391 = vadd.f32 %v373, %v374
      %392 = vadd.xlane.f32.xlu0 %v391
      %v393 = vpop.xlane.xlu0 %392
      %v394 = vadd.f32 %v375, %v376
      %395 = vadd.xlane.f32.xlu0 %v394
      %v396 = vpop.xlane.xlu0 %395
      %v397 = vadd.f32 %v377, %v378
      %398 = vadd.xlane.f32.xlu0 %v397
      %v399 = vpop.xlane.xlu0 %398
      %v400 = vadd.f32 %v379, %v380
      %401 = vadd.xlane.f32.xlu0 %v400
      %v402 = vpop.xlane.xlu0 %401
      %v403 = vadd.f32 %v381, %v382
      %404 = vadd.xlane.f32.xlu0 %v403
      %v405 = vpop.xlane.xlu0 %404
      %v406 = vadd.f32 %v383, %v384
      %407 = vadd.xlane.f32.xlu0 %v406
      %v408 = vpop.xlane.xlu0 %407
      %v409 = vrcp.pop 256.0
      %v410 = vmul.f32 %v387, %v409
      %v411 = vmul.f32 %v390, %v409
      %v412 = vmul.f32 %v393, %v409
      %v413 = vmul.f32 %v396, %v409
      %v414 = vmul.f32 %v399, %v409
      %v415 = vmul.f32 %v402, %v409
      %v416 = vmul.f32 %v405, %v409
      %v417 = vmul.f32 %v408, %v409
      %v418 = vsub.f32 %v369, %v410
      %v419 = vsub.f32 %v370, %v410
      %v420 = vsub.f32 %v371, %v411
      %v421 = vsub.f32 %v372, %v411
      %v422 = vsub.f32 %v373, %v412
      %v423 = vsub.f32 %v374, %v412
      %v424 = vsub.f32 %v375, %v413
      %v425 = vsub.f32 %v376, %v413
      %v426 = vsub.f32 %v377, %v414
      %v427 = vsub.f32 %v378, %v414
      %v428 = vsub.f32 %v379, %v415
      %v429 = vsub.f32 %v380, %v415
      %v430 = vsub.f32 %v381, %v416
      %v431 = vsub.f32 %v382, %v416
      %v432 = vsub.f32 %v383, %v417
      %v433 = vsub.f32 %v384, %v417
      %v434 = vmul.f32 %v418, %v418
      %v435 = vmul.f32 %v419, %v419
      %v436 = vmul.f32 %v420, %v420
      %v437 = vmul.f32 %v421, %v421
      %v438 = vmul.f32 %v422, %v422
      %v439 = vmul.f32 %v423, %v423
      %v440 = vmul.f32 %v424, %v424
      %v441 = vmul.f32 %v425, %v425
      %v442 = vmul.f32 %v426, %v426
      %v443 = vmul.f32 %v427, %v427
      %v444 = vmul.f32 %v428, %v428
      %v445 = vmul.f32 %v429, %v429
      %v446 = vmul.f32 %v430, %v430
      %v447 = vmul.f32 %v431, %v431
      %v448 = vmul.f32 %v432, %v432
      %v449 = vmul.f32 %v433, %v433
      %v450 = vadd.f32 %v434, %v435
      %451 = vadd.xlane.f32.xlu0 %v450
      %v452 = vpop.xlane.xlu0 %451
      %v453 = vadd.f32 %v436, %v437
      %454 = vadd.xlane.f32.xlu0 %v453
      %v455 = vpop.xlane.xlu0 %454
      %v456 = vadd.f32 %v438, %v439
      %457 = vadd.xlane.f32.xlu0 %v456
      %v458 = vpop.xlane.xlu0 %457
      %v459 = vadd.f32 %v440, %v441
      %460 = vadd.xlane.f32.xlu0 %v459
      %v461 = vpop.xlane.xlu0 %460
      %v462 = vadd.f32 %v442, %v443
      %463 = vadd.xlane.f32.xlu0 %v462
      %v464 = vpop.xlane.xlu0 %463
      %v465 = vadd.f32 %v444, %v445
      %466 = vadd.xlane.f32.xlu0 %v465
      %v467 = vpop.xlane.xlu0 %466
      %v468 = vadd.f32 %v446, %v447
      %469 = vadd.xlane.f32.xlu0 %v468
      %v470 = vpop.xlane.xlu0 %469
      %v471 = vadd.f32 %v448, %v449
      %472 = vadd.xlane.f32.xlu0 %v471
      %v473 = vpop.xlane.xlu0 %472
      %v474 = vmul.f32 %v452, %v409
      %v475 = vmul.f32 %v455, %v409
      %v476 = vmul.f32 %v458, %v409
      %v477 = vmul.f32 %v461, %v409
      %v478 = vmul.f32 %v464, %v409
      %v479 = vmul.f32 %v467, %v409
      %v480 = vmul.f32 %v470, %v409
      %v481 = vmul.f32 %v473, %v409
      %v482 = vadd.f32 %v474, 1e-05
      %v483 = vadd.f32 %v475, 1e-05
      %v484 = vadd.f32 %v476, 1e-05
      %v485 = vadd.f32 %v477, 1e-05
      %v486 = vadd.f32 %v478, 1e-05
      %v487 = vadd.f32 %v479, 1e-05
      %v488 = vadd.f32 %v480, 1e-05
      %v489 = vadd.f32 %v481, 1e-05
      %v490 = vrsqrt.pop %v482
      %v491 = vrsqrt.pop %v483
      %v492 = vrsqrt.pop %v484
      %v493 = vrsqrt.pop %v485
      %v494 = vrsqrt.pop %v486
      %v495 = vrsqrt.pop %v487
      %v496 = vrsqrt.pop %v488
      %v497 = vrsqrt.pop %v489
      %v498 = vmul.f32 %v418, %v490
      %v499 = vmul.f32 %v419, %v490
      %v500 = vmul.f32 %v420, %v491
      %v501 = vmul.f32 %v421, %v491
      %v502 = vmul.f32 %v422, %v492
      %v503 = vmul.f32 %v423, %v492
      %v504 = vmul.f32 %v424, %v493
      %v505 = vmul.f32 %v425, %v493
      %v506 = vmul.f32 %v426, %v494
      %v507 = vmul.f32 %v427, %v494
      %v508 = vmul.f32 %v428, %v495
      %v509 = vmul.f32 %v429, %v495
      %v510 = vmul.f32 %v430, %v496
      %v511 = vmul.f32 %v431, %v496
      %v512 = vmul.f32 %v432, %v497
      %v513 = vmul.f32 %v433, %v497
      %v514 = vld [vmem:[%s3] sm:$0x3]
      %v516 = vlaneseq
      %v517 = vshrl.u32 %v516, 7
      %v518 = vsub.s32 0, %v517
      %v519 = vrot.slane %v514, %v518
      %v520 = vlaneseq
      %v521 = vshrl.u32 %v520, 7
      %v522 = vsub.s32 1, %v521
      %v523 = vrot.slane %v514, %v522
      %v526 = vmul.f32 %v498, %v519
      %v527 = vmul.f32 %v499, %v523
      %v528 = vmul.f32 %v500, %v519
      %v529 = vmul.f32 %v501, %v523
      %v530 = vmul.f32 %v502, %v519
      %v531 = vmul.f32 %v503, %v523
      %v532 = vmul.f32 %v504, %v519
      %v533 = vmul.f32 %v505, %v523
      %v534 = vmul.f32 %v506, %v519
      %v535 = vmul.f32 %v507, %v523
      %v536 = vmul.f32 %v508, %v519
      %v537 = vmul.f32 %v509, %v523
      %v538 = vmul.f32 %v510, %v519
      %v539 = vmul.f32 %v511, %v523
      %v540 = vmul.f32 %v512, %v519
      %v541 = vmul.f32 %v513, %v523
      %v542 = vld [vmem:[%s4] sm:$0x3]
      %v544 = vlaneseq
      %v545 = vshrl.u32 %v544, 7
      %v546 = vsub.s32 0, %v545
      %v547 = vrot.slane %v542, %v546
      %v548 = vlaneseq
      %v549 = vshrl.u32 %v548, 7
      %v550 = vsub.s32 1, %v549
      %v551 = vrot.slane %v542, %v550
      %v554 = vadd.f32 %v526, %v547
      %v555 = vadd.f32 %v527, %v551
      %v556 = vadd.f32 %v528, %v547
      %v557 = vadd.f32 %v529, %v551
      %v558 = vadd.f32 %v530, %v547
      %v559 = vadd.f32 %v531, %v551
      %v560 = vadd.f32 %v532, %v547
      %v561 = vadd.f32 %v533, %v551
      %v562 = vadd.f32 %v534, %v547
      %v563 = vadd.f32 %v535, %v551
      %v564 = vadd.f32 %v536, %v547
      %v565 = vadd.f32 %v537, %v551
      %v566 = vadd.f32 %v538, %v547
      %v567 = vadd.f32 %v539, %v551
      %v568 = vadd.f32 %v540, %v547
      %v569 = vadd.f32 %v541, %v551
      %v570 = vpack.c.bf16 %v556, %v554
      %v571 = vpack.c.bf16 %v557, %v555
      %v572 = vpack.c.bf16 %v560, %v558
      %v573 = vpack.c.bf16 %v561, %v559
      %v574 = vpack.c.bf16 %v564, %v562
      %v575 = vpack.c.bf16 %v565, %v563
      %v576 = vpack.c.bf16 %v568, %v566
      %v577 = vpack.c.bf16 %v569, %v567
      %v578 = vld [vmem:[%s5] sm:$0xff]
      %v579 = vld [vmem:[%s5 + $0x8] sm:$0xff]
      %v580 = vld [vmem:[%s5 + $0x10] sm:$0xff]
      %v581 = vld [vmem:[%s5 + $0x18] sm:$0xff]
      %v582 = vld [vmem:[%s5 + $0x20] sm:$0xff]
      %v583 = vld [vmem:[%s5 + $0x28] sm:$0xff]
      %v584 = vld [vmem:[%s5 + $0x30] sm:$0xff]
      %v585 = vld [vmem:[%s5 + $0x38] sm:$0xff]
      %v586 = vld [vmem:[%s5 + $0x40] sm:$0xff]
      %v587 = vld [vmem:[%s5 + $0x48] sm:$0xff]
      %v588 = vld [vmem:[%s5 + $0x50] sm:$0xff]
      %v589 = vld [vmem:[%s5 + $0x58] sm:$0xff]
      %v590 = vld [vmem:[%s5 + $0x60] sm:$0xff]
      %v591 = vld [vmem:[%s5 + $0x68] sm:$0xff]
      %v592 = vld [vmem:[%s5 + $0x70] sm:$0xff]
      %v593 = vld [vmem:[%s5 + $0x78] sm:$0xff]
      %v594 = vld [vmem:[%s5 + $0x80] sm:$0xff]
      %v595 = vld [vmem:[%s5 + $0x88] sm:$0xff]
      %v596 = vld [vmem:[%s5 + $0x90] sm:$0xff]
      %v597 = vld [vmem:[%s5 + $0x98] sm:$0xff]
      %v598 = vld [vmem:[%s5 + $0xa0] sm:$0xff]
      %v599 = vld [vmem:[%s5 + $0xa8] sm:$0xff]
      %v600 = vld [vmem:[%s5 + $0xb0] sm:$0xff]
      %v601 = vld [vmem:[%s5 + $0xb8] sm:$0xff]
      %v602 = vld [vmem:[%s5 + $0xc0] sm:$0xff]
      %v603 = vld [vmem:[%s5 + $0xc8] sm:$0xff]
      %v604 = vld [vmem:[%s5 + $0xd0] sm:$0xff]
      %v605 = vld [vmem:[%s5 + $0xd8] sm:$0xff]
      %v606 = vld [vmem:[%s5 + $0xe0] sm:$0xff]
      %v607 = vld [vmem:[%s5 + $0xe8] sm:$0xff]
      %v608 = vld [vmem:[%s5 + $0xf0] sm:$0xff]
      %v609 = vld [vmem:[%s5 + $0xf8] sm:$0xff]
      %v642 = vunpack.c.l.b16 %v578
      %v643 = vunpack.c.h.b16 %v578
      %v644 = vunpack.c.l.b16 %v579
      %v645 = vunpack.c.h.b16 %v579
      %v646 = vunpack.c.l.b16 %v580
      %v647 = vunpack.c.h.b16 %v580
      %v648 = vunpack.c.l.b16 %v581
      %v649 = vunpack.c.h.b16 %v581
      %v650 = vunpack.c.l.b16 %v582
      %v651 = vunpack.c.h.b16 %v582
      %v652 = vunpack.c.l.b16 %v583
      %v653 = vunpack.c.h.b16 %v583
      %v654 = vunpack.c.l.b16 %v584
      %v655 = vunpack.c.h.b16 %v584
      %v656 = vunpack.c.l.b16 %v585
      %v657 = vunpack.c.h.b16 %v585
      %v658 = vunpack.c.l.b16 %v586
      %v659 = vunpack.c.h.b16 %v586
      %v660 = vunpack.c.l.b16 %v587
      %v661 = vunpack.c.h.b16 %v587
      %v662 = vunpack.c.l.b16 %v588
      %v663 = vunpack.c.h.b16 %v588
      %v664 = vunpack.c.l.b16 %v589
      %v665 = vunpack.c.h.b16 %v589
      %v666 = vunpack.c.l.b16 %v590
      %v667 = vunpack.c.h.b16 %v590
      %v668 = vunpack.c.l.b16 %v591
      %v669 = vunpack.c.h.b16 %v591
      %v670 = vunpack.c.l.b16 %v592
      %v671 = vunpack.c.h.b16 %v592
      %v672 = vunpack.c.l.b16 %v593
      %v673 = vunpack.c.h.b16 %v593
      %v674 = vunpack.c.l.b16 %v594
      %v675 = vunpack.c.h.b16 %v594
      %v676 = vunpack.c.l.b16 %v595
      %v677 = vunpack.c.h.b16 %v595
      %v678 = vunpack.c.l.b16 %v596
      %v679 = vunpack.c.h.b16 %v596
      %v680 = vunpack.c.l.b16 %v597
      %v681 = vunpack.c.h.b16 %v597
      %v682 = vunpack.c.l.b16 %v598
      %v683 = vunpack.c.h.b16 %v598
      %v684 = vunpack.c.l.b16 %v599
      %v685 = vunpack.c.h.b16 %v599
      %v686 = vunpack.c.l.b16 %v600
      %v687 = vunpack.c.h.b16 %v600
      %v688 = vunpack.c.l.b16 %v601
      %v689 = vunpack.c.h.b16 %v601
      %v690 = vunpack.c.l.b16 %v602
      %v691 = vunpack.c.h.b16 %v602
      %v692 = vunpack.c.l.b16 %v603
      %v693 = vunpack.c.h.b16 %v603
      %v694 = vunpack.c.l.b16 %v604
      %v695 = vunpack.c.h.b16 %v604
      %v696 = vunpack.c.l.b16 %v605
      %v697 = vunpack.c.h.b16 %v605
      %v698 = vunpack.c.l.b16 %v606
      %v699 = vunpack.c.h.b16 %v606
      %v700 = vunpack.c.l.b16 %v607
      %v701 = vunpack.c.h.b16 %v607
      %v702 = vunpack.c.l.b16 %v608
      %v703 = vunpack.c.h.b16 %v608
      %v704 = vunpack.c.l.b16 %v609
      %v705 = vunpack.c.h.b16 %v609
      %v706 = vpack.c.b16 %v644, %v642
      %v707 = vpack.c.b16 %v645, %v643
      %v708 = vpack.c.b16 %v648, %v646
      %v709 = vpack.c.b16 %v649, %v647
      %v710 = vpack.c.b16 %v652, %v650
      %v711 = vpack.c.b16 %v653, %v651
      %v712 = vpack.c.b16 %v656, %v654
      %v713 = vpack.c.b16 %v657, %v655
      %v714 = vpack.c.b16 %v660, %v658
      %v715 = vpack.c.b16 %v661, %v659
      %v716 = vpack.c.b16 %v664, %v662
      %v717 = vpack.c.b16 %v665, %v663
      %v718 = vpack.c.b16 %v668, %v666
      %v719 = vpack.c.b16 %v669, %v667
      %v720 = vpack.c.b16 %v672, %v670
      %v721 = vpack.c.b16 %v673, %v671
      %v722 = vpack.c.b16 %v676, %v674
      %v723 = vpack.c.b16 %v677, %v675
      %v724 = vpack.c.b16 %v680, %v678
      %v725 = vpack.c.b16 %v681, %v679
      %v726 = vpack.c.b16 %v684, %v682
      %v727 = vpack.c.b16 %v685, %v683
      %v728 = vpack.c.b16 %v688, %v686
      %v729 = vpack.c.b16 %v689, %v687
      %v730 = vpack.c.b16 %v692, %v690
      %v731 = vpack.c.b16 %v693, %v691
      %v732 = vpack.c.b16 %v696, %v694
      %v733 = vpack.c.b16 %v697, %v695
      %v734 = vpack.c.b16 %v700, %v698
      %v735 = vpack.c.b16 %v701, %v699
      %v736 = vpack.c.b16 %v704, %v702
      %v737 = vpack.c.b16 %v705, %v703
      %770 = vmatprep.subr.bf16.mxu0 %v707
      %771 = vmatpush1.bf16.msra.mxu0 %v706
      %772 = vmatprep.subr.bf16.mxu0 %v709
      %773 = vmatpush1.bf16.msra.mxu0 %v708
      %774 = vmatprep.subr.bf16.mxu0 %v711
      %775 = vmatpush1.bf16.msra.mxu0 %v710
      %776 = vmatprep.subr.bf16.mxu0 %v713
      %777 = vmatpush1.bf16.msra.mxu0 %v712
      %778 = vmatprep.subr.bf16.mxu0 %v715
      %779 = vmatpush1.bf16.msra.mxu0 %v714
      %780 = vmatprep.subr.bf16.mxu0 %v717
      %781 = vmatpush1.bf16.msra.mxu0 %v716
      %782 = vmatprep.subr.bf16.mxu0 %v719
      %783 = vmatpush1.bf16.msra.mxu0 %v718
      %784 = vmatprep.subr.bf16.mxu0 %v721
      %785 = vmatpush1.bf16.msra.mxu0 %v720
      %786 = vmatprep.subr.bf16.mxu0 %v723
      %787 = vmatpush1.bf16.msra.mxu0 %v722
      %788 = vmatprep.subr.bf16.mxu0 %v725
      %789 = vmatpush1.bf16.msra.mxu0 %v724
      %790 = vmatprep.subr.bf16.mxu0 %v727
      %791 = vmatpush1.bf16.msra.mxu0 %v726
      %792 = vmatprep.subr.bf16.mxu0 %v729
      %793 = vmatpush1.bf16.msra.mxu0 %v728
      %794 = vmatprep.subr.bf16.mxu0 %v731
      %795 = vmatpush1.bf16.msra.mxu0 %v730
      %796 = vmatprep.subr.bf16.mxu0 %v733
      %797 = vmatpush1.bf16.msra.mxu0 %v732
      %798 = vmatprep.subr.bf16.mxu0 %v735
      %799 = vmatpush1.bf16.msra.mxu0 %v734
      %800 = vmatprep.subr.bf16.mxu0 %v737
      %801 = vmatpush1.bf16.msra.mxu0 %v736
      %802 = vmatprep.mubr.bf16.mxu0 %v571
      %803 = vmatmul.mubr.bf16.gmra.mrb[0].mxu0 %v570
      %v804 = vpop.f32.mrb[0].mxu0
      %v805 = vadd.f32 0.0, %v804
      %v806 = vpop.f32.mrb[0].mxu0
      %v807 = vadd.f32 0.0, %v806
      %v808 = vpop.f32.mrb[0].mxu0
      %v809 = vadd.f32 0.0, %v808
      %v810 = vpop.f32.mrb[0].mxu0
      %v811 = vadd.f32 0.0, %v810
      %812 = vmatprep.mubr.bf16.mxu0 %v573
      %813 = vmatmul.mubr.bf16.gmra.mrb[0].mxu0 %v572
      %v814 = vpop.f32.mrb[0].mxu0
      %v815 = vadd.f32 0.0, %v814
      %v816 = vpop.f32.mrb[0].mxu0
      %v817 = vadd.f32 0.0, %v816
      %v818 = vpop.f32.mrb[0].mxu0
      %v819 = vadd.f32 0.0, %v818
      %v820 = vpop.f32.mrb[0].mxu0
      %v821 = vadd.f32 0.0, %v820
      %822 = vmatprep.mubr.bf16.mxu0 %v575
      %823 = vmatmul.mubr.bf16.gmra.mrb[0].mxu0 %v574
      %v824 = vpop.f32.mrb[0].mxu0
      %v825 = vadd.f32 0.0, %v824
      %v826 = vpop.f32.mrb[0].mxu0
      %v827 = vadd.f32 0.0, %v826
      %v828 = vpop.f32.mrb[0].mxu0
      %v829 = vadd.f32 0.0, %v828
      %v830 = vpop.f32.mrb[0].mxu0
      %v831 = vadd.f32 0.0, %v830
      %832 = vmatprep.mubr.bf16.mxu0 %v577
      %833 = vmatmul.mubr.bf16.gmra.mrb[0].mxu0 %v576
      %v834 = vpop.f32.mrb[0].mxu0
      %v835 = vadd.f32 0.0, %v834
      %v836 = vpop.f32.mrb[0].mxu0
      %v837 = vadd.f32 0.0, %v836
      %v838 = vpop.f32.mrb[0].mxu0
      %v839 = vadd.f32 0.0, %v838
      %v840 = vpop.f32.mrb[0].mxu0
      %v841 = vadd.f32 0.0, %v840
      %842 = vdwg.mxu0
      %v843 = vtanh.pop %v805
      %v844 = vtanh.pop %v807
      %v845 = vtanh.pop %v809
      %v846 = vtanh.pop %v811
      %v847 = vtanh.pop %v815
      %v848 = vtanh.pop %v817
      %v849 = vtanh.pop %v819
      %v850 = vtanh.pop %v821
      %v851 = vtanh.pop %v825
      %v852 = vtanh.pop %v827
      %v853 = vtanh.pop %v829
      %v854 = vtanh.pop %v831
      %v855 = vtanh.pop %v835
      %v856 = vtanh.pop %v837
      %v857 = vtanh.pop %v839
      %v858 = vtanh.pop %v841
      %v859 = vld [vmem:[%s6] sm:$0x3]
      %v861 = vlaneseq
      %v862 = vshrl.u32 %v861, 7
      %v863 = vsub.s32 0, %v862
      %v864 = vrot.slane %v859, %v863
      %v865 = vlaneseq
      %v866 = vshrl.u32 %v865, 7
      %v867 = vsub.s32 1, %v866
      %v868 = vrot.slane %v859, %v867
      %v871 = vmul.f32 %v843, %v864
      %v872 = vmul.f32 %v844, %v868
      %v873 = vmul.f32 %v845, %v864
      %v874 = vmul.f32 %v846, %v868
      %v875 = vmul.f32 %v847, %v864
      %v876 = vmul.f32 %v848, %v868
      %v877 = vmul.f32 %v849, %v864
      %v878 = vmul.f32 %v850, %v868
      %v879 = vmul.f32 %v851, %v864
      %v880 = vmul.f32 %v852, %v868
      %v881 = vmul.f32 %v853, %v864
      %v882 = vmul.f32 %v854, %v868
      %v883 = vmul.f32 %v855, %v864
      %v884 = vmul.f32 %v856, %v868
      %v885 = vmul.f32 %v857, %v864
      %v886 = vmul.f32 %v858, %v868
      %v887 = vadd.f32 %v871, %v872
      %888 = vadd.xlane.f32.xlu0 %v887
      %v889 = vpop.xlane.xlu0 %888
      %v890 = vadd.f32 %v873, %v874
      %891 = vadd.xlane.f32.xlu0 %v890
      %v892 = vpop.xlane.xlu0 %891
      %v893 = vadd.f32 %v875, %v876
      %894 = vadd.xlane.f32.xlu0 %v893
      %v895 = vpop.xlane.xlu0 %894
      %v896 = vadd.f32 %v877, %v878
      %897 = vadd.xlane.f32.xlu0 %v896
      %v898 = vpop.xlane.xlu0 %897
      %v899 = vadd.f32 %v879, %v880
      %900 = vadd.xlane.f32.xlu0 %v899
      %v901 = vpop.xlane.xlu0 %900
      %v902 = vadd.f32 %v881, %v882
      %903 = vadd.xlane.f32.xlu0 %v902
      %v904 = vpop.xlane.xlu0 %903
      %v905 = vadd.f32 %v883, %v884
      %906 = vadd.xlane.f32.xlu0 %v905
      %v907 = vpop.xlane.xlu0 %906
      %v908 = vadd.f32 %v885, %v886
      %909 = vadd.xlane.f32.xlu0 %v908
      %v910 = vpop.xlane.xlu0 %909
      %v911 = vld [vmem:[%s2] sm:$0xff]
      %vm912 = vcmp.gt.f32.partialorder %v911, 0.0
      %v921 = vlaneseq
      %v922 = vand.u32 %v921, 127
      %v923 = vlaneseq
      %v924 = vshrl.u32 %v923, 7
      %v925 = vsub.s32 %v922, %v924
      %v926 = vrot.slane %v889, %v925
      %v927 = vlaneseq
      %v928 = vshrl.u32 %v927, 7
      %v929 = vsub.s32 %v922, %v928
      %v930 = vrot.slane %v892, %v929
      %v931 = vlaneseq
      %v932 = vshrl.u32 %v931, 7
      %v933 = vsub.s32 %v922, %v932
      %v934 = vrot.slane %v895, %v933
      %v935 = vlaneseq
      %v936 = vshrl.u32 %v935, 7
      %v937 = vsub.s32 %v922, %v936
      %v938 = vrot.slane %v898, %v937
      %v939 = vlaneseq
      %v940 = vshrl.u32 %v939, 7
      %v941 = vsub.s32 %v922, %v940
      %v942 = vrot.slane %v901, %v941
      %v943 = vlaneseq
      %v944 = vshrl.u32 %v943, 7
      %v945 = vsub.s32 %v922, %v944
      %v946 = vrot.slane %v904, %v945
      %v947 = vlaneseq
      %v948 = vshrl.u32 %v947, 7
      %v949 = vsub.s32 %v922, %v948
      %v950 = vrot.slane %v907, %v949
      %v951 = vlaneseq
      %v952 = vshrl.u32 %v951, 7
      %v953 = vsub.s32 %v922, %v952
      %v954 = vrot.slane %v910, %v953
      %vm955 = vcmask 1041409
      %v956 = vsel %vm955, %v930, %v926
      %vm957 = vcmask 1042434
      %v958 = vsel %vm957, %v934, %v956
      %vm959 = vcmask 1043459
      %v960 = vsel %vm959, %v938, %v958
      %vm961 = vcmask 1044484
      %v962 = vsel %vm961, %v942, %v960
      %vm963 = vcmask 1045509
      %v964 = vsel %vm963, %v946, %v962
      %vm965 = vcmask 1046534
      %v966 = vsel %vm965, %v950, %v964
      %vm967 = vcmask 1047559
      %v968 = vsel %vm967, %v954, %v966
      %v970 = vsel %vm912, %v968, -1e+30
      %vm971 = vcmask 64512
      %v972 = vsel %vm971, %v970, -inf
      %973 = vmax.xlane.f32.xlu0 %v972
      %v974 = vpop.xlane.xlu0 %973
      %v975 = vsub.f32 %v970, %v974
      %v976 = vmul.f32 %v975, 1.442695
      %v977 = vpow.pop %v976
      %v978 = vsel %vm971, %v977, 0.0
      %979 = vadd.xlane.f32.xlu0 %v978
      %v980 = vpop.xlane.xlu0 %979
      %v981 = vrcp.pop %v980
      %v982 = vmul.f32 %v977, %v981
      %v983 = vlaneseq
      %v984 = vshrl.u32 %v983, 7
      %v985 = vsub.s32 0, %v984
      %v986 = vrot.slane %v982, %v985
      %988 = vbcast.lane.b32.xlu0 %v986, 256
      %v989 = vpop.permute.xlu0 %988
      %v990 = vlaneseq
      %v991 = vshrl.u32 %v990, 7
      %v992 = vsub.s32 1, %v991
      %v993 = vrot.slane %v982, %v992
      %995 = vbcast.lane.b32.xlu0 %v993, 256
      %v996 = vpop.permute.xlu0 %995
      %v997 = vlaneseq
      %v998 = vshrl.u32 %v997, 7
      %v999 = vsub.s32 2, %v998
      %v1000 = vrot.slane %v982, %v999
      %1002 = vbcast.lane.b32.xlu0 %v1000, 256
      %v1003 = vpop.permute.xlu0 %1002
      %v1004 = vlaneseq
      %v1005 = vshrl.u32 %v1004, 7
      %v1006 = vsub.s32 3, %v1005
      %v1007 = vrot.slane %v982, %v1006
      %1009 = vbcast.lane.b32.xlu0 %v1007, 256
      %v1010 = vpop.permute.xlu0 %1009
      %v1011 = vlaneseq
      %v1012 = vshrl.u32 %v1011, 7
      %v1013 = vsub.s32 4, %v1012
      %v1014 = vrot.slane %v982, %v1013
      %1016 = vbcast.lane.b32.xlu0 %v1014, 256
      %v1017 = vpop.permute.xlu0 %1016
      %v1018 = vlaneseq
      %v1019 = vshrl.u32 %v1018, 7
      %v1020 = vsub.s32 5, %v1019
      %v1021 = vrot.slane %v982, %v1020
      %1023 = vbcast.lane.b32.xlu0 %v1021, 256
      %v1024 = vpop.permute.xlu0 %1023
      %v1025 = vlaneseq
      %v1026 = vshrl.u32 %v1025, 7
      %v1027 = vsub.s32 6, %v1026
      %v1028 = vrot.slane %v982, %v1027
      %1030 = vbcast.lane.b32.xlu0 %v1028, 256
      %v1031 = vpop.permute.xlu0 %1030
      %v1032 = vlaneseq
      %v1033 = vshrl.u32 %v1032, 7
      %v1034 = vsub.s32 7, %v1033
      %v1035 = vrot.slane %v982, %v1034
      %1037 = vbcast.lane.b32.xlu0 %v1035, 256
      %v1038 = vpop.permute.xlu0 %1037
      %v1039 = vmul.f32 %v989, %v554
      %v1040 = vmul.f32 %v989, %v555
      %v1041 = vmul.f32 %v996, %v556
      %v1042 = vmul.f32 %v996, %v557
      %v1043 = vmul.f32 %v1003, %v558
      %v1044 = vmul.f32 %v1003, %v559
      %v1045 = vmul.f32 %v1010, %v560
      %v1046 = vmul.f32 %v1010, %v561
      %v1047 = vmul.f32 %v1017, %v562
      %v1048 = vmul.f32 %v1017, %v563
      %v1049 = vmul.f32 %v1024, %v564
      %v1050 = vmul.f32 %v1024, %v565
      %v1051 = vmul.f32 %v1031, %v566
      %v1052 = vmul.f32 %v1031, %v567
      %v1053 = vmul.f32 %v1038, %v568
      %v1054 = vmul.f32 %v1038, %v569
      %v1055 = vrot.slane %v1039, 4
      %v1056 = vadd.f32 %v1039, %v1055
      %v1057 = vrot.slane %v1056, 2
      %v1058 = vadd.f32 %v1056, %v1057
      %v1059 = vrot.slane %v1058, 1
      %v1060 = vadd.f32 %v1058, %v1059
      %v1061 = vrot.slane %v1040, 4
      %v1062 = vadd.f32 %v1040, %v1061
      %v1063 = vrot.slane %v1062, 2
      %v1064 = vadd.f32 %v1062, %v1063
      %v1065 = vrot.slane %v1064, 1
      %v1066 = vadd.f32 %v1064, %v1065
      %v1067 = vrot.slane %v1041, 4
      %v1068 = vadd.f32 %v1041, %v1067
      %v1069 = vrot.slane %v1068, 2
      %v1070 = vadd.f32 %v1068, %v1069
      %v1071 = vrot.slane %v1070, 1
      %v1072 = vadd.f32 %v1070, %v1071
      %v1073 = vrot.slane %v1042, 4
      %v1074 = vadd.f32 %v1042, %v1073
      %v1075 = vrot.slane %v1074, 2
      %v1076 = vadd.f32 %v1074, %v1075
      %v1077 = vrot.slane %v1076, 1
      %v1078 = vadd.f32 %v1076, %v1077
      %v1079 = vrot.slane %v1043, 4
      %v1080 = vadd.f32 %v1043, %v1079
      %v1081 = vrot.slane %v1080, 2
      %v1082 = vadd.f32 %v1080, %v1081
      %v1083 = vrot.slane %v1082, 1
      %v1084 = vadd.f32 %v1082, %v1083
      %v1085 = vrot.slane %v1044, 4
      %v1086 = vadd.f32 %v1044, %v1085
      %v1087 = vrot.slane %v1086, 2
      %v1088 = vadd.f32 %v1086, %v1087
      %v1089 = vrot.slane %v1088, 1
      %v1090 = vadd.f32 %v1088, %v1089
      %v1091 = vrot.slane %v1045, 4
      %v1092 = vadd.f32 %v1045, %v1091
      %v1093 = vrot.slane %v1092, 2
      %v1094 = vadd.f32 %v1092, %v1093
      %v1095 = vrot.slane %v1094, 1
      %v1096 = vadd.f32 %v1094, %v1095
      %v1097 = vrot.slane %v1046, 4
      %v1098 = vadd.f32 %v1046, %v1097
      %v1099 = vrot.slane %v1098, 2
      %v1100 = vadd.f32 %v1098, %v1099
      %v1101 = vrot.slane %v1100, 1
      %v1102 = vadd.f32 %v1100, %v1101
      %v1103 = vrot.slane %v1047, 4
      %v1104 = vadd.f32 %v1047, %v1103
      %v1105 = vrot.slane %v1104, 2
      %v1106 = vadd.f32 %v1104, %v1105
      %v1107 = vrot.slane %v1106, 1
      %v1108 = vadd.f32 %v1106, %v1107
      %v1109 = vrot.slane %v1048, 4
      %v1110 = vadd.f32 %v1048, %v1109
      %v1111 = vrot.slane %v1110, 2
      %v1112 = vadd.f32 %v1110, %v1111
      %v1113 = vrot.slane %v1112, 1
      %v1114 = vadd.f32 %v1112, %v1113
      %v1115 = vrot.slane %v1049, 4
      %v1116 = vadd.f32 %v1049, %v1115
      %v1117 = vrot.slane %v1116, 2
      %v1118 = vadd.f32 %v1116, %v1117
      %v1119 = vrot.slane %v1118, 1
      %v1120 = vadd.f32 %v1118, %v1119
      %v1121 = vrot.slane %v1050, 4
      %v1122 = vadd.f32 %v1050, %v1121
      %v1123 = vrot.slane %v1122, 2
      %v1124 = vadd.f32 %v1122, %v1123
      %v1125 = vrot.slane %v1124, 1
      %v1126 = vadd.f32 %v1124, %v1125
      %v1127 = vrot.slane %v1051, 4
      %v1128 = vadd.f32 %v1051, %v1127
      %v1129 = vrot.slane %v1128, 2
      %v1130 = vadd.f32 %v1128, %v1129
      %v1131 = vrot.slane %v1130, 1
      %v1132 = vadd.f32 %v1130, %v1131
      %v1133 = vrot.slane %v1052, 4
      %v1134 = vadd.f32 %v1052, %v1133
      %v1135 = vrot.slane %v1134, 2
      %v1136 = vadd.f32 %v1134, %v1135
      %v1137 = vrot.slane %v1136, 1
      %v1138 = vadd.f32 %v1136, %v1137
      %v1139 = vrot.slane %v1053, 4
      %v1140 = vadd.f32 %v1053, %v1139
      %v1141 = vrot.slane %v1140, 2
      %v1142 = vadd.f32 %v1140, %v1141
      %v1143 = vrot.slane %v1142, 1
      %v1144 = vadd.f32 %v1142, %v1143
      %v1145 = vrot.slane %v1054, 4
      %v1146 = vadd.f32 %v1054, %v1145
      %v1147 = vrot.slane %v1146, 2
      %v1148 = vadd.f32 %v1146, %v1147
      %v1149 = vrot.slane %v1148, 1
      %v1150 = vadd.f32 %v1148, %v1149
      %v1151 = vpack.c.bf16 %v1060, %v1060
      %v1152 = vpack.c.bf16 %v1066, %v1066
      %v1153 = vpack.c.bf16 %v1072, %v1072
      %v1154 = vpack.c.bf16 %v1078, %v1078
      %v1155 = vpack.c.bf16 %v1084, %v1084
      %v1156 = vpack.c.bf16 %v1090, %v1090
      %v1157 = vpack.c.bf16 %v1096, %v1096
      %v1158 = vpack.c.bf16 %v1102, %v1102
      %v1159 = vpack.c.bf16 %v1108, %v1108
      %v1160 = vpack.c.bf16 %v1114, %v1114
      %v1161 = vpack.c.bf16 %v1120, %v1120
      %v1162 = vpack.c.bf16 %v1126, %v1126
      %v1163 = vpack.c.bf16 %v1132, %v1132
      %v1164 = vpack.c.bf16 %v1138, %v1138
      %v1165 = vpack.c.bf16 %v1144, %v1144
      %v1166 = vpack.c.bf16 %v1150, %v1150
      %v1167 = vld [vmem:[%s341] sm:$0xff]
      %v1168 = vld [vmem:[%s341 + $0x8] sm:$0xff]
      %v1169 = vld [vmem:[%s341 + $0x10] sm:$0xff]
      %v1170 = vld [vmem:[%s341 + $0x18] sm:$0xff]
      %v1171 = vld [vmem:[%s341 + $0x20] sm:$0xff]
      %v1172 = vld [vmem:[%s341 + $0x28] sm:$0xff]
      %v1173 = vld [vmem:[%s341 + $0x30] sm:$0xff]
      %v1174 = vld [vmem:[%s341 + $0x38] sm:$0xff]
      %v1175 = vld [vmem:[%s341 + $0x40] sm:$0xff]
      %v1176 = vld [vmem:[%s341 + $0x48] sm:$0xff]
      %v1177 = vld [vmem:[%s341 + $0x50] sm:$0xff]
      %v1178 = vld [vmem:[%s341 + $0x58] sm:$0xff]
      %v1179 = vld [vmem:[%s341 + $0x60] sm:$0xff]
      %v1180 = vld [vmem:[%s341 + $0x68] sm:$0xff]
      %v1181 = vld [vmem:[%s341 + $0x70] sm:$0xff]
      %v1182 = vld [vmem:[%s341 + $0x78] sm:$0xff]
      %v1183 = vld [vmem:[%s345] sm:$0x1]
      %v1185 = vlaneseq
      %v1186 = vshrl.u32 %v1185, 7
      %v1187 = vsub.s32 0, %v1186
      %v1188 = vrot.slane %v1183, %v1187
      %v1206 = vunpack.c.l.b16 %v1151
      %v1207 = vunpack.c.l.b16 %v1152
      %v1208 = vunpack.c.l.b16 %v1153
      %v1209 = vunpack.c.l.b16 %v1154
      %v1210 = vunpack.c.l.b16 %v1155
      %v1211 = vunpack.c.l.b16 %v1156
      %v1212 = vunpack.c.l.b16 %v1157
      %v1213 = vunpack.c.l.b16 %v1158
      %v1214 = vunpack.c.l.b16 %v1159
      %v1215 = vunpack.c.l.b16 %v1160
      %v1216 = vunpack.c.l.b16 %v1161
      %v1217 = vunpack.c.l.b16 %v1162
      %v1218 = vunpack.c.l.b16 %v1163
      %v1219 = vunpack.c.l.b16 %v1164
      %v1220 = vunpack.c.l.b16 %v1165
      %v1221 = vunpack.c.l.b16 %v1166
      %v1222 = vsel %vm955, %v1208, %v1206
      %v1223 = vsel %vm957, %v1210, %v1222
      %v1224 = vsel %vm959, %v1212, %v1223
      %v1225 = vsel %vm961, %v1214, %v1224
      %v1226 = vsel %vm963, %v1216, %v1225
      %v1227 = vsel %vm965, %v1218, %v1226
      %v1228 = vsel %vm967, %v1220, %v1227
      %v1229 = vsel %vm955, %v1209, %v1207
      %v1230 = vsel %vm957, %v1211, %v1229
      %v1231 = vsel %vm959, %v1213, %v1230
      %v1232 = vsel %vm961, %v1215, %v1231
      %v1233 = vsel %vm963, %v1217, %v1232
      %v1234 = vsel %vm965, %v1219, %v1233
      %v1235 = vsel %vm967, %v1221, %v1234
      %v1236 = vpack.c.b16 %v1228, %v1228
      %v1237 = vpack.c.b16 %v1235, %v1235
      %v1256 = vunpack.c.l.b16 %v1167
      %v1257 = vunpack.c.h.b16 %v1167
      %v1258 = vunpack.c.l.b16 %v1168
      %v1259 = vunpack.c.h.b16 %v1168
      %v1260 = vunpack.c.l.b16 %v1169
      %v1261 = vunpack.c.h.b16 %v1169
      %v1262 = vunpack.c.l.b16 %v1170
      %v1263 = vunpack.c.h.b16 %v1170
      %v1264 = vunpack.c.l.b16 %v1171
      %v1265 = vunpack.c.h.b16 %v1171
      %v1266 = vunpack.c.l.b16 %v1172
      %v1267 = vunpack.c.h.b16 %v1172
      %v1268 = vunpack.c.l.b16 %v1173
      %v1269 = vunpack.c.h.b16 %v1173
      %v1270 = vunpack.c.l.b16 %v1174
      %v1271 = vunpack.c.h.b16 %v1174
      %v1272 = vunpack.c.l.b16 %v1175
      %v1273 = vunpack.c.h.b16 %v1175
      %v1274 = vunpack.c.l.b16 %v1176
      %v1275 = vunpack.c.h.b16 %v1176
      %v1276 = vunpack.c.l.b16 %v1177
      %v1277 = vunpack.c.h.b16 %v1177
      %v1278 = vunpack.c.l.b16 %v1178
      %v1279 = vunpack.c.h.b16 %v1178
      %v1280 = vunpack.c.l.b16 %v1179
      %v1281 = vunpack.c.h.b16 %v1179
      %v1282 = vunpack.c.l.b16 %v1180
      %v1283 = vunpack.c.h.b16 %v1180
      %v1284 = vunpack.c.l.b16 %v1181
      %v1285 = vunpack.c.h.b16 %v1181
      %v1286 = vunpack.c.l.b16 %v1182
      %v1287 = vunpack.c.h.b16 %v1182
      %v1288 = vpack.c.b16 %v1258, %v1256
      %v1289 = vpack.c.b16 %v1259, %v1257
      %v1290 = vpack.c.b16 %v1262, %v1260
      %v1291 = vpack.c.b16 %v1263, %v1261
      %v1292 = vpack.c.b16 %v1266, %v1264
      %v1293 = vpack.c.b16 %v1267, %v1265
      %v1294 = vpack.c.b16 %v1270, %v1268
      %v1295 = vpack.c.b16 %v1271, %v1269
      %v1296 = vpack.c.b16 %v1274, %v1272
      %v1297 = vpack.c.b16 %v1275, %v1273
      %v1298 = vpack.c.b16 %v1278, %v1276
      %v1299 = vpack.c.b16 %v1279, %v1277
      %v1300 = vpack.c.b16 %v1282, %v1280
      %v1301 = vpack.c.b16 %v1283, %v1281
      %v1302 = vpack.c.b16 %v1286, %v1284
      %v1303 = vpack.c.b16 %v1287, %v1285
      %1320 = vmatprep.subr.bf16.mxu0 %v1289
      %1321 = vmatpush1.bf16.xpose.msra.mxu0 %v1288
      %1322 = vmatprep.subr.bf16.mxu0 %v1291
      %1323 = vmatpush1.bf16.xpose.msra.mxu0 %v1290
      %1324 = vmatprep.subr.bf16.mxu0 %v1293
      %1325 = vmatpush1.bf16.xpose.msra.mxu0 %v1292
      %1326 = vmatprep.subr.bf16.mxu0 %v1295
      %1327 = vmatpush1.bf16.xpose.msra.mxu0 %v1294
      %1328 = vmatprep.subr.bf16.mxu0 %v1297
      %1329 = vmatpush1.bf16.xpose.msra.mxu0 %v1296
      %1330 = vmatprep.subr.bf16.mxu0 %v1299
      %1331 = vmatpush1.bf16.xpose.msra.mxu0 %v1298
      %1332 = vmatprep.subr.bf16.mxu0 %v1301
      %1333 = vmatpush1.bf16.xpose.msra.mxu0 %v1300
      %1334 = vmatprep.subr.bf16.mxu0 %v1303
      %1335 = vmatpush1.bf16.xpose.msra.mxu0 %v1302
      %1336 = vmatprep.subr.bf16.mxu0 0
      %1337 = vmatpush1.bf16.xpose.msra.mxu0 0
      %1338 = vmatprep.subr.bf16.mxu0 0
      %1339 = vmatpush1.bf16.xpose.msra.mxu0 0
      %1340 = vmatprep.subr.bf16.mxu0 0
      %1341 = vmatpush1.bf16.xpose.msra.mxu0 0
      %1342 = vmatprep.subr.bf16.mxu0 0
      %1343 = vmatpush1.bf16.xpose.msra.mxu0 0
      %1344 = vmatprep.subr.bf16.mxu0 0
      %1345 = vmatpush1.bf16.xpose.msra.mxu0 0
      %1346 = vmatprep.subr.bf16.mxu0 0
      %1347 = vmatpush1.bf16.xpose.msra.mxu0 0
      %1348 = vmatprep.subr.bf16.mxu0 0
      %1349 = vmatpush1.bf16.xpose.msra.mxu0 0
      %1350 = vmatprep.subr.bf16.mxu0 0
      %1351 = vmatpush1.bf16.xpose.msra.mxu0 0
      %1352 = vmatprep.mubr.bf16.mxu0 %v1237
      %1353 = vmatmul.mubr.bf16.gmra.mrb[0].mxu0 %v1236
      %v1354 = vpop.f32.mrb[0].mxu0
      %v1355 = vadd.f32 %v1188, %v1354
      %v1356 = vpop.f32.mrb[0].mxu0
      %v1357 = vpop.f32.mrb[0].mxu0
      %v1358 = vpop.f32.mrb[0].mxu0
      %1359 = vdwg.mxu0
      %1360 = vst [vmem:[%s349] sm:$0xff] %v1355
      %p1361 = scmp.lt.s32.totalorder %s20, 1
      %s1362 = scalar_select %p1361, %s20, 1
      %s1363 = smul.addr %s1362, 8
      %s1364 = scalar_lea.vmem %s9, %s1363
      // Predicated region
      $region57: #{kerl_forward.3} parent=55 // pred_check
        %p1365 = pneg %p237
      $region58: #{kerl_forward.3} parent=55 // pred_check_branch
        %1367 = sbr.rel (%p1365) target = $region60
      $region59: #{kerl_forward.3} parent=55 // pred_region
        _
      $region60: #{kerl_forward.3} parent=55 // pred_fallthru
        _
    $region56: #{kerl_forward.3} parent=5 // pred_fallthru
      _
    %p1368 = scmp.le.s32.totalorder 2, %s15
    // Predicated region
    $region61: #{kerl_forward.3} parent=5 // pred_check
      %p1369 = pneg %p1368
    $region62: #{kerl_forward.3} parent=5 // pred_check_branch
      %1371 = sbr.rel (%p1369) target = $region64
    $region63: #{kerl_forward.3} parent=5 // pred_region
      %s1372 = ssub.s32 %s15, 2
      // Predicated region
      $region65: #{kerl_forward.3} parent=63 // pred_check
        %p1373 = pneg %p243
      $region66: #{kerl_forward.3} parent=63 // pred_check_branch
        %1375 = sbr.rel (%p1373) target = $region68
      $region67: #{kerl_forward.3} parent=63 // pred_region
        %p1376 = scmp.lt.s32.totalorder %s21, 1
        %s1377 = scalar_select %p1376, %s21, 1
        %s1378 = smul.addr %s1377, 8
        %s1379 = scalar_lea.vmem %s9, %s1378
      $region68: #{kerl_forward.3} parent=63 // pred_fallthru
        _
    $region64: #{kerl_forward.3} parent=5 // pred_fallthru
      _
  $region6: #{kerl_forward.3} parent=0 // loop_footer
    %s19 = sadd.s32 1, %s15
  $region7: #{kerl_forward.3} parent=0 // loop_footer_branch
    %14 = sbr.rel target = $region3
  $region8: #{kerl_forward.3} parent=0 // loop_exit
    _

// kernel: kerl_forward.2
$region0: #{kerl_forward.2}
  #allocation0 [shape = 'u32[]', space=smem, size = 0x4, offset = 0x4, fixed_abs, tag = 'smem constant byte address 0x4 - core index']
  #allocation1 [shape = 'u32[144,128]{1,0:T(1,128)}', space=vmem, size = 0x12000, scoped, tag = 'internal scratch']
  #allocation2 [shape = 'bf16[128,512]{1,0:T(16,128)(2,1)}', space=vmem, size = 0x20000, scoped, tag = 'scratch operand']
  %s0 = inlined_call_operand.vmem [shape: bf16[256,128], index: 0, kind: input, shape index: {}, may-alias: {0,1}]
  %s1 = inlined_call_operand.vmem [shape: bf16[256,128], index: 1, kind: input, shape index: {}, may-alias: {0,1}]
  %s2 = inlined_call_operand.vmem [shape: bf16[4,256,256], index: 2, kind: input, shape index: {}]
  %s3 = inlined_call_operand.vmem [shape: bf16[512,256], index: 3, kind: input, shape index: {}]
  %s4 = inlined_call_operand.vmem [shape: bf16[128,256], index: 4, kind: input, shape index: {}]
  %s5 = inlined_call_operand.vmem [shape: f32[1,256], index: 5, kind: input, shape index: {}]
  %s6 = inlined_call_operand.vmem [shape: f32[256,256], index: 6, kind: output, shape index: {}]
  %s7 = sld [smem:[#allocation0]]
  $region73: #{kerl_forward.2} parent=0
    _
  %s9 = ssub.s32 1, %s7
  %s10 = scalar_select 0, %s9, %s7
  loop: start=0, step=1, limit=10
  $region2: #{kerl_forward.2} parent=0 // loop_pre_header
    _
  $region3: #{kerl_forward.2} parent=0 // loop_header
    %s12 = sphi 0, %s16
    %p13 = scmp.ge.s32.totalorder %s12, 10
    %s19 = sphi 0, %s31
    %s20 = sphi 0, %s27
    %s21 = sphi 0, %s19
    %s22 = sphi 0, %s20
    %s23 = sphi 0, %s21
    %s24 = sphi 0, %s22
    %s32 = sphi 0, %s32
    %s34 = sphi 0, %s32
    %s35 = sphi 0, %s34
    %s49 = sphi 0, %s35
    %s55 = sphi 0, %s57
    %s58 = sphi 0, %s55
    %s59 = sphi 0, %s58
    %s75 = sphi 0, %s59
    %s83 = sphi 0, %s85
    %s86 = sphi 0, %s83
    %s87 = sphi 0, %s86
    %s103 = sphi 0, %s87
    %s107 = sphi 0, %s107
    %s109 = sphi 0, %s107
    %s110 = sphi 0, %s109
    %s124 = sphi 0, %s110
    %s128 = sphi 0, %s128
    %s130 = sphi 0, %s128
    %s131 = sphi 0, %s130
    %s145 = sphi 0, %s131
    %s149 = sphi 0, %s149
    %s151 = sphi 0, %s149
    %s152 = sphi 0, %s151
    %s166 = sphi 0, %s152
    %s172 = sphi 0, %s174
    %s175 = sphi 0, %s172
    %s176 = sphi 0, %s175
    %s192 = sphi 0, %s176
  $region4: #{kerl_forward.2} parent=0 // loop_header_branch
    %15 = sbr.rel (%p13) target = $region8
  $region5: #{kerl_forward.2} parent=0 // loop_body
    %s17 = ssub.s32 %s12, 1
    %s18 = ssub.s32 %s12, 2
    %s25 = sadd.s32 1, %s20
    %p26 = scmp.ge.s32.totalorder %s25, 4
    %s27 = scalar_select %p26, 0, %s25
    %s28 = sadd.s32 1, %s19
    %s29 = scalar_select %p26, %s28, %s19
    %p30 = scmp.ge.s32.totalorder %s29, 2
    %s31 = scalar_select %p30, 0, %s29
    %s33 = sadd.s32 %s32, 1
    %p36 = scmp.eq.s32.totalorder %s12, 7
    %p37 = scmp.ne.s32.totalorder %s32, %s34
    %p38 = scmp.eq.s32.totalorder %s12, 0
    %p39 = por %p37, %p38
    %p40 = scmp.ne.s32.totalorder %s32, %s34
    %p41 = scmp.eq.s32.totalorder %s17, 7
    %p42 = por %p40, %p41
    %p43 = scmp.ne.s32.totalorder %s34, %s35
    %p44 = scmp.eq.s32.totalorder %s17, 0
    %p45 = por %p43, %p44
    %p46 = scmp.ne.s32.totalorder %s34, %s35
    %p47 = scmp.eq.s32.totalorder %s18, 7
    %p48 = por %p46, %p47
    %p50 = scmp.ne.s32.totalorder %s35, %s49
    %p51 = scmp.eq.s32.totalorder %s18, 0
    %p52 = por %p50, %p51
    %s53 = ssub.s32 %s19, %s31
    %p54 = scmp.eq.s32.totalorder %s53, 0
    %s56 = sadd.s32 %s55, 1
    %s57 = scalar_select %p54, %s55, %s56
    %p60 = pneg %p54
    %p61 = scmp.eq.s32.totalorder %s12, 7
    %p62 = por %p60, %p61
    %p63 = scmp.ne.s32.totalorder %s55, %s58
    %p64 = scmp.eq.s32.totalorder %s12, 0
    %p65 = por %p63, %p64
    %p66 = scmp.ne.s32.totalorder %s55, %s58
    %p67 = scmp.eq.s32.totalorder %s17, 7
    %p68 = por %p66, %p67
    %p69 = scmp.ne.s32.totalorder %s58, %s59
    %p70 = scmp.eq.s32.totalorder %s17, 0
    %p71 = por %p69, %p70
    %p72 = scmp.ne.s32.totalorder %s58, %s59
    %p73 = scmp.eq.s32.totalorder %s18, 7
    %p74 = por %p72, %p73
    %p76 = scmp.ne.s32.totalorder %s59, %s75
    %p77 = scmp.eq.s32.totalorder %s18, 0
    %p78 = por %p76, %p77
    %s79 = ssub.s32 %s20, %s27
    %s80 = ssub.s32 %s19, %s31
    %s81 = sor.u32 %s79, %s80
    %p82 = scmp.eq.s32.totalorder %s81, 0
    %s84 = sadd.s32 %s83, 1
    %s85 = scalar_select %p82, %s83, %s84
    %p88 = pneg %p82
    %p89 = scmp.eq.s32.totalorder %s12, 7
    %p90 = por %p88, %p89
    %p91 = scmp.ne.s32.totalorder %s83, %s86
    %p92 = scmp.eq.s32.totalorder %s12, 0
    %p93 = por %p91, %p92
    %p94 = scmp.ne.s32.totalorder %s83, %s86
    %p95 = scmp.eq.s32.totalorder %s17, 7
    %p96 = por %p94, %p95
    %p97 = scmp.ne.s32.totalorder %s86, %s87
    %p98 = scmp.eq.s32.totalorder %s17, 0
    %p99 = por %p97, %p98
    %p100 = scmp.ne.s32.totalorder %s86, %s87
    %p101 = scmp.eq.s32.totalorder %s18, 7
    %p102 = por %p100, %p101
    %p104 = scmp.ne.s32.totalorder %s87, %s103
    %p105 = scmp.eq.s32.totalorder %s18, 0
    %p106 = por %p104, %p105
    %s108 = sadd.s32 %s107, 1
    %p111 = scmp.eq.s32.totalorder %s12, 7
    %p112 = scmp.ne.s32.totalorder %s107, %s109
    %p113 = scmp.eq.s32.totalorder %s12, 0
    %p114 = por %p112, %p113
    %p115 = scmp.ne.s32.totalorder %s107, %s109
    %p116 = scmp.eq.s32.totalorder %s17, 7
    %p117 = por %p115, %p116
    %p118 = scmp.ne.s32.totalorder %s109, %s110
    %p119 = scmp.eq.s32.totalorder %s17, 0
    %p120 = por %p118, %p119
    %p121 = scmp.ne.s32.totalorder %s109, %s110
    %p122 = scmp.eq.s32.totalorder %s18, 7
    %p123 = por %p121, %p122
    %p125 = scmp.ne.s32.totalorder %s110, %s124
    %p126 = scmp.eq.s32.totalorder %s18, 0
    %p127 = por %p125, %p126
    %s129 = sadd.s32 %s128, 1
    %p132 = scmp.eq.s32.totalorder %s12, 7
    %p133 = scmp.ne.s32.totalorder %s128, %s130
    %p134 = scmp.eq.s32.totalorder %s12, 0
    %p135 = por %p133, %p134
    %p136 = scmp.ne.s32.totalorder %s128, %s130
    %p137 = scmp.eq.s32.totalorder %s17, 7
    %p138 = por %p136, %p137
    %p139 = scmp.ne.s32.totalorder %s130, %s131
    %p140 = scmp.eq.s32.totalorder %s17, 0
    %p141 = por %p139, %p140
    %p142 = scmp.ne.s32.totalorder %s130, %s131
    %p143 = scmp.eq.s32.totalorder %s18, 7
    %p144 = por %p142, %p143
    %p146 = scmp.ne.s32.totalorder %s131, %s145
    %p147 = scmp.eq.s32.totalorder %s18, 0
    %p148 = por %p146, %p147
    %s150 = sadd.s32 %s149, 1
    %p153 = scmp.eq.s32.totalorder %s12, 7
    %p154 = scmp.ne.s32.totalorder %s149, %s151
    %p155 = scmp.eq.s32.totalorder %s12, 0
    %p156 = por %p154, %p155
    %p157 = scmp.ne.s32.totalorder %s149, %s151
    %p158 = scmp.eq.s32.totalorder %s17, 7
    %p159 = por %p157, %p158
    %p160 = scmp.ne.s32.totalorder %s151, %s152
    %p161 = scmp.eq.s32.totalorder %s17, 0
    %p162 = por %p160, %p161
    %p163 = scmp.ne.s32.totalorder %s151, %s152
    %p164 = scmp.eq.s32.totalorder %s18, 7
    %p165 = por %p163, %p164
    %p167 = scmp.ne.s32.totalorder %s152, %s166
    %p168 = scmp.eq.s32.totalorder %s18, 0
    %p169 = por %p167, %p168
    %s170 = ssub.s32 %s19, %s31
    %p171 = scmp.eq.s32.totalorder %s170, 0
    %s173 = sadd.s32 %s172, 1
    %s174 = scalar_select %p171, %s172, %s173
    %p177 = pneg %p171
    %p178 = scmp.eq.s32.totalorder %s12, 7
    %p179 = por %p177, %p178
    %p180 = scmp.ne.s32.totalorder %s172, %s175
    %p181 = scmp.eq.s32.totalorder %s12, 0
    %p182 = por %p180, %p181
    %p183 = scmp.ne.s32.totalorder %s172, %s175
    %p184 = scmp.eq.s32.totalorder %s17, 7
    %p185 = por %p183, %p184
    %p186 = scmp.ne.s32.totalorder %s175, %s176
    %p187 = scmp.eq.s32.totalorder %s17, 0
    %p188 = por %p186, %p187
    %p189 = scmp.ne.s32.totalorder %s175, %s176
    %p190 = scmp.eq.s32.totalorder %s18, 7
    %p191 = por %p189, %p190
    %p193 = scmp.ne.s32.totalorder %s176, %s192
    %p194 = scmp.eq.s32.totalorder %s18, 0
    %p195 = por %p193, %p194
    %p196 = scmp.le.s32.totalorder 1, %s12
    %p197 = scmp.lt.s32.totalorder %s12, 9
    %p198 = pnand %p196, %p197
    %p199 = pneg %p198
    // Predicated region
    $region9: #{kerl_forward.2} parent=5 // pred_check
      _
    $region10: #{kerl_forward.2} parent=5 // pred_check_branch
      %201 = sbr.rel (%p198) target = $region12
    $region11: #{kerl_forward.2} parent=5 // pred_region
      %s202 = ssub.s32 %s12, 1
      // Predicated region
      $region13: #{kerl_forward.2} parent=11 // pred_check
        %p203 = pneg %p45
      $region14: #{kerl_forward.2} parent=11 // pred_check_branch
        %205 = sbr.rel (%p203) target = $region16
      $region15: #{kerl_forward.2} parent=11 // pred_region
        _
      $region16: #{kerl_forward.2} parent=11 // pred_fallthru
        _
      // Predicated region
      $region17: #{kerl_forward.2} parent=11 // pred_check
        %p206 = pneg %p120
      $region18: #{kerl_forward.2} parent=11 // pred_check_branch
        %208 = sbr.rel (%p206) target = $region20
      $region19: #{kerl_forward.2} parent=11 // pred_region
        _
      $region20: #{kerl_forward.2} parent=11 // pred_fallthru
        _
      // Predicated region
      $region21: #{kerl_forward.2} parent=11 // pred_check
        %p209 = pneg %p141
      $region22: #{kerl_forward.2} parent=11 // pred_check_branch
        %211 = sbr.rel (%p209) target = $region24
      $region23: #{kerl_forward.2} parent=11 // pred_region
        _
      $region24: #{kerl_forward.2} parent=11 // pred_fallthru
        _
      // Predicated region
      $region25: #{kerl_forward.2} parent=11 // pred_check
        %p212 = pneg %p162
      $region26: #{kerl_forward.2} parent=11 // pred_check_branch
        %214 = sbr.rel (%p212) target = $region28
      $region27: #{kerl_forward.2} parent=11 // pred_region
        _
      $region28: #{kerl_forward.2} parent=11 // pred_fallthru
        _
    $region12: #{kerl_forward.2} parent=5 // pred_fallthru
      _
    %p215 = scmp.lt.s32.totalorder %s12, 8
    // Predicated region
    $region29: #{kerl_forward.2} parent=5 // pred_check
      %p216 = pneg %p215
    $region30: #{kerl_forward.2} parent=5 // pred_check_branch
      %218 = sbr.rel (%p216) target = $region32
    $region31: #{kerl_forward.2} parent=5 // pred_region
      // Predicated region
      $region33: #{kerl_forward.2} parent=31 // pred_check
        %p219 = pneg %p65
      $region34: #{kerl_forward.2} parent=31 // pred_check_branch
        %221 = sbr.rel (%p219) target = $region36
      $region35: #{kerl_forward.2} parent=31 // pred_region
        %s222 = smul.u32 16, %s19
        %p223 = scmp.lt.s32.totalorder %s222, 31
        %s224 = scalar_select %p223, %s222, 31
        %s225 = smul.addr %s224, 4
        %s226 = scalar_lea.vmem %s1, %s225
        %s227 = smul.u32 16, %s19
      $region36: #{kerl_forward.2} parent=31 // pred_fallthru
        _
      // Predicated region
      $region37: #{kerl_forward.2} parent=31 // pred_check
        %p228 = pneg %p93
      $region38: #{kerl_forward.2} parent=31 // pred_check_branch
        %230 = sbr.rel (%p228) target = $region40
      $region39: #{kerl_forward.2} parent=31 // pred_region
        %s231 = smul.u32 16, %s19
        %p232 = scmp.lt.s32.totalorder %s20, 3
        %s233 = scalar_select %p232, %s20, 3
        %p234 = scmp.lt.s32.totalorder %s231, 31
        %s235 = scalar_select %p234, %s231, 31
        %s236 = smul.addr %s235, 2
        %s237 = smul.addr %s233, 64
        %s238 = sadd.s32 %s236, %s237
        %s239 = smul.addr %s238, 4
        %s240 = scalar_lea.vmem %s2, %s239
        %s241 = smul.u32 16, %s19
      $region40: #{kerl_forward.2} parent=31 // pred_fallthru
        _
    $region32: #{kerl_forward.2} parent=5 // pred_fallthru
      _
    %p242 = scmp.le.s32.totalorder 1, %s12
    %p243 = scmp.lt.s32.totalorder %s12, 9
    %p244 = pnand %p242, %p243
    %p245 = pneg %p244
    // Predicated region
    $region41: #{kerl_forward.2} parent=5 // pred_check
      _
    $region42: #{kerl_forward.2} parent=5 // pred_check_branch
      %247 = sbr.rel (%p244) target = $region44
    $region43: #{kerl_forward.2} parent=5 // pred_region
      %s248 = ssub.s32 %s12, 1
      %p249 = pneg %p45
      %p250 = pneg %p42
      %s251 = smul.u32 16, %s21
      %p252 = scmp.lt.s32.totalorder %s251, 31
      %s253 = scalar_select %p252, %s251, 31
      %s254 = smul.addr %s253, 4
      %s255 = scalar_lea.vmem %s1, %s254
      %p256 = pneg %p71
      %p257 = pneg %p68
      %s258 = smul.u32 16, %s21
      %p259 = scmp.lt.s32.totalorder %s22, 3
      %s260 = scalar_select %p259, %s22, 3
      %p261 = scmp.lt.s32.totalorder %s258, 31
      %s262 = scalar_select %p261, %s258, 31
      %s263 = smul.addr %s262, 2
      %s264 = smul.addr %s260, 64
      %s265 = sadd.s32 %s263, %s264
      %s266 = smul.addr %s265, 4
      %s267 = scalar_lea.vmem %s2, %s266
      %p268 = pneg %p99
      %p269 = pneg %p96
      %p270 = pneg %p120
      %p271 = pneg %p117
      %p272 = pneg %p141
      %p273 = pneg %p138
      %p274 = pneg %p162
      %p275 = pneg %p159
      %p276 = pneg %p188
      %p277 = pneg %p185
      %s278 = smul.u32 16, %s21
      %p279 = scmp.lt.s32.totalorder %s278, 31
      %s280 = scalar_select %p279, %s278, 31
      %s281 = smul.addr %s280, 2
      %s282 = smul.addr %s281, 8
      %s283 = scalar_lea.vmem %s6, %s282
      %s284 = smul.u32 16, %s21
      %p285 = scmp.lt.s32.totalorder %s284, 31
      %s286 = scalar_select %p285, %s284, 31
      %s287 = smul.addr %s286, 4
      %s288 = scalar_lea.vmem %s1, %s287
      %s289 = smul.u32 16, %s21
      %s290 = smul.u32 16, %s21
      %p291 = scmp.lt.s32.totalorder %s22, 3
      %s292 = scalar_select %p291, %s22, 3
      %p293 = scmp.lt.s32.totalorder %s290, 31
      %s294 = scalar_select %p293, %s290, 31
      %s295 = smul.addr %s294, 2
      %s296 = smul.addr %s292, 64
      %s297 = sadd.s32 %s295, %s296
      %s298 = smul.addr %s297, 4
      %s299 = scalar_lea.vmem %s2, %s298
      %s300 = smul.u32 16, %s21
      %s301 = smul.u32 16, %s21
      %p302 = scmp.lt.s32.totalorder %s301, 31
      %s303 = scalar_select %p302, %s301, 31
      %s304 = smul.addr %s303, 2
      %s305 = smul.addr %s304, 8
      %s306 = scalar_lea.vmem %s6, %s305
      %s307 = smul.u32 16, %s21
      %v309 = vld [vmem:[%s299] sm:$0xff]
      %v310 = vld [vmem:[%s299 + $0x8] sm:$0xff]
      %v311 = vld [vmem:[%s299 + $0x10] sm:$0xff]
      %v312 = vld [vmem:[%s299 + $0x18] sm:$0xff]
      %v313 = vld [vmem:[%s299 + $0x20] sm:$0xff]
      %v314 = vld [vmem:[%s299 + $0x28] sm:$0xff]
      %v315 = vld [vmem:[%s299 + $0x30] sm:$0xff]
      %v316 = vld [vmem:[%s299 + $0x38] sm:$0xff]
      %v317 = vld [vmem:[%s299 + $0x40] sm:$0xff]
      %v318 = vld [vmem:[%s299 + $0x48] sm:$0xff]
      %v319 = vld [vmem:[%s299 + $0x50] sm:$0xff]
      %v320 = vld [vmem:[%s299 + $0x58] sm:$0xff]
      %v321 = vld [vmem:[%s299 + $0x60] sm:$0xff]
      %v322 = vld [vmem:[%s299 + $0x68] sm:$0xff]
      %v323 = vld [vmem:[%s299 + $0x70] sm:$0xff]
      %v324 = vld [vmem:[%s299 + $0x78] sm:$0xff]
      %v325 = vld [vmem:[%s0] sm:$0xf]
      %v326 = vld [vmem:[%s0 + $0x4] sm:$0xf]
      %v327 = vld [vmem:[%s0 + $0x8] sm:$0xf]
      %v328 = vld [vmem:[%s0 + $0xc] sm:$0xf]
      %v329 = vld [vmem:[%s0 + $0x10] sm:$0xf]
      %v330 = vld [vmem:[%s0 + $0x14] sm:$0xf]
      %v331 = vld [vmem:[%s0 + $0x18] sm:$0xf]
      %v332 = vld [vmem:[%s0 + $0x1c] sm:$0xf]
      %v333 = vld [vmem:[%s0 + $0x20] sm:$0xf]
      %v334 = vld [vmem:[%s0 + $0x24] sm:$0xf]
      %v335 = vld [vmem:[%s0 + $0x28] sm:$0xf]
      %v336 = vld [vmem:[%s0 + $0x2c] sm:$0xf]
      %v337 = vld [vmem:[%s0 + $0x30] sm:$0xf]
      %v338 = vld [vmem:[%s0 + $0x34] sm:$0xf]
      %v339 = vld [vmem:[%s0 + $0x38] sm:$0xf]
      %v340 = vld [vmem:[%s0 + $0x3c] sm:$0xf]
      %v341 = vld [vmem:[%s0 + $0x40] sm:$0xf]
      %v342 = vld [vmem:[%s0 + $0x44] sm:$0xf]
      %v343 = vld [vmem:[%s0 + $0x48] sm:$0xf]
      %v344 = vld [vmem:[%s0 + $0x4c] sm:$0xf]
      %v345 = vld [vmem:[%s0 + $0x50] sm:$0xf]
      %v346 = vld [vmem:[%s0 + $0x54] sm:$0xf]
      %v347 = vld [vmem:[%s0 + $0x58] sm:$0xf]
      %v348 = vld [vmem:[%s0 + $0x5c] sm:$0xf]
      %v349 = vld [vmem:[%s0 + $0x60] sm:$0xf]
      %v350 = vld [vmem:[%s0 + $0x64] sm:$0xf]
      %v351 = vld [vmem:[%s0 + $0x68] sm:$0xf]
      %v352 = vld [vmem:[%s0 + $0x6c] sm:$0xf]
      %v353 = vld [vmem:[%s0 + $0x70] sm:$0xf]
      %v354 = vld [vmem:[%s0 + $0x74] sm:$0xf]
      %v355 = vld [vmem:[%s0 + $0x78] sm:$0xf]
      %v356 = vld [vmem:[%s0 + $0x7c] sm:$0xf]
      %v373 = vunpack.c.l.b16 %v309
      %v374 = vunpack.c.h.b16 %v309
      %v375 = vunpack.c.l.b16 %v310
      %v376 = vunpack.c.h.b16 %v310
      %v377 = vunpack.c.l.b16 %v311
      %v378 = vunpack.c.h.b16 %v311
      %v379 = vunpack.c.l.b16 %v312
      %v380 = vunpack.c.h.b16 %v312
      %v381 = vunpack.c.l.b16 %v313
      %v382 = vunpack.c.h.b16 %v313
      %v383 = vunpack.c.l.b16 %v314
      %v384 = vunpack.c.h.b16 %v314
      %v385 = vunpack.c.l.b16 %v315
      %v386 = vunpack.c.h.b16 %v315
      %v387 = vunpack.c.l.b16 %v316
      %v388 = vunpack.c.h.b16 %v316
      %v389 = vunpack.c.l.b16 %v317
      %v390 = vunpack.c.h.b16 %v317
      %v391 = vunpack.c.l.b16 %v318
      %v392 = vunpack.c.h.b16 %v318
      %v393 = vunpack.c.l.b16 %v319
      %v394 = vunpack.c.h.b16 %v319
      %v395 = vunpack.c.l.b16 %v320
      %v396 = vunpack.c.h.b16 %v320
      %v397 = vunpack.c.l.b16 %v321
      %v398 = vunpack.c.h.b16 %v321
      %v399 = vunpack.c.l.b16 %v322
      %v400 = vunpack.c.h.b16 %v322
      %v401 = vunpack.c.l.b16 %v323
      %v402 = vunpack.c.h.b16 %v323
      %v403 = vunpack.c.l.b16 %v324
      %v404 = vunpack.c.h.b16 %v324
      %v405 = vpack.c.b16 %v375, %v373
      %v406 = vpack.c.b16 %v376, %v374
      %v407 = vpack.c.b16 %v379, %v377
      %v408 = vpack.c.b16 %v380, %v378
      %v409 = vpack.c.b16 %v383, %v381
      %v410 = vpack.c.b16 %v384, %v382
      %v411 = vpack.c.b16 %v387, %v385
      %v412 = vpack.c.b16 %v388, %v386
      %v413 = vpack.c.b16 %v391, %v389
      %v414 = vpack.c.b16 %v392, %v390
      %v415 = vpack.c.b16 %v395, %v393
      %v416 = vpack.c.b16 %v396, %v394
      %v417 = vpack.c.b16 %v399, %v397
      %v418 = vpack.c.b16 %v400, %v398
      %v419 = vpack.c.b16 %v403, %v401
      %v420 = vpack.c.b16 %v404, %v402
      %v469 = vunpack.c.l.b16 %v325
      %v470 = vunpack.c.l.b16 %v326
      %v471 = vunpack.c.l.b16 %v327
      %v472 = vunpack.c.l.b16 %v328
      %v473 = vunpack.c.l.b16 %v329
      %v474 = vunpack.c.l.b16 %v330
      %v475 = vunpack.c.l.b16 %v331
      %v476 = vunpack.c.l.b16 %v332
      %v477 = vunpack.c.l.b16 %v333
      %v478 = vunpack.c.l.b16 %v334
      %v479 = vunpack.c.l.b16 %v335
      %v480 = vunpack.c.l.b16 %v336
      %v481 = vunpack.c.l.b16 %v337
      %v482 = vunpack.c.l.b16 %v338
      %v483 = vunpack.c.l.b16 %v339
      %v484 = vunpack.c.l.b16 %v340
      %v485 = vunpack.c.l.b16 %v341
      %v486 = vunpack.c.l.b16 %v342
      %v487 = vunpack.c.l.b16 %v343
      %v488 = vunpack.c.l.b16 %v344
      %v489 = vunpack.c.l.b16 %v345
      %v490 = vunpack.c.l.b16 %v346
      %v491 = vunpack.c.l.b16 %v347
      %v492 = vunpack.c.l.b16 %v348
      %v493 = vunpack.c.l.b16 %v349
      %v494 = vunpack.c.l.b16 %v350
      %v495 = vunpack.c.l.b16 %v351
      %v496 = vunpack.c.l.b16 %v352
      %v497 = vunpack.c.l.b16 %v353
      %v498 = vunpack.c.l.b16 %v354
      %v499 = vunpack.c.l.b16 %v355
      %v500 = vunpack.c.l.b16 %v356
      %v501 = vpack.c.b16 %v470, %v469
      %v502 = vpack.c.b16 %v472, %v471
      %v503 = vpack.c.b16 %v474, %v473
      %v504 = vpack.c.b16 %v476, %v475
      %v505 = vpack.c.b16 %v478, %v477
      %v506 = vpack.c.b16 %v480, %v479
      %v507 = vpack.c.b16 %v482, %v481
      %v508 = vpack.c.b16 %v484, %v483
      %v509 = vpack.c.b16 %v486, %v485
      %v510 = vpack.c.b16 %v488, %v487
      %v511 = vpack.c.b16 %v490, %v489
      %v512 = vpack.c.b16 %v492, %v491
      %v513 = vpack.c.b16 %v494, %v493
      %v514 = vpack.c.b16 %v496, %v495
      %v515 = vpack.c.b16 %v498, %v497
      %v516 = vpack.c.b16 %v500, %v499
      %533 = vmatprep.subr.bf16.mxu0 0
      %534 = vmatpush1.bf16.msra.mxu0 %v501
      %535 = vmatprep.subr.bf16.mxu0 0
      %536 = vmatpush1.bf16.msra.mxu0 %v502
      %537 = vmatprep.subr.bf16.mxu0 0
      %538 = vmatpush1.bf16.msra.mxu0 %v503
      %539 = vmatprep.subr.bf16.mxu0 0
      %540 = vmatpush1.bf16.msra.mxu0 %v504
      %541 = vmatprep.subr.bf16.mxu0 0
      %542 = vmatpush1.bf16.msra.mxu0 %v505
      %543 = vmatprep.subr.bf16.mxu0 0
      %544 = vmatpush1.bf16.msra.mxu0 %v506
      %545 = vmatprep.subr.bf16.mxu0 0
      %546 = vmatpush1.bf16.msra.mxu0 %v507
      %547 = vmatprep.subr.bf16.mxu0 0
      %548 = vmatpush1.bf16.msra.mxu0 %v508
      %549 = vmatprep.subr.bf16.mxu0 0
      %550 = vmatpush1.bf16.msra.mxu0 %v509
      %551 = vmatprep.subr.bf16.mxu0 0
      %552 = vmatpush1.bf16.msra.mxu0 %v510
      %553 = vmatprep.subr.bf16.mxu0 0
      %554 = vmatpush1.bf16.msra.mxu0 %v511
      %555 = vmatprep.subr.bf16.mxu0 0
      %556 = vmatpush1.bf16.msra.mxu0 %v512
      %557 = vmatprep.subr.bf16.mxu0 0
      %558 = vmatpush1.bf16.msra.mxu0 %v513
      %559 = vmatprep.subr.bf16.mxu0 0
      %560 = vmatpush1.bf16.msra.mxu0 %v514
      %561 = vmatprep.subr.bf16.mxu0 0
      %562 = vmatpush1.bf16.msra.mxu0 %v515
      %563 = vmatprep.subr.bf16.mxu0 0
      %564 = vmatpush1.bf16.msra.mxu0 %v516
      %565 = vmatprep.mubr.bf16.mxu0 %v406
      %566 = vmatmul.mubr.bf16.gmra.mrb[0].mxu0 %v405
      %v567 = vpop.f32.mrb[0].mxu0
      %v568 = vadd.f32 0.0, %v567
      %v569 = vpop.f32.mrb[0].mxu0
      %v570 = vpop.f32.mrb[0].mxu0
      %v571 = vadd.f32 0.0, %v570
      %v572 = vpop.f32.mrb[0].mxu0
      %573 = vmatprep.mubr.bf16.mxu0 %v408
      %574 = vmatmul.mubr.bf16.gmra.mrb[0].mxu0 %v407
      %v575 = vpop.f32.mrb[0].mxu0
      %v576 = vadd.f32 0.0, %v575
      %v577 = vpop.f32.mrb[0].mxu0
      %v578 = vpop.f32.mrb[0].mxu0
      %v579 = vadd.f32 0.0, %v578
      %v580 = vpop.f32.mrb[0].mxu0
      %581 = vmatprep.mubr.bf16.mxu0 %v410
      %582 = vmatmul.mubr.bf16.gmra.mrb[0].mxu0 %v409
      %v583 = vpop.f32.mrb[0].mxu0
      %v584 = vadd.f32 0.0, %v583
      %v585 = vpop.f32.mrb[0].mxu0
      %v586 = vpop.f32.mrb[0].mxu0
      %v587 = vadd.f32 0.0, %v586
      %v588 = vpop.f32.mrb[0].mxu0
      %589 = vmatprep.mubr.bf16.mxu0 %v412
      %590 = vmatmul.mubr.bf16.gmra.mrb[0].mxu0 %v411
      %v591 = vpop.f32.mrb[0].mxu0
      %v592 = vadd.f32 0.0, %v591
      %v593 = vpop.f32.mrb[0].mxu0
      %v594 = vpop.f32.mrb[0].mxu0
      %v595 = vadd.f32 0.0, %v594
      %v596 = vpop.f32.mrb[0].mxu0
      %597 = vmatprep.mubr.bf16.mxu0 %v414
      %598 = vmatmul.mubr.bf16.gmra.mrb[0].mxu0 %v413
      %v599 = vpop.f32.mrb[0].mxu0
      %v600 = vadd.f32 0.0, %v599
      %v601 = vpop.f32.mrb[0].mxu0
      %v602 = vpop.f32.mrb[0].mxu0
      %v603 = vadd.f32 0.0, %v602
      %v604 = vpop.f32.mrb[0].mxu0
      %605 = vmatprep.mubr.bf16.mxu0 %v416
      %606 = vmatmul.mubr.bf16.gmra.mrb[0].mxu0 %v415
      %v607 = vpop.f32.mrb[0].mxu0
      %v608 = vadd.f32 0.0, %v607
      %v609 = vpop.f32.mrb[0].mxu0
      %v610 = vpop.f32.mrb[0].mxu0
      %v611 = vadd.f32 0.0, %v610
      %v612 = vpop.f32.mrb[0].mxu0
      %613 = vmatprep.mubr.bf16.mxu0 %v418
      %614 = vmatmul.mubr.bf16.gmra.mrb[0].mxu0 %v417
      %v615 = vpop.f32.mrb[0].mxu0
      %v616 = vadd.f32 0.0, %v615
      %v617 = vpop.f32.mrb[0].mxu0
      %v618 = vpop.f32.mrb[0].mxu0
      %v619 = vadd.f32 0.0, %v618
      %v620 = vpop.f32.mrb[0].mxu0
      %621 = vmatprep.mubr.bf16.mxu0 %v420
      %622 = vmatmul.mubr.bf16.gmra.mrb[0].mxu0 %v419
      %v623 = vpop.f32.mrb[0].mxu0
      %v624 = vadd.f32 0.0, %v623
      %v625 = vpop.f32.mrb[0].mxu0
      %v626 = vpop.f32.mrb[0].mxu0
      %v627 = vadd.f32 0.0, %v626
      %v628 = vpop.f32.mrb[0].mxu0
      %629 = vdwg.mxu0
      %p630 = scmp.eq.s32.totalorder %s22, 0
      // Predicated region
      $region45: #{kerl_forward.2} parent=43 // pred_check
        %p631 = pneg %p630
      $region46: #{kerl_forward.2} parent=43 // pred_check_branch
        %633 = sbr.rel (%p631) target = $region48
      $region47: #{kerl_forward.2} parent=43 // pred_region
        %v634 = vpack.c.bf16 %v571, %v568
        %v635 = vpack.c.bf16 %v579, %v576
        %v636 = vpack.c.bf16 %v587, %v584
        %v637 = vpack.c.bf16 %v595, %v592
        %v638 = vpack.c.bf16 %v603, %v600
        %v639 = vpack.c.bf16 %v611, %v608
        %v640 = vpack.c.bf16 %v619, %v616
        %v641 = vpack.c.bf16 %v627, %v624
        %642 = vst [vmem:[#allocation2] sm:$0xff] %v634
        %643 = vst [vmem:[#allocation2 + $0x20] sm:$0xff] %v635
        %644 = vst [vmem:[#allocation2 + $0x40] sm:$0xff] %v636
        %645 = vst [vmem:[#allocation2 + $0x60] sm:$0xff] %v637
        %646 = vst [vmem:[#allocation2 + $0x80] sm:$0xff] %v638
        %647 = vst [vmem:[#allocation2 + $0xa0] sm:$0xff] %v639
        %648 = vst [vmem:[#allocation2 + $0xc0] sm:$0xff] %v640
        %649 = vst [vmem:[#allocation2 + $0xe0] sm:$0xff] %v641
      $region48: #{kerl_forward.2} parent=43 // pred_fallthru
        _
      %p650 = scmp.eq.s32.totalorder %s22, 1
      // Predicated region
      $region49: #{kerl_forward.2} parent=43 // pred_check
        %p651 = pneg %p650
      $region50: #{kerl_forward.2} parent=43 // pred_check_branch
        %653 = sbr.rel (%p651) target = $region52
      $region51: #{kerl_forward.2} parent=43 // pred_region
        %v654 = vpack.c.bf16 %v571, %v568
        %v655 = vpack.c.bf16 %v579, %v576
        %v656 = vpack.c.bf16 %v587, %v584
        %v657 = vpack.c.bf16 %v595, %v592
        %v658 = vpack.c.bf16 %v603, %v600
        %v659 = vpack.c.bf16 %v611, %v608
        %v660 = vpack.c.bf16 %v619, %v616
        %v661 = vpack.c.bf16 %v627, %v624
        %662 = vst [vmem:[#allocation2 + $0x8] sm:$0xff] %v654
        %663 = vst [vmem:[#allocation2 + $0x28] sm:$0xff] %v655
        %664 = vst [vmem:[#allocation2 + $0x48] sm:$0xff] %v656
        %665 = vst [vmem:[#allocation2 + $0x68] sm:$0xff] %v657
        %666 = vst [vmem:[#allocation2 + $0x88] sm:$0xff] %v658
        %667 = vst [vmem:[#allocation2 + $0xa8] sm:$0xff] %v659
        %668 = vst [vmem:[#allocation2 + $0xc8] sm:$0xff] %v660
        %669 = vst [vmem:[#allocation2 + $0xe8] sm:$0xff] %v661
      $region52: #{kerl_forward.2} parent=43 // pred_fallthru
        _
      %p670 = scmp.eq.s32.totalorder %s22, 2
      // Predicated region
      $region53: #{kerl_forward.2} parent=43 // pred_check
        %p671 = pneg %p670
      $region54: #{kerl_forward.2} parent=43 // pred_check_branch
        %673 = sbr.rel (%p671) target = $region56
      $region55: #{kerl_forward.2} parent=43 // pred_region
        %v674 = vpack.c.bf16 %v571, %v568
        %v675 = vpack.c.bf16 %v579, %v576
        %v676 = vpack.c.bf16 %v587, %v584
        %v677 = vpack.c.bf16 %v595, %v592
        %v678 = vpack.c.bf16 %v603, %v600
        %v679 = vpack.c.bf16 %v611, %v608
        %v680 = vpack.c.bf16 %v619, %v616
        %v681 = vpack.c.bf16 %v627, %v624
        %682 = vst [vmem:[#allocation2 + $0x10] sm:$0xff] %v674
        %683 = vst [vmem:[#allocation2 + $0x30] sm:$0xff] %v675
        %684 = vst [vmem:[#allocation2 + $0x50] sm:$0xff] %v676
        %685 = vst [vmem:[#allocation2 + $0x70] sm:$0xff] %v677
        %686 = vst [vmem:[#allocation2 + $0x90] sm:$0xff] %v678
        %687 = vst [vmem:[#allocation2 + $0xb0] sm:$0xff] %v679
        %688 = vst [vmem:[#allocation2 + $0xd0] sm:$0xff] %v680
        %689 = vst [vmem:[#allocation2 + $0xf0] sm:$0xff] %v681
      $region56: #{kerl_forward.2} parent=43 // pred_fallthru
        _
      %p690 = scmp.eq.s32.totalorder %s22, 3
      // Predicated region
      $region57: #{kerl_forward.2} parent=43 // pred_check
        %p691 = pneg %p690
      $region58: #{kerl_forward.2} parent=43 // pred_check_branch
        %693 = sbr.rel (%p691) target = $region60
      $region59: #{kerl_forward.2} parent=43 // pred_region
        %v694 = vpack.c.bf16 %v571, %v568
        %v695 = vpack.c.bf16 %v579, %v576
        %v696 = vpack.c.bf16 %v587, %v584
        %v697 = vpack.c.bf16 %v595, %v592
        %v698 = vpack.c.bf16 %v603, %v600
        %v699 = vpack.c.bf16 %v611, %v608
        %v700 = vpack.c.bf16 %v619, %v616
        %v701 = vpack.c.bf16 %v627, %v624
        %702 = vst [vmem:[#allocation2 + $0x18] sm:$0xff] %v694
        %703 = vst [vmem:[#allocation2 + $0x38] sm:$0xff] %v695
        %704 = vst [vmem:[#allocation2 + $0x58] sm:$0xff] %v696
        %705 = vst [vmem:[#allocation2 + $0x78] sm:$0xff] %v697
        %706 = vst [vmem:[#allocation2 + $0x98] sm:$0xff] %v698
        %707 = vst [vmem:[#allocation2 + $0xb8] sm:$0xff] %v699
        %708 = vst [vmem:[#allocation2 + $0xd8] sm:$0xff] %v700
        %709 = vst [vmem:[#allocation2 + $0xf8] sm:$0xff] %v701
        %v710 = vld [vmem:[%s288] sm:$0xf]
        %v711 = vld [vmem:[%s288 + $0x4] sm:$0xf]
        %v712 = vld [vmem:[%s288 + $0x8] sm:$0xf]
        %v713 = vld [vmem:[%s288 + $0xc] sm:$0xf]
        %v714 = vld [vmem:[%s288 + $0x10] sm:$0xf]
        %v715 = vld [vmem:[%s288 + $0x14] sm:$0xf]
        %v716 = vld [vmem:[%s288 + $0x18] sm:$0xf]
        %v717 = vld [vmem:[%s288 + $0x1c] sm:$0xf]
        %v718 = vld [vmem:[%s288 + $0x20] sm:$0xf]
        %v719 = vld [vmem:[%s288 + $0x24] sm:$0xf]
        %v720 = vld [vmem:[%s288 + $0x28] sm:$0xf]
        %v721 = vld [vmem:[%s288 + $0x2c] sm:$0xf]
        %v722 = vld [vmem:[%s288 + $0x30] sm:$0xf]
        %v723 = vld [vmem:[%s288 + $0x34] sm:$0xf]
        %v724 = vld [vmem:[%s288 + $0x38] sm:$0xf]
        %v725 = vld [vmem:[%s288 + $0x3c] sm:$0xf]
        %v726 = vld [vmem:[%s4] sm:$0xff]
        %v727 = vld [vmem:[%s4 + $0x8] sm:$0xff]
        %v728 = vld [vmem:[%s4 + $0x10] sm:$0xff]
        %v729 = vld [vmem:[%s4 + $0x18] sm:$0xff]
        %v730 = vld [vmem:[%s4 + $0x20] sm:$0xff]
        %v731 = vld [vmem:[%s4 + $0x28] sm:$0xff]
        %v732 = vld [vmem:[%s4 + $0x30] sm:$0xff]
        %v733 = vld [vmem:[%s4 + $0x38] sm:$0xff]
        %v734 = vld [vmem:[%s4 + $0x40] sm:$0xff]
        %v735 = vld [vmem:[%s4 + $0x48] sm:$0xff]
        %v736 = vld [vmem:[%s4 + $0x50] sm:$0xff]
        %v737 = vld [vmem:[%s4 + $0x58] sm:$0xff]
        %v738 = vld [vmem:[%s4 + $0x60] sm:$0xff]
        %v739 = vld [vmem:[%s4 + $0x68] sm:$0xff]
        %v740 = vld [vmem:[%s4 + $0x70] sm:$0xff]
        %v741 = vld [vmem:[%s4 + $0x78] sm:$0xff]
        %v742 = vld [vmem:[#allocation2] sm:$0xff]
        %v743 = vld [vmem:[#allocation2 + $0x8] sm:$0xff]
        %v744 = vld [vmem:[#allocation2 + $0x10] sm:$0xff]
        %v745 = vld [vmem:[#allocation2 + $0x18] sm:$0xff]
        %v746 = vld [vmem:[#allocation2 + $0x20] sm:$0xff]
        %v747 = vld [vmem:[#allocation2 + $0x28] sm:$0xff]
        %v748 = vld [vmem:[#allocation2 + $0x30] sm:$0xff]
        %v749 = vld [vmem:[#allocation2 + $0x38] sm:$0xff]
        %v750 = vld [vmem:[#allocation2 + $0x40] sm:$0xff]
        %v751 = vld [vmem:[#allocation2 + $0x48] sm:$0xff]
        %v752 = vld [vmem:[#allocation2 + $0x50] sm:$0xff]
        %v753 = vld [vmem:[#allocation2 + $0x58] sm:$0xff]
        %v754 = vld [vmem:[#allocation2 + $0x60] sm:$0xff]
        %v755 = vld [vmem:[#allocation2 + $0x68] sm:$0xff]
        %v756 = vld [vmem:[#allocation2 + $0x70] sm:$0xff]
        %v757 = vld [vmem:[#allocation2 + $0x78] sm:$0xff]
        %v758 = vld [vmem:[#allocation2 + $0x80] sm:$0xff]
        %v759 = vld [vmem:[#allocation2 + $0x88] sm:$0xff]
        %v760 = vld [vmem:[#allocation2 + $0x90] sm:$0xff]
        %v761 = vld [vmem:[#allocation2 + $0x98] sm:$0xff]
        %v762 = vld [vmem:[#allocation2 + $0xa0] sm:$0xff]
        %v763 = vld [vmem:[#allocation2 + $0xa8] sm:$0xff]
        %v764 = vld [vmem:[#allocation2 + $0xb0] sm:$0xff]
        %v765 = vld [vmem:[#allocation2 + $0xb8] sm:$0xff]
        %v766 = vld [vmem:[#allocation2 + $0xc0] sm:$0xff]
        %v767 = vld [vmem:[#allocation2 + $0xc8] sm:$0xff]
        %v768 = vld [vmem:[#allocation2 + $0xd0] sm:$0xff]
        %v769 = vld [vmem:[#allocation2 + $0xd8] sm:$0xff]
        %v770 = vld [vmem:[#allocation2 + $0xe0] sm:$0xff]
        %v771 = vld [vmem:[#allocation2 + $0xe8] sm:$0xff]
        %v772 = vld [vmem:[#allocation2 + $0xf0] sm:$0xff]
        %v773 = vld [vmem:[#allocation2 + $0xf8] sm:$0xff]
        %v774 = vld [vmem:[%s3] sm:$0xff]
        %v775 = vld [vmem:[%s3 + $0x8] sm:$0xff]
        %v776 = vld [vmem:[%s3 + $0x10] sm:$0xff]
        %v777 = vld [vmem:[%s3 + $0x18] sm:$0xff]
        %v778 = vld [vmem:[%s3 + $0x20] sm:$0xff]
        %v779 = vld [vmem:[%s3 + $0x28] sm:$0xff]
        %v780 = vld [vmem:[%s3 + $0x30] sm:$0xff]
        %v781 = vld [vmem:[%s3 + $0x38] sm:$0xff]
        %v782 = vld [vmem:[%s3 + $0x40] sm:$0xff]
        %v783 = vld [vmem:[%s3 + $0x48] sm:$0xff]
        %v784 = vld [vmem:[%s3 + $0x50] sm:$0xff]
        %v785 = vld [vmem:[%s3 + $0x58] sm:$0xff]
        %v786 = vld [vmem:[%s3 + $0x60] sm:$0xff]
        %v787 = vld [vmem:[%s3 + $0x68] sm:$0xff]
        %v788 = vld [vmem:[%s3 + $0x70] sm:$0xff]
        %v789 = vld [vmem:[%s3 + $0x78] sm:$0xff]
        %v790 = vld [vmem:[%s3 + $0x80] sm:$0xff]
        %v791 = vld [vmem:[%s3 + $0x88] sm:$0xff]
        %v792 = vld [vmem:[%s3 + $0x90] sm:$0xff]
        %v793 = vld [vmem:[%s3 + $0x98] sm:$0xff]
        %v794 = vld [vmem:[%s3 + $0xa0] sm:$0xff]
        %v795 = vld [vmem:[%s3 + $0xa8] sm:$0xff]
        %v796 = vld [vmem:[%s3 + $0xb0] sm:$0xff]
        %v797 = vld [vmem:[%s3 + $0xb8] sm:$0xff]
        %v798 = vld [vmem:[%s3 + $0xc0] sm:$0xff]
        %v799 = vld [vmem:[%s3 + $0xc8] sm:$0xff]
        %v800 = vld [vmem:[%s3 + $0xd0] sm:$0xff]
        %v801 = vld [vmem:[%s3 + $0xd8] sm:$0xff]
        %v802 = vld [vmem:[%s3 + $0xe0] sm:$0xff]
        %v803 = vld [vmem:[%s3 + $0xe8] sm:$0xff]
        %v804 = vld [vmem:[%s3 + $0xf0] sm:$0xff]
        %v805 = vld [vmem:[%s3 + $0xf8] sm:$0xff]
        %v806 = vld [vmem:[%s3 + $0x100] sm:$0xff]
        %v807 = vld [vmem:[%s3 + $0x108] sm:$0xff]
        %v808 = vld [vmem:[%s3 + $0x110] sm:$0xff]
        %v809 = vld [vmem:[%s3 + $0x118] sm:$0xff]
        %v810 = vld [vmem:[%s3 + $0x120] sm:$0xff]
        %v811 = vld [vmem:[%s3 + $0x128] sm:$0xff]
        %v812 = vld [vmem:[%s3 + $0x130] sm:$0xff]
        %v813 = vld [vmem:[%s3 + $0x138] sm:$0xff]
        %v814 = vld [vmem:[%s3 + $0x140] sm:$0xff]
        %v815 = vld [vmem:[%s3 + $0x148] sm:$0xff]
        %v816 = vld [vmem:[%s3 + $0x150] sm:$0xff]
        %v817 = vld [vmem:[%s3 + $0x158] sm:$0xff]
        %v818 = vld [vmem:[%s3 + $0x160] sm:$0xff]
        %v819 = vld [vmem:[%s3 + $0x168] sm:$0xff]
        %v820 = vld [vmem:[%s3 + $0x170] sm:$0xff]
        %v821 = vld [vmem:[%s3 + $0x178] sm:$0xff]
        %v822 = vld [vmem:[%s3 + $0x180] sm:$0xff]
        %v823 = vld [vmem:[%s3 + $0x188] sm:$0xff]
        %v824 = vld [vmem:[%s3 + $0x190] sm:$0xff]
        %v825 = vld [vmem:[%s3 + $0x198] sm:$0xff]
        %v826 = vld [vmem:[%s3 + $0x1a0] sm:$0xff]
        %v827 = vld [vmem:[%s3 + $0x1a8] sm:$0xff]
        %v828 = vld [vmem:[%s3 + $0x1b0] sm:$0xff]
        %v829 = vld [vmem:[%s3 + $0x1b8] sm:$0xff]
        %v830 = vld [vmem:[%s3 + $0x1c0] sm:$0xff]
        %v831 = vld [vmem:[%s3 + $0x1c8] sm:$0xff]
        %v832 = vld [vmem:[%s3 + $0x1d0] sm:$0xff]
        %v833 = vld [vmem:[%s3 + $0x1d8] sm:$0xff]
        %v834 = vld [vmem:[%s3 + $0x1e0] sm:$0xff]
        %v835 = vld [vmem:[%s3 + $0x1e8] sm:$0xff]
        %v836 = vld [vmem:[%s3 + $0x1f0] sm:$0xff]
        %v837 = vld [vmem:[%s3 + $0x1f8] sm:$0xff]
        %v902 = vunpack.c.l.b16 %v774
        %v903 = vunpack.c.h.b16 %v774
        %v904 = vunpack.c.l.b16 %v775
        %v905 = vunpack.c.h.b16 %v775
        %v906 = vunpack.c.l.b16 %v776
        %v907 = vunpack.c.h.b16 %v776
        %v908 = vunpack.c.l.b16 %v777
        %v909 = vunpack.c.h.b16 %v777
        %v910 = vunpack.c.l.b16 %v778
        %v911 = vunpack.c.h.b16 %v778
        %v912 = vunpack.c.l.b16 %v779
        %v913 = vunpack.c.h.b16 %v779
        %v914 = vunpack.c.l.b16 %v780
        %v915 = vunpack.c.h.b16 %v780
        %v916 = vunpack.c.l.b16 %v781
        %v917 = vunpack.c.h.b16 %v781
        %v918 = vunpack.c.l.b16 %v782
        %v919 = vunpack.c.h.b16 %v782
        %v920 = vunpack.c.l.b16 %v783
        %v921 = vunpack.c.h.b16 %v783
        %v922 = vunpack.c.l.b16 %v784
        %v923 = vunpack.c.h.b16 %v784
        %v924 = vunpack.c.l.b16 %v785
        %v925 = vunpack.c.h.b16 %v785
        %v926 = vunpack.c.l.b16 %v786
        %v927 = vunpack.c.h.b16 %v786
        %v928 = vunpack.c.l.b16 %v787
        %v929 = vunpack.c.h.b16 %v787
        %v930 = vunpack.c.l.b16 %v788
        %v931 = vunpack.c.h.b16 %v788
        %v932 = vunpack.c.l.b16 %v789
        %v933 = vunpack.c.h.b16 %v789
        %v934 = vunpack.c.l.b16 %v790
        %v935 = vunpack.c.h.b16 %v790
        %v936 = vunpack.c.l.b16 %v791
        %v937 = vunpack.c.h.b16 %v791
        %v938 = vunpack.c.l.b16 %v792
        %v939 = vunpack.c.h.b16 %v792
        %v940 = vunpack.c.l.b16 %v793
        %v941 = vunpack.c.h.b16 %v793
        %v942 = vunpack.c.l.b16 %v794
        %v943 = vunpack.c.h.b16 %v794
        %v944 = vunpack.c.l.b16 %v795
        %v945 = vunpack.c.h.b16 %v795
        %v946 = vunpack.c.l.b16 %v796
        %v947 = vunpack.c.h.b16 %v796
        %v948 = vunpack.c.l.b16 %v797
        %v949 = vunpack.c.h.b16 %v797
        %v950 = vunpack.c.l.b16 %v798
        %v951 = vunpack.c.h.b16 %v798
        %v952 = vunpack.c.l.b16 %v799
        %v953 = vunpack.c.h.b16 %v799
        %v954 = vunpack.c.l.b16 %v800
        %v955 = vunpack.c.h.b16 %v800
        %v956 = vunpack.c.l.b16 %v801
        %v957 = vunpack.c.h.b16 %v801
        %v958 = vunpack.c.l.b16 %v802
        %v959 = vunpack.c.h.b16 %v802
        %v960 = vunpack.c.l.b16 %v803
        %v961 = vunpack.c.h.b16 %v803
        %v962 = vunpack.c.l.b16 %v804
        %v963 = vunpack.c.h.b16 %v804
        %v964 = vunpack.c.l.b16 %v805
        %v965 = vunpack.c.h.b16 %v805
        %v966 = vunpack.c.l.b16 %v806
        %v967 = vunpack.c.h.b16 %v806
        %v968 = vunpack.c.l.b16 %v807
        %v969 = vunpack.c.h.b16 %v807
        %v970 = vunpack.c.l.b16 %v808
        %v971 = vunpack.c.h.b16 %v808
        %v972 = vunpack.c.l.b16 %v809
        %v973 = vunpack.c.h.b16 %v809
        %v974 = vunpack.c.l.b16 %v810
        %v975 = vunpack.c.h.b16 %v810
        %v976 = vunpack.c.l.b16 %v811
        %v977 = vunpack.c.h.b16 %v811
        %v978 = vunpack.c.l.b16 %v812
        %v979 = vunpack.c.h.b16 %v812
        %v980 = vunpack.c.l.b16 %v813
        %v981 = vunpack.c.h.b16 %v813
        %v982 = vunpack.c.l.b16 %v814
        %v983 = vunpack.c.h.b16 %v814
        %v984 = vunpack.c.l.b16 %v815
        %v985 = vunpack.c.h.b16 %v815
        %v986 = vunpack.c.l.b16 %v816
        %v987 = vunpack.c.h.b16 %v816
        %v988 = vunpack.c.l.b16 %v817
        %v989 = vunpack.c.h.b16 %v817
        %v990 = vunpack.c.l.b16 %v818
        %v991 = vunpack.c.h.b16 %v818
        %v992 = vunpack.c.l.b16 %v819
        %v993 = vunpack.c.h.b16 %v819
        %v994 = vunpack.c.l.b16 %v820
        %v995 = vunpack.c.h.b16 %v820
        %v996 = vunpack.c.l.b16 %v821
        %v997 = vunpack.c.h.b16 %v821
        %v998 = vunpack.c.l.b16 %v822
        %v999 = vunpack.c.h.b16 %v822
        %v1000 = vunpack.c.l.b16 %v823
        %v1001 = vunpack.c.h.b16 %v823
        %v1002 = vunpack.c.l.b16 %v824
        %v1003 = vunpack.c.h.b16 %v824
        %v1004 = vunpack.c.l.b16 %v825
        %v1005 = vunpack.c.h.b16 %v825
        %v1006 = vunpack.c.l.b16 %v826
        %v1007 = vunpack.c.h.b16 %v826
        %v1008 = vunpack.c.l.b16 %v827
        %v1009 = vunpack.c.h.b16 %v827
        %v1010 = vunpack.c.l.b16 %v828
        %v1011 = vunpack.c.h.b16 %v828
        %v1012 = vunpack.c.l.b16 %v829
        %v1013 = vunpack.c.h.b16 %v829
        %v1014 = vunpack.c.l.b16 %v830
        %v1015 = vunpack.c.h.b16 %v830
        %v1016 = vunpack.c.l.b16 %v831
        %v1017 = vunpack.c.h.b16 %v831
        %v1018 = vunpack.c.l.b16 %v832
        %v1019 = vunpack.c.h.b16 %v832
        %v1020 = vunpack.c.l.b16 %v833
        %v1021 = vunpack.c.h.b16 %v833
        %v1022 = vunpack.c.l.b16 %v834
        %v1023 = vunpack.c.h.b16 %v834
        %v1024 = vunpack.c.l.b16 %v835
        %v1025 = vunpack.c.h.b16 %v835
        %v1026 = vunpack.c.l.b16 %v836
        %v1027 = vunpack.c.h.b16 %v836
        %v1028 = vunpack.c.l.b16 %v837
        %v1029 = vunpack.c.h.b16 %v837
        %v1030 = vpack.c.b16 %v904, %v902
        %v1031 = vpack.c.b16 %v905, %v903
        %v1032 = vpack.c.b16 %v908, %v906
        %v1033 = vpack.c.b16 %v909, %v907
        %v1034 = vpack.c.b16 %v912, %v910
        %v1035 = vpack.c.b16 %v913, %v911
        %v1036 = vpack.c.b16 %v916, %v914
        %v1037 = vpack.c.b16 %v917, %v915
        %v1038 = vpack.c.b16 %v920, %v918
        %v1039 = vpack.c.b16 %v921, %v919
        %v1040 = vpack.c.b16 %v924, %v922
        %v1041 = vpack.c.b16 %v925, %v923
        %v1042 = vpack.c.b16 %v928, %v926
        %v1043 = vpack.c.b16 %v929, %v927
        %v1044 = vpack.c.b16 %v932, %v930
        %v1045 = vpack.c.b16 %v933, %v931
        %v1046 = vpack.c.b16 %v936, %v934
        %v1047 = vpack.c.b16 %v937, %v935
        %v1048 = vpack.c.b16 %v940, %v938
        %v1049 = vpack.c.b16 %v941, %v939
        %v1050 = vpack.c.b16 %v944, %v942
        %v1051 = vpack.c.b16 %v945, %v943
        %v1052 = vpack.c.b16 %v948, %v946
        %v1053 = vpack.c.b16 %v949, %v947
        %v1054 = vpack.c.b16 %v952, %v950
        %v1055 = vpack.c.b16 %v953, %v951
        %v1056 = vpack.c.b16 %v956, %v954
        %v1057 = vpack.c.b16 %v957, %v955
        %v1058 = vpack.c.b16 %v960, %v958
        %v1059 = vpack.c.b16 %v961, %v959
        %v1060 = vpack.c.b16 %v964, %v962
        %v1061 = vpack.c.b16 %v965, %v963
        %v1062 = vpack.c.b16 %v968, %v966
        %v1063 = vpack.c.b16 %v969, %v967
        %v1064 = vpack.c.b16 %v972, %v970
        %v1065 = vpack.c.b16 %v973, %v971
        %v1066 = vpack.c.b16 %v976, %v974
        %v1067 = vpack.c.b16 %v977, %v975
        %v1068 = vpack.c.b16 %v980, %v978
        %v1069 = vpack.c.b16 %v981, %v979
        %v1070 = vpack.c.b16 %v984, %v982
        %v1071 = vpack.c.b16 %v985, %v983
        %v1072 = vpack.c.b16 %v988, %v986
        %v1073 = vpack.c.b16 %v989, %v987
        %v1074 = vpack.c.b16 %v992, %v990
        %v1075 = vpack.c.b16 %v993, %v991
        %v1076 = vpack.c.b16 %v996, %v994
        %v1077 = vpack.c.b16 %v997, %v995
        %v1078 = vpack.c.b16 %v1000, %v998
        %v1079 = vpack.c.b16 %v1001, %v999
        %v1080 = vpack.c.b16 %v1004, %v1002
        %v1081 = vpack.c.b16 %v1005, %v1003
        %v1082 = vpack.c.b16 %v1008, %v1006
        %v1083 = vpack.c.b16 %v1009, %v1007
        %v1084 = vpack.c.b16 %v1012, %v1010
        %v1085 = vpack.c.b16 %v1013, %v1011
        %v1086 = vpack.c.b16 %v1016, %v1014
        %v1087 = vpack.c.b16 %v1017, %v1015
        %v1088 = vpack.c.b16 %v1020, %v1018
        %v1089 = vpack.c.b16 %v1021, %v1019
        %v1090 = vpack.c.b16 %v1024, %v1022
        %v1091 = vpack.c.b16 %v1025, %v1023
        %v1092 = vpack.c.b16 %v1028, %v1026
        %v1093 = vpack.c.b16 %v1029, %v1027
        %1158 = vmatprep.subr.bf16.mxu0 %v1031
        %1159 = vmatpush1.bf16.msra.mxu0 %v1030
        %1160 = vmatprep.subr.bf16.mxu0 %v1033
        %1161 = vmatpush1.bf16.msra.mxu0 %v1032
        %1162 = vmatprep.subr.bf16.mxu0 %v1035
        %1163 = vmatpush1.bf16.msra.mxu0 %v1034
        %1164 = vmatprep.subr.bf16.mxu0 %v1037
        %1165 = vmatpush1.bf16.msra.mxu0 %v1036
        %1166 = vmatprep.subr.bf16.mxu0 %v1039
        %1167 = vmatpush1.bf16.msra.mxu0 %v1038
        %1168 = vmatprep.subr.bf16.mxu0 %v1041
        %1169 = vmatpush1.bf16.msra.mxu0 %v1040
        %1170 = vmatprep.subr.bf16.mxu0 %v1043
        %1171 = vmatpush1.bf16.msra.mxu0 %v1042
        %1172 = vmatprep.subr.bf16.mxu0 %v1045
        %1173 = vmatpush1.bf16.msra.mxu0 %v1044
        %1174 = vmatprep.subr.bf16.mxu0 %v1047
        %1175 = vmatpush1.bf16.msra.mxu0 %v1046
        %1176 = vmatprep.subr.bf16.mxu0 %v1049
        %1177 = vmatpush1.bf16.msra.mxu0 %v1048
        %1178 = vmatprep.subr.bf16.mxu0 %v1051
        %1179 = vmatpush1.bf16.msra.mxu0 %v1050
        %1180 = vmatprep.subr.bf16.mxu0 %v1053
        %1181 = vmatpush1.bf16.msra.mxu0 %v1052
        %1182 = vmatprep.subr.bf16.mxu0 %v1055
        %1183 = vmatpush1.bf16.msra.mxu0 %v1054
        %1184 = vmatprep.subr.bf16.mxu0 %v1057
        %1185 = vmatpush1.bf16.msra.mxu0 %v1056
        %1186 = vmatprep.subr.bf16.mxu0 %v1059
        %1187 = vmatpush1.bf16.msra.mxu0 %v1058
        %1188 = vmatprep.subr.bf16.mxu0 %v1061
        %1189 = vmatpush1.bf16.msra.mxu0 %v1060
        %1190 = vmatprep.mubr.bf16.mxu0 %v743
        %1191 = vmatmul.mubr.bf16.gmra.mrb[0].mxu0 %v742
        %v1192 = vpop.f32.mrb[0].mxu0
        %v1193 = vadd.f32 0.0, %v1192
        %v1194 = vpop.f32.mrb[0].mxu0
        %v1195 = vadd.f32 0.0, %v1194
        %v1196 = vpop.f32.mrb[0].mxu0
        %v1197 = vadd.f32 0.0, %v1196
        %v1198 = vpop.f32.mrb[0].mxu0
        %v1199 = vadd.f32 0.0, %v1198
        %1200 = vmatprep.mubr.bf16.mxu0 %v747
        %1201 = vmatmul.mubr.bf16.gmra.mrb[0].mxu0 %v746
        %v1202 = vpop.f32.mrb[0].mxu0
        %v1203 = vadd.f32 0.0, %v1202
        %v1204 = vpop.f32.mrb[0].mxu0
        %v1205 = vadd.f32 0.0, %v1204
        %v1206 = vpop.f32.mrb[0].mxu0
        %v1207 = vadd.f32 0.0, %v1206
        %v1208 = vpop.f32.mrb[0].mxu0
        %v1209 = vadd.f32 0.0, %v1208
        %1210 = vmatprep.mubr.bf16.mxu0 %v751
        %1211 = vmatmul.mubr.bf16.gmra.mrb[0].mxu0 %v750
        %v1212 = vpop.f32.mrb[0].mxu0
        %v1213 = vadd.f32 0.0, %v1212
        %v1214 = vpop.f32.mrb[0].mxu0
        %v1215 = vadd.f32 0.0, %v1214
        %v1216 = vpop.f32.mrb[0].mxu0
        %v1217 = vadd.f32 0.0, %v1216
        %v1218 = vpop.f32.mrb[0].mxu0
        %v1219 = vadd.f32 0.0, %v1218
        %1220 = vmatprep.mubr.bf16.mxu0 %v755
        %1221 = vmatmul.mubr.bf16.gmra.mrb[0].mxu0 %v754
        %v1222 = vpop.f32.mrb[0].mxu0
        %v1223 = vadd.f32 0.0, %v1222
        %v1224 = vpop.f32.mrb[0].mxu0
        %v1225 = vadd.f32 0.0, %v1224
        %v1226 = vpop.f32.mrb[0].mxu0
        %v1227 = vadd.f32 0.0, %v1226
        %v1228 = vpop.f32.mrb[0].mxu0
        %v1229 = vadd.f32 0.0, %v1228
        %1230 = vmatprep.mubr.bf16.mxu0 %v759
        %1231 = vmatmul.mubr.bf16.gmra.mrb[0].mxu0 %v758
        %v1232 = vpop.f32.mrb[0].mxu0
        %v1233 = vadd.f32 0.0, %v1232
        %v1234 = vpop.f32.mrb[0].mxu0
        %v1235 = vadd.f32 0.0, %v1234
        %v1236 = vpop.f32.mrb[0].mxu0
        %v1237 = vadd.f32 0.0, %v1236
        %v1238 = vpop.f32.mrb[0].mxu0
        %v1239 = vadd.f32 0.0, %v1238
        %1240 = vmatprep.mubr.bf16.mxu0 %v763
        %1241 = vmatmul.mubr.bf16.gmra.mrb[0].mxu0 %v762
        %v1242 = vpop.f32.mrb[0].mxu0
        %v1243 = vadd.f32 0.0, %v1242
        %v1244 = vpop.f32.mrb[0].mxu0
        %v1245 = vadd.f32 0.0, %v1244
        %v1246 = vpop.f32.mrb[0].mxu0
        %v1247 = vadd.f32 0.0, %v1246
        %v1248 = vpop.f32.mrb[0].mxu0
        %v1249 = vadd.f32 0.0, %v1248
        %1250 = vmatprep.mubr.bf16.mxu0 %v767
        %1251 = vmatmul.mubr.bf16.gmra.mrb[0].mxu0 %v766
        %v1252 = vpop.f32.mrb[0].mxu0
        %v1253 = vadd.f32 0.0, %v1252
        %v1254 = vpop.f32.mrb[0].mxu0
        %v1255 = vadd.f32 0.0, %v1254
        %v1256 = vpop.f32.mrb[0].mxu0
        %v1257 = vadd.f32 0.0, %v1256
        %v1258 = vpop.f32.mrb[0].mxu0
        %v1259 = vadd.f32 0.0, %v1258
        %1260 = vmatprep.mubr.bf16.mxu0 %v771
        %1261 = vmatmul.mubr.bf16.gmra.mrb[0].mxu0 %v770
        %v1262 = vpop.f32.mrb[0].mxu0
        %v1263 = vadd.f32 0.0, %v1262
        %v1264 = vpop.f32.mrb[0].mxu0
        %v1265 = vadd.f32 0.0, %v1264
        %v1266 = vpop.f32.mrb[0].mxu0
        %v1267 = vadd.f32 0.0, %v1266
        %v1268 = vpop.f32.mrb[0].mxu0
        %v1269 = vadd.f32 0.0, %v1268
        %1270 = vdwg.mxu0
        %1271 = vmatprep.subr.bf16.mxu0 %v1063
        %1272 = vmatpush1.bf16.msra.mxu0 %v1062
        %1273 = vmatprep.subr.bf16.mxu0 %v1065
        %1274 = vmatpush1.bf16.msra.mxu0 %v1064
        %1275 = vmatprep.subr.bf16.mxu0 %v1067
        %1276 = vmatpush1.bf16.msra.mxu0 %v1066
        %1277 = vmatprep.subr.bf16.mxu0 %v1069
        %1278 = vmatpush1.bf16.msra.mxu0 %v1068
        %1279 = vmatprep.subr.bf16.mxu0 %v1071
        %1280 = vmatpush1.bf16.msra.mxu0 %v1070
        %1281 = vmatprep.subr.bf16.mxu0 %v1073
        %1282 = vmatpush1.bf16.msra.mxu0 %v1072
        %1283 = vmatprep.subr.bf16.mxu0 %v1075
        %1284 = vmatpush1.bf16.msra.mxu0 %v1074
        %1285 = vmatprep.subr.bf16.mxu0 %v1077
        %1286 = vmatpush1.bf16.msra.mxu0 %v1076
        %1287 = vmatprep.subr.bf16.mxu0 %v1079
        %1288 = vmatpush1.bf16.msra.mxu0 %v1078
        %1289 = vmatprep.subr.bf16.mxu0 %v1081
        %1290 = vmatpush1.bf16.msra.mxu0 %v1080
        %1291 = vmatprep.subr.bf16.mxu0 %v1083
        %1292 = vmatpush1.bf16.msra.mxu0 %v1082
        %1293 = vmatprep.subr.bf16.mxu0 %v1085
        %1294 = vmatpush1.bf16.msra.mxu0 %v1084
        %1295 = vmatprep.subr.bf16.mxu0 %v1087
        %1296 = vmatpush1.bf16.msra.mxu0 %v1086
        %1297 = vmatprep.subr.bf16.mxu0 %v1089
        %1298 = vmatpush1.bf16.msra.mxu0 %v1088
        %1299 = vmatprep.subr.bf16.mxu0 %v1091
        %1300 = vmatpush1.bf16.msra.mxu0 %v1090
        %1301 = vmatprep.subr.bf16.mxu0 %v1093
        %1302 = vmatpush1.bf16.msra.mxu0 %v1092
        %1303 = vmatprep.mubr.bf16.mxu0 %v745
        %1304 = vmatmul.mubr.bf16.gmra.mrb[0].mxu0 %v744
        %v1305 = vpop.f32.mrb[0].mxu0
        %v1306 = vadd.f32 %v1193, %v1305
        %v1307 = vpop.f32.mrb[0].mxu0
        %v1308 = vadd.f32 %v1195, %v1307
        %v1309 = vpop.f32.mrb[0].mxu0
        %v1310 = vadd.f32 %v1197, %v1309
        %v1311 = vpop.f32.mrb[0].mxu0
        %v1312 = vadd.f32 %v1199, %v1311
        %1313 = vmatprep.mubr.bf16.mxu0 %v749
        %1314 = vmatmul.mubr.bf16.gmra.mrb[0].mxu0 %v748
        %v1315 = vpop.f32.mrb[0].mxu0
        %v1316 = vadd.f32 %v1203, %v1315
        %v1317 = vpop.f32.mrb[0].mxu0
        %v1318 = vadd.f32 %v1205, %v1317
        %v1319 = vpop.f32.mrb[0].mxu0
        %v1320 = vadd.f32 %v1207, %v1319
        %v1321 = vpop.f32.mrb[0].mxu0
        %v1322 = vadd.f32 %v1209, %v1321
        %1323 = vmatprep.mubr.bf16.mxu0 %v753
        %1324 = vmatmul.mubr.bf16.gmra.mrb[0].mxu0 %v752
        %v1325 = vpop.f32.mrb[0].mxu0
        %v1326 = vadd.f32 %v1213, %v1325
        %v1327 = vpop.f32.mrb[0].mxu0
        %v1328 = vadd.f32 %v1215, %v1327
        %v1329 = vpop.f32.mrb[0].mxu0
        %v1330 = vadd.f32 %v1217, %v1329
        %v1331 = vpop.f32.mrb[0].mxu0
        %v1332 = vadd.f32 %v1219, %v1331
        %1333 = vmatprep.mubr.bf16.mxu0 %v757
        %1334 = vmatmul.mubr.bf16.gmra.mrb[0].mxu0 %v756
        %v1335 = vpop.f32.mrb[0].mxu0
        %v1336 = vadd.f32 %v1223, %v1335
        %v1337 = vpop.f32.mrb[0].mxu0
        %v1338 = vadd.f32 %v1225, %v1337
        %v1339 = vpop.f32.mrb[0].mxu0
        %v1340 = vadd.f32 %v1227, %v1339
        %v1341 = vpop.f32.mrb[0].mxu0
        %v1342 = vadd.f32 %v1229, %v1341
        %1343 = vmatprep.mubr.bf16.mxu0 %v761
        %1344 = vmatmul.mubr.bf16.gmra.mrb[0].mxu0 %v760
        %v1345 = vpop.f32.mrb[0].mxu0
        %v1346 = vadd.f32 %v1233, %v1345
        %v1347 = vpop.f32.mrb[0].mxu0
        %v1348 = vadd.f32 %v1235, %v1347
        %v1349 = vpop.f32.mrb[0].mxu0
        %v1350 = vadd.f32 %v1237, %v1349
        %v1351 = vpop.f32.mrb[0].mxu0
        %v1352 = vadd.f32 %v1239, %v1351
        %1353 = vmatprep.mubr.bf16.mxu0 %v765
        %1354 = vmatmul.mubr.bf16.gmra.mrb[0].mxu0 %v764
        %v1355 = vpop.f32.mrb[0].mxu0
        %v1356 = vadd.f32 %v1243, %v1355
        %v1357 = vpop.f32.mrb[0].mxu0
        %v1358 = vadd.f32 %v1245, %v1357
        %v1359 = vpop.f32.mrb[0].mxu0
        %v1360 = vadd.f32 %v1247, %v1359
        %v1361 = vpop.f32.mrb[0].mxu0
        %v1362 = vadd.f32 %v1249, %v1361
        %1363 = vmatprep.mubr.bf16.mxu0 %v769
        %1364 = vmatmul.mubr.bf16.gmra.mrb[0].mxu0 %v768
        %v1365 = vpop.f32.mrb[0].mxu0
        %v1366 = vadd.f32 %v1253, %v1365
        %v1367 = vpop.f32.mrb[0].mxu0
        %v1368 = vadd.f32 %v1255, %v1367
        %v1369 = vpop.f32.mrb[0].mxu0
        %v1370 = vadd.f32 %v1257, %v1369
        %v1371 = vpop.f32.mrb[0].mxu0
        %v1372 = vadd.f32 %v1259, %v1371
        %1373 = vmatprep.mubr.bf16.mxu0 %v773
        %1374 = vmatmul.mubr.bf16.gmra.mrb[0].mxu0 %v772
        %v1375 = vpop.f32.mrb[0].mxu0
        %v1376 = vadd.f32 %v1263, %v1375
        %v1377 = vpop.f32.mrb[0].mxu0
        %v1378 = vadd.f32 %v1265, %v1377
        %v1379 = vpop.f32.mrb[0].mxu0
        %v1380 = vadd.f32 %v1267, %v1379
        %v1381 = vpop.f32.mrb[0].mxu0
        %v1382 = vadd.f32 %v1269, %v1381
        %1383 = vdwg.mxu0
        %v1400 = vunpack.c.l.b16 %v710
        %v1401 = vunpack.c.l.b16 %v711
        %v1402 = vunpack.c.l.b16 %v712
        %v1403 = vunpack.c.l.b16 %v713
        %v1404 = vunpack.c.l.b16 %v714
        %v1405 = vunpack.c.l.b16 %v715
        %v1406 = vunpack.c.l.b16 %v716
        %v1407 = vunpack.c.l.b16 %v717
        %v1408 = vunpack.c.l.b16 %v718
        %v1409 = vunpack.c.l.b16 %v719
        %v1410 = vunpack.c.l.b16 %v720
        %v1411 = vunpack.c.l.b16 %v721
        %v1412 = vunpack.c.l.b16 %v722
        %v1413 = vunpack.c.l.b16 %v723
        %v1414 = vunpack.c.l.b16 %v724
        %v1415 = vunpack.c.l.b16 %v725
        %v1416 = vpack.c.b16 %v1401, %v1400
        %v1417 = vpack.c.b16 %v1403, %v1402
        %v1418 = vpack.c.b16 %v1405, %v1404
        %v1419 = vpack.c.b16 %v1407, %v1406
        %v1420 = vpack.c.b16 %v1409, %v1408
        %v1421 = vpack.c.b16 %v1411, %v1410
        %v1422 = vpack.c.b16 %v1413, %v1412
        %v1423 = vpack.c.b16 %v1415, %v1414
        %v1448 = vunpack.c.l.b16 %v726
        %v1449 = vunpack.c.h.b16 %v726
        %v1450 = vunpack.c.l.b16 %v727
        %v1451 = vunpack.c.h.b16 %v727
        %v1452 = vunpack.c.l.b16 %v728
        %v1453 = vunpack.c.h.b16 %v728
        %v1454 = vunpack.c.l.b16 %v729
        %v1455 = vunpack.c.h.b16 %v729
        %v1456 = vunpack.c.l.b16 %v730
        %v1457 = vunpack.c.h.b16 %v730
        %v1458 = vunpack.c.l.b16 %v731
        %v1459 = vunpack.c.h.b16 %v731
        %v1460 = vunpack.c.l.b16 %v732
        %v1461 = vunpack.c.h.b16 %v732
        %v1462 = vunpack.c.l.b16 %v733
        %v1463 = vunpack.c.h.b16 %v733
        %v1464 = vunpack.c.l.b16 %v734
        %v1465 = vunpack.c.h.b16 %v734
        %v1466 = vunpack.c.l.b16 %v735
        %v1467 = vunpack.c.h.b16 %v735
        %v1468 = vunpack.c.l.b16 %v736
        %v1469 = vunpack.c.h.b16 %v736
        %v1470 = vunpack.c.l.b16 %v737
        %v1471 = vunpack.c.h.b16 %v737
        %v1472 = vunpack.c.l.b16 %v738
        %v1473 = vunpack.c.h.b16 %v738
        %v1474 = vunpack.c.l.b16 %v739
        %v1475 = vunpack.c.h.b16 %v739
        %v1476 = vunpack.c.l.b16 %v740
        %v1477 = vunpack.c.h.b16 %v740
        %v1478 = vunpack.c.l.b16 %v741
        %v1479 = vunpack.c.h.b16 %v741
        %v1480 = vpack.c.b16 %v1450, %v1448
        %v1481 = vpack.c.b16 %v1451, %v1449
        %v1482 = vpack.c.b16 %v1454, %v1452
        %v1483 = vpack.c.b16 %v1455, %v1453
        %v1484 = vpack.c.b16 %v1458, %v1456
        %v1485 = vpack.c.b16 %v1459, %v1457
        %v1486 = vpack.c.b16 %v1462, %v1460
        %v1487 = vpack.c.b16 %v1463, %v1461
        %v1488 = vpack.c.b16 %v1466, %v1464
        %v1489 = vpack.c.b16 %v1467, %v1465
        %v1490 = vpack.c.b16 %v1470, %v1468
        %v1491 = vpack.c.b16 %v1471, %v1469
        %v1492 = vpack.c.b16 %v1474, %v1472
        %v1493 = vpack.c.b16 %v1475, %v1473
        %v1494 = vpack.c.b16 %v1478, %v1476
        %v1495 = vpack.c.b16 %v1479, %v1477
        %1512 = vmatprep.subr.bf16.mxu0 %v1481
        %1513 = vmatpush1.bf16.msra.mxu0 %v1480
        %1514 = vmatprep.subr.bf16.mxu0 %v1483
        %1515 = vmatpush1.bf16.msra.mxu0 %v1482
        %1516 = vmatprep.subr.bf16.mxu0 %v1485
        %1517 = vmatpush1.bf16.msra.mxu0 %v1484
        %1518 = vmatprep.subr.bf16.mxu0 %v1487
        %1519 = vmatpush1.bf16.msra.mxu0 %v1486
        %1520 = vmatprep.subr.bf16.mxu0 %v1489
        %1521 = vmatpush1.bf16.msra.mxu0 %v1488
        %1522 = vmatprep.subr.bf16.mxu0 %v1491
        %1523 = vmatpush1.bf16.msra.mxu0 %v1490
        %1524 = vmatprep.subr.bf16.mxu0 %v1493
        %1525 = vmatpush1.bf16.msra.mxu0 %v1492
        %1526 = vmatprep.subr.bf16.mxu0 %v1495
        %1527 = vmatpush1.bf16.msra.mxu0 %v1494
        %1528 = vmatprep.subr.bf16.mxu0 0
        %1529 = vmatpush1.bf16.msra.mxu0 0
        %1530 = vmatprep.subr.bf16.mxu0 0
        %1531 = vmatpush1.bf16.msra.mxu0 0
        %1532 = vmatprep.subr.bf16.mxu0 0
        %1533 = vmatpush1.bf16.msra.mxu0 0
        %1534 = vmatprep.subr.bf16.mxu0 0
        %1535 = vmatpush1.bf16.msra.mxu0 0
        %1536 = vmatprep.subr.bf16.mxu0 0
        %1537 = vmatpush1.bf16.msra.mxu0 0
        %1538 = vmatprep.subr.bf16.mxu0 0
        %1539 = vmatpush1.bf16.msra.mxu0 0
        %1540 = vmatprep.subr.bf16.mxu0 0
        %1541 = vmatpush1.bf16.msra.mxu0 0
        %1542 = vmatprep.subr.bf16.mxu0 0
        %1543 = vmatpush1.bf16.msra.mxu0 0
        %1544 = vmatprep.mubr.bf16.mxu0 0
        %1545 = vmatmul.mubr.bf16.gmra.mrb[0].mxu0 %v1416
        %v1546 = vpop.f32.mrb[0].mxu0
        %v1547 = vadd.f32 %v1306, %v1546
        %v1548 = vpop.f32.mrb[0].mxu0
        %v1549 = vadd.f32 %v1308, %v1548
        %v1550 = vpop.f32.mrb[0].mxu0
        %v1551 = vadd.f32 %v1310, %v1550
        %v1552 = vpop.f32.mrb[0].mxu0
        %v1553 = vadd.f32 %v1312, %v1552
        %1554 = vmatprep.mubr.bf16.mxu0 0
        %1555 = vmatmul.mubr.bf16.gmra.mrb[0].mxu0 %v1417
        %v1556 = vpop.f32.mrb[0].mxu0
        %v1557 = vadd.f32 %v1316, %v1556
        %v1558 = vpop.f32.mrb[0].mxu0
        %v1559 = vadd.f32 %v1318, %v1558
        %v1560 = vpop.f32.mrb[0].mxu0
        %v1561 = vadd.f32 %v1320, %v1560
        %v1562 = vpop.f32.mrb[0].mxu0
        %v1563 = vadd.f32 %v1322, %v1562
        %1564 = vmatprep.mubr.bf16.mxu0 0
        %1565 = vmatmul.mubr.bf16.gmra.mrb[0].mxu0 %v1418
        %v1566 = vpop.f32.mrb[0].mxu0
        %v1567 = vadd.f32 %v1326, %v1566
        %v1568 = vpop.f32.mrb[0].mxu0
        %v1569 = vadd.f32 %v1328, %v1568
        %v1570 = vpop.f32.mrb[0].mxu0
        %v1571 = vadd.f32 %v1330, %v1570
        %v1572 = vpop.f32.mrb[0].mxu0
        %v1573 = vadd.f32 %v1332, %v1572
        %1574 = vmatprep.mubr.bf16.mxu0 0
        %1575 = vmatmul.mubr.bf16.gmra.mrb[0].mxu0 %v1419
        %v1576 = vpop.f32.mrb[0].mxu0
        %v1577 = vadd.f32 %v1336, %v1576
        %v1578 = vpop.f32.mrb[0].mxu0
        %v1579 = vadd.f32 %v1338, %v1578
        %v1580 = vpop.f32.mrb[0].mxu0
        %v1581 = vadd.f32 %v1340, %v1580
        %v1582 = vpop.f32.mrb[0].mxu0
        %v1583 = vadd.f32 %v1342, %v1582
        %1584 = vmatprep.mubr.bf16.mxu0 0
        %1585 = vmatmul.mubr.bf16.gmra.mrb[0].mxu0 %v1420
        %v1586 = vpop.f32.mrb[0].mxu0
        %v1587 = vadd.f32 %v1346, %v1586
        %v1588 = vpop.f32.mrb[0].mxu0
        %v1589 = vadd.f32 %v1348, %v1588
        %v1590 = vpop.f32.mrb[0].mxu0
        %v1591 = vadd.f32 %v1350, %v1590
        %v1592 = vpop.f32.mrb[0].mxu0
        %v1593 = vadd.f32 %v1352, %v1592
        %1594 = vmatprep.mubr.bf16.mxu0 0
        %1595 = vmatmul.mubr.bf16.gmra.mrb[0].mxu0 %v1421
        %v1596 = vpop.f32.mrb[0].mxu0
        %v1597 = vadd.f32 %v1356, %v1596
        %v1598 = vpop.f32.mrb[0].mxu0
        %v1599 = vadd.f32 %v1358, %v1598
        %v1600 = vpop.f32.mrb[0].mxu0
        %v1601 = vadd.f32 %v1360, %v1600
        %v1602 = vpop.f32.mrb[0].mxu0
        %v1603 = vadd.f32 %v1362, %v1602
        %1604 = vmatprep.mubr.bf16.mxu0 0
        %1605 = vmatmul.mubr.bf16.gmra.mrb[0].mxu0 %v1422
        %v1606 = vpop.f32.mrb[0].mxu0
        %v1607 = vadd.f32 %v1366, %v1606
        %v1608 = vpop.f32.mrb[0].mxu0
        %v1609 = vadd.f32 %v1368, %v1608
        %v1610 = vpop.f32.mrb[0].mxu0
        %v1611 = vadd.f32 %v1370, %v1610
        %v1612 = vpop.f32.mrb[0].mxu0
        %v1613 = vadd.f32 %v1372, %v1612
        %1614 = vmatprep.mubr.bf16.mxu0 0
        %1615 = vmatmul.mubr.bf16.gmra.mrb[0].mxu0 %v1423
        %v1616 = vpop.f32.mrb[0].mxu0
        %v1617 = vadd.f32 %v1376, %v1616
        %v1618 = vpop.f32.mrb[0].mxu0
        %v1619 = vadd.f32 %v1378, %v1618
        %v1620 = vpop.f32.mrb[0].mxu0
        %v1621 = vadd.f32 %v1380, %v1620
        %v1622 = vpop.f32.mrb[0].mxu0
        %v1623 = vadd.f32 %v1382, %v1622
        %1624 = vdwg.mxu0
        %v1625 = vld [vmem:[%s5] sm:$0x3]
        %v1627 = vlaneseq
        %v1628 = vshrl.u32 %v1627, 7
        %v1629 = vsub.s32 0, %v1628
        %v1630 = vrot.slane %v1625, %v1629
        %v1631 = vlaneseq
        %v1632 = vshrl.u32 %v1631, 7
        %v1633 = vsub.s32 1, %v1632
        %v1634 = vrot.slane %v1625, %v1633
        %v1637 = vadd.f32 %v1547, %v1630
        %v1638 = vadd.f32 %v1549, %v1634
        %v1639 = vadd.f32 %v1551, %v1630
        %v1640 = vadd.f32 %v1553, %v1634
        %v1641 = vadd.f32 %v1557, %v1630
        %v1642 = vadd.f32 %v1559, %v1634
        %v1643 = vadd.f32 %v1561, %v1630
        %v1644 = vadd.f32 %v1563, %v1634
        %v1645 = vadd.f32 %v1567, %v1630
        %v1646 = vadd.f32 %v1569, %v1634
        %v1647 = vadd.f32 %v1571, %v1630
        %v1648 = vadd.f32 %v1573, %v1634
        %v1649 = vadd.f32 %v1577, %v1630
        %v1650 = vadd.f32 %v1579, %v1634
        %v1651 = vadd.f32 %v1581, %v1630
        %v1652 = vadd.f32 %v1583, %v1634
        %v1653 = vadd.f32 %v1587, %v1630
        %v1654 = vadd.f32 %v1589, %v1634
        %v1655 = vadd.f32 %v1591, %v1630
        %v1656 = vadd.f32 %v1593, %v1634
        %v1657 = vadd.f32 %v1597, %v1630
        %v1658 = vadd.f32 %v1599, %v1634
        %v1659 = vadd.f32 %v1601, %v1630
        %v1660 = vadd.f32 %v1603, %v1634
        %v1661 = vadd.f32 %v1607, %v1630
        %v1662 = vadd.f32 %v1609, %v1634
        %v1663 = vadd.f32 %v1611, %v1630
        %v1664 = vadd.f32 %v1613, %v1634
        %v1665 = vadd.f32 %v1617, %v1630
        %v1666 = vadd.f32 %v1619, %v1634
        %v1667 = vadd.f32 %v1621, %v1630
        %v1668 = vadd.f32 %v1623, %v1634
        %1669 = vst [vmem:[%s306] sm:$0xff] %v1637
        %1670 = vst [vmem:[%s306 + $0x8] sm:$0xff] %v1638
        %1671 = vst [vmem:[%s306 + $0x10] sm:$0xff] %v1639
        %1672 = vst [vmem:[%s306 + $0x18] sm:$0xff] %v1640
        %1673 = vst [vmem:[%s306 + $0x20] sm:$0xff] %v1641
        %1674 = vst [vmem:[%s306 + $0x28] sm:$0xff] %v1642
        %1675 = vst [vmem:[%s306 + $0x30] sm:$0xff] %v1643
        %1676 = vst [vmem:[%s306 + $0x38] sm:$0xff] %v1644
        %1677 = vst [vmem:[%s306 + $0x40] sm:$0xff] %v1645
        %1678 = vst [vmem:[%s306 + $0x48] sm:$0xff] %v1646
        %1679 = vst [vmem:[%s306 + $0x50] sm:$0xff] %v1647
        %1680 = vst [vmem:[%s306 + $0x58] sm:$0xff] %v1648
        %1681 = vst [vmem:[%s306 + $0x60] sm:$0xff] %v1649
        %1682 = vst [vmem:[%s306 + $0x68] sm:$0xff] %v1650
        %1683 = vst [vmem:[%s306 + $0x70] sm:$0xff] %v1651
        %1684 = vst [vmem:[%s306 + $0x78] sm:$0xff] %v1652
        %1685 = vst [vmem:[%s306 + $0x80] sm:$0xff] %v1653
        %1686 = vst [vmem:[%s306 + $0x88] sm:$0xff] %v1654
        %1687 = vst [vmem:[%s306 + $0x90] sm:$0xff] %v1655
        %1688 = vst [vmem:[%s306 + $0x98] sm:$0xff] %v1656
        %1689 = vst [vmem:[%s306 + $0xa0] sm:$0xff] %v1657
        %1690 = vst [vmem:[%s306 + $0xa8] sm:$0xff] %v1658
        %1691 = vst [vmem:[%s306 + $0xb0] sm:$0xff] %v1659
        %1692 = vst [vmem:[%s306 + $0xb8] sm:$0xff] %v1660
        %1693 = vst [vmem:[%s306 + $0xc0] sm:$0xff] %v1661
        %1694 = vst [vmem:[%s306 + $0xc8] sm:$0xff] %v1662
        %1695 = vst [vmem:[%s306 + $0xd0] sm:$0xff] %v1663
        %1696 = vst [vmem:[%s306 + $0xd8] sm:$0xff] %v1664
        %1697 = vst [vmem:[%s306 + $0xe0] sm:$0xff] %v1665
        %1698 = vst [vmem:[%s306 + $0xe8] sm:$0xff] %v1666
        %1699 = vst [vmem:[%s306 + $0xf0] sm:$0xff] %v1667
        %1700 = vst [vmem:[%s306 + $0xf8] sm:$0xff] %v1668
      $region60: #{kerl_forward.2} parent=43 // pred_fallthru
        _
      %s1701 = smul.u32 16, %s21
      %p1702 = scmp.lt.s32.totalorder %s1701, 31
      %s1703 = scalar_select %p1702, %s1701, 31
      %s1704 = smul.addr %s1703, 2
      %s1705 = smul.addr %s1704, 8
      %s1706 = scalar_lea.vmem %s6, %s1705
      // Predicated region
      $region61: #{kerl_forward.2} parent=43 // pred_check
        %p1707 = pneg %p185
      $region62: #{kerl_forward.2} parent=43 // pred_check_branch
        %1709 = sbr.rel (%p1707) target = $region64
      $region63: #{kerl_forward.2} parent=43 // pred_region
        %s1710 = smul.u32 16, %s21
      $region64: #{kerl_forward.2} parent=43 // pred_fallthru
        _
    $region44: #{kerl_forward.2} parent=5 // pred_fallthru
      _
    %p1711 = scmp.le.s32.totalorder 2, %s12
    // Predicated region
    $region65: #{kerl_forward.2} parent=5 // pred_check
      %p1712 = pneg %p1711
    $region66: #{kerl_forward.2} parent=5 // pred_check_branch
      %1714 = sbr.rel (%p1712) target = $region68
    $region67: #{kerl_forward.2} parent=5 // pred_region
      %s1715 = ssub.s32 %s12, 2
      // Predicated region
      $region69: #{kerl_forward.2} parent=67 // pred_check
        %p1716 = pneg %p191
      $region70: #{kerl_forward.2} parent=67 // pred_check_branch
        %1718 = sbr.rel (%p1716) target = $region72
      $region71: #{kerl_forward.2} parent=67 // pred_region
        %s1719 = smul.u32 16, %s23
        %p1720 = scmp.lt.s32.totalorder %s1719, 31
        %s1721 = scalar_select %p1720, %s1719, 31
        %s1722 = smul.addr %s1721, 2
        %s1723 = smul.addr %s1722, 8
        %s1724 = scalar_lea.vmem %s6, %s1723
      $region72: #{kerl_forward.2} parent=67 // pred_fallthru
        _
    $region68: #{kerl_forward.2} parent=5 // pred_fallthru
      _
  $region6: #{kerl_forward.2} parent=0 // loop_footer
    %s16 = sadd.s32 1, %s12
  $region7: #{kerl_forward.2} parent=0 // loop_footer_branch
    %11 = sbr.rel target = $region3
  $region8: #{kerl_forward.2} parent=0 // loop_exit
    _

</llo_original>
